<compile_context>
chip_gen: v6e
topology: v6e:2x2x1
jax: 0.10.0
libtpu: 0.0.40
codegen_flags: <defaults>
</compile_context>

<pallas_src>
import jax
import jax.numpy as jnp
import numpy as np
from jax.experimental import pallas as pl
from jax.experimental.pallas import tpu as pltpu

HIDDEN = 32      # hidden_size (small, consistent with the module)
OUTPUT = 16      # output_size (vocab)
MAX_LEN = 8      # MAX_LENGTH in the reference file is 0 (degenerate); use a small positive length.
BATCH = 16       # total decode rows (e.g. beams over one source sentence)
T_STEPS = 6      # decode steps fused into one kernel launch


def _pick_bb(batch):
    """v7x has 2 TensorCores: keep a 2-wide 'parallel' batch axis.
    Single-TC v5e/v6e: one big block (nb=1) avoids extra grid-step overhead."""
    try:
        kind = jax.devices()[0].device_kind.lower()
    except Exception:
        kind = ""
    if "v7" in kind and batch % 16 == 0:
        return batch // 2
    return batch


BB = _pick_bb(BATCH)


def attn_decoder_kernel(hid0_ref, ef_ref, enccb_ref, w_hf_ref,
                        w_ih_ref, b_ih_ref, b_hh_ref,
                        w_out_ref, b_out_ref,
                        logp_ref, attnw_ref, hfin_ref):
    T, bb, _ = ef_ref.shape
    H = hid0_ref.shape[1]
    L = enccb_ref.shape[0]

    hid = hid0_ref[...]              # (bb, H) plain loop-carried hidden state
    w_hf = w_hf_ref[...]             # (H, L + 3H): [w_attn_bot | w_hh]
    enc_cb = enccb_ref[...]          # (L, H): encoder_outputs @ w_comb_bot
    w_ih = w_ih_ref[...]
    b_ih = b_ih_ref[...]
    b_hh = b_hh_ref[...]

    h_steps = []
    for t in range(T):               # statically unrolled; T is small & compile-time
        ef = ef_ref[t]               # (bb, L + H); b_attn/b_comb already folded in

        # Only hidden-dependent matmul feeding both attention logits and GRU gh.
        hf = jnp.dot(hid, w_hf, preferred_element_type=jnp.float32)   # (bb, L + 3H)

        # attn_weights = softmax(attn(cat(embedded, hidden)))   -- exact divide
        logits = ef[:, :L] + hf[:, :L]
        logits = logits - jnp.max(logits, axis=1, keepdims=True)
        e = jnp.exp(logits)
        attn_w = e / jnp.sum(e, axis=1, keepdims=True)
        attnw_ref[t] = attn_w

        # output = relu(attn_combine(cat(embedded, attn_applied)))
        # attn_applied @ w_comb_bot == attn_w @ (enc @ w_comb_bot) = attn_w @ enc_cb
        comb = ef[:, L:] + jnp.dot(attn_w, enc_cb, preferred_element_type=jnp.float32)
        x = jnp.maximum(comb, 0.0)

        # Single-step GRU cell (PyTorch gate order r | z | n).
        gi = jnp.dot(x, w_ih, preferred_element_type=jnp.float32) + b_ih
        gh = hf[:, L:] + b_hh                       # hid @ w_hh is already inside hf
        rz = jax.nn.sigmoid(gi[:, :2 * H] + gh[:, :2 * H])   # one fused 2H-wide sigmoid
        r = rz[:, :H]
        z = rz[:, H:]
        n = jnp.tanh(gi[:, 2 * H:] + r * gh[:, 2 * H:])
        hid = (1.0 - z) * n + z * hid
        h_steps.append(hid)

    hfin_ref[...] = hid

    # Deferred output head: one batched matmul + log_softmax over all T steps.
    h_all = jnp.concatenate(h_steps, axis=0)                          # (T*bb, H)
    out_logits = jnp.dot(h_all, w_out_ref[...],
                         preferred_element_type=jnp.float32) + b_out_ref[...]
    shifted = out_logits - jnp.max(out_logits, axis=1, keepdims=True)
    logp = shifted - jnp.log(jnp.sum(jnp.exp(shifted), axis=1, keepdims=True))
    for t in range(T):
        logp_ref[t] = logp[t * bb:(t + 1) * bb]


def _const_spec(shape):
    zeros = (0,) * len(shape)
    return pl.BlockSpec(shape, lambda b, _z=zeros: _z)


@jax.jit
def attn_decoder_decode(params, tokens, hidden0, encoder_outputs):
    """AttnDecoderRNN.forward applied T times (teacher forced) per batch row.

    tokens: (B, T) int32, hidden0: (B, H) f32, encoder_outputs: (L, H) f32.
    Returns (logp (T,B,OUTPUT), new_hidden (1,B,H), attn_weights (T,B,L)).
    """
    B, T = tokens.shape
    H, L, O = HIDDEN, MAX_LEN, OUTPUT
    bb = BB if (B % BB == 0) else B
    nb = B // bb
    hi = jax.lax.Precision.HIGHEST

    # Hidden-independent precompute, hoisted off the serial chain (runs once).
    w_eh = jnp.concatenate([params["w_attn"][:H], params["w_comb"][:H]], axis=1)   # (H, L+H)
    b_ef = jnp.concatenate([params["b_attn"], params["b_comb"]], axis=1)           # (1, L+H)
    w_hf = jnp.concatenate([params["w_attn"][H:], params["w_hh"]], axis=1)         # (H, L+3H)
    enc_cb = jnp.dot(encoder_outputs, params["w_comb"][H:], precision=hi)          # (L, H)

    emb_all = params["embedding"][tokens]                                          # (B, T, H)
    # TODO(synk): nn.Dropout(p=0.1) is treated as inference-mode identity.
    ef_all = jnp.matmul(emb_all, w_eh, precision=hi) + b_ef                        # (B, T, L+H)
    ef_all = jnp.transpose(ef_all, (1, 0, 2))                                      # (T, B, L+H)

    grid_spec = pltpu.PrefetchScalarGridSpec(
        num_scalar_prefetch=0,
        grid=(nb,),
        in_specs=[
            pl.BlockSpec((bb, H), lambda b: (b, 0)),              # hidden0
            pl.BlockSpec((T, bb, L + H), lambda b: (0, b, 0)),    # ef_all (per-step emb terms)
            _const_spec((L, H)),                                  # enc_cb (resident)
            _const_spec((H, L + 3 * H)),                          # fused hidden-side weights
            _const_spec((H, 3 * H)),                              # w_ih
            _const_spec((1, 3 * H)),                              # b_ih
            _const_spec((1, 3 * H)),                              # b_hh
            _const_spec((H, O)),                                  # w_out
            _const_spec((1, O)),                                  # b_out
        ],
        out_specs=[
            pl.BlockSpec((T, bb, O), lambda b: (0, b, 0)),        # log-probs (all steps)
            pl.BlockSpec((T, bb, L), lambda b: (0, b, 0)),        # attention weights
            pl.BlockSpec((bb, H), lambda b: (b, 0)),              # final hidden
        ],
    )

    logp, attn_w, h_fin = pl.pallas_call(
        attn_decoder_kernel,
        out_shape=(
            jax.ShapeDtypeStruct((T, B, O), jnp.float32),
            jax.ShapeDtypeStruct((T, B, L), jnp.float32),
            jax.ShapeDtypeStruct((B, H), jnp.float32),
        ),
        grid_spec=grid_spec,
        compiler_params=pltpu.CompilerParams(dimension_semantics=("parallel",)),
    )(hidden0, ef_all, enc_cb, w_hf,
      params["w_ih"], params["b_ih"], params["b_hh"],
      params["w_out"], params["b_out"])

    return logp, h_fin[None], attn_w


def init_params(key, hidden=HIDDEN, output=OUTPUT, max_len=MAX_LEN):
    ks = jax.random.split(key, 11)
    s = 0.1
    return {
        "embedding": s * jax.random.normal(ks[0], (output, hidden), jnp.float32),
        # Linear weights stored (in_features, out_features)
        "w_attn": s * jax.random.normal(ks[1], (2 * hidden, max_len), jnp.float32),
        "b_attn": s * jax.random.normal(ks[2], (1, max_len), jnp.float32),
        "w_comb": s * jax.random.normal(ks[3], (2 * hidden, hidden), jnp.float32),
        "b_comb": s * jax.random.normal(ks[4], (1, hidden), jnp.float32),
        # GRU weights stored (in_features, 3*hidden), gate order r|z|n
        "w_ih": s * jax.random.normal(ks[5], (hidden, 3 * hidden), jnp.float32),
        "b_ih": s * jax.random.normal(ks[6], (1, 3 * hidden), jnp.float32),
        "w_hh": s * jax.random.normal(ks[7], (hidden, 3 * hidden), jnp.float32),
        "b_hh": s * jax.random.normal(ks[8], (1, 3 * hidden), jnp.float32),
        "w_out": s * jax.random.normal(ks[9], (hidden, output), jnp.float32),
        "b_out": s * jax.random.normal(ks[10], (1, output), jnp.float32),
    }


def reference_decode(params, tokens, hidden0, enc):
    """Pure-JAX reference: the PyTorch forward applied T times per batch row."""
    H = HIDDEN
    h = hidden0
    logps, attns = [], []
    for t in range(tokens.shape[1]):
        emb = params["embedding"][tokens[:, t]]
        cat = jnp.concatenate([emb, h], axis=1)
        aw = jax.nn.softmax(cat @ params["w_attn"] + params["b_attn"], axis=1)
        applied = aw @ enc
        comb = jnp.concatenate([emb, applied], axis=1) @ params["w_comb"] + params["b_comb"]
        x = jnp.maximum(comb, 0.0)
        gi = x @ params["w_ih"] + params["b_ih"]
        gh = h @ params["w_hh"] + params["b_hh"]
        r = jax.nn.sigmoid(gi[:, :H] + gh[:, :H])
        z = jax.nn.sigmoid(gi[:, H:2 * H] + gh[:, H:2 * H])
        n = jnp.tanh(gi[:, 2 * H:] + r * gh[:, 2 * H:])
        h = (1.0 - z) * n + z * h
        logps.append(jax.nn.log_softmax(h @ params["w_out"] + params["b_out"], axis=1))
        attns.append(aw)
    return jnp.stack(logps), jnp.stack(attns), h


if __name__ == "__main__":
    key = jax.random.PRNGKey(0)
    k_params, k_tok, k_hid, k_enc = jax.random.split(key, 4)

    params = init_params(k_params)
    tokens = jax.random.randint(k_tok, (BATCH, T_STEPS), 0, OUTPUT, dtype=jnp.int32)
    hidden0 = 0.1 * jax.random.normal(k_hid, (BATCH, HIDDEN), jnp.float32)
    encoder_outputs = jax.random.normal(k_enc, (MAX_LEN, HIDDEN), jnp.float32)

    logp, new_hidden, attn_w = attn_decoder_decode(params, tokens, hidden0, encoder_outputs)
    jax.block_until_ready((logp, new_hidden, attn_w))

    assert logp.shape == (T_STEPS, BATCH, OUTPUT)
    assert new_hidden.shape == (1, BATCH, HIDDEN)
    assert attn_w.shape == (T_STEPS, BATCH, MAX_LEN)

    ref_logp, ref_attn, ref_h = reference_decode(params, tokens, hidden0, encoder_outputs)
    np.testing.assert_allclose(np.asarray(logp), np.asarray(ref_logp), atol=1e-2, rtol=1e-2)
    np.testing.assert_allclose(np.asarray(attn_w), np.asarray(ref_attn), atol=1e-2, rtol=1e-2)
    np.testing.assert_allclose(np.asarray(new_hidden[0]), np.asarray(ref_h), atol=1e-2, rtol=1e-2)
    print("KERNEL_OK")
</pallas_src>

<mosaic_0001>
module attributes {stable_mosaic.version = 11 : i64} {
  func.func @attn_decoder_kernel(%arg0: i32, %arg1: memref<16x32xf32, #tpu.memory_space<vmem>>, %arg2: memref<6x16x40xf32, #tpu.memory_space<vmem>>, %arg3: memref<8x32xf32, #tpu.memory_space<vmem>>, %arg4: memref<32x104xf32, #tpu.memory_space<vmem>>, %arg5: memref<32x96xf32, #tpu.memory_space<vmem>>, %arg6: memref<1x96xf32, #tpu.memory_space<vmem>>, %arg7: memref<1x96xf32, #tpu.memory_space<vmem>>, %arg8: memref<32x16xf32, #tpu.memory_space<vmem>>, %arg9: memref<1x16xf32, #tpu.memory_space<vmem>>, %arg10: memref<6x16x16xf32, #tpu.memory_space<vmem>>, %arg11: memref<6x16x8xf32, #tpu.memory_space<vmem>>, %arg12: memref<16x32xf32, #tpu.memory_space<vmem>>) attributes {dimension_semantics = [#tpu.dimension_semantics<parallel>], iteration_bounds = array<i64: 1>, scalar_prefetch = 0 : i64, scratch_operands = 0 : i64, tpu.core_type = #tpu.core_type<tc>, window_params = [{transform_indices = @transform_0, window_bounds = array<i64: 16, 32>}, {transform_indices = @transform_1, window_bounds = array<i64: 6, 16, 40>}, {pipeline_mode = #tpu.pipeline_mode<synchronous>, transform_indices = @transform_2, window_bounds = array<i64: 8, 32>}, {pipeline_mode = #tpu.pipeline_mode<synchronous>, transform_indices = @transform_3, window_bounds = array<i64: 32, 104>}, {pipeline_mode = #tpu.pipeline_mode<synchronous>, transform_indices = @transform_4, window_bounds = array<i64: 32, 96>}, {pipeline_mode = #tpu.pipeline_mode<synchronous>, transform_indices = @transform_5, window_bounds = array<i64: 1, 96>}, {pipeline_mode = #tpu.pipeline_mode<synchronous>, transform_indices = @transform_6, window_bounds = array<i64: 1, 96>}, {pipeline_mode = #tpu.pipeline_mode<synchronous>, transform_indices = @transform_7, window_bounds = array<i64: 32, 16>}, {pipeline_mode = #tpu.pipeline_mode<synchronous>, transform_indices = @transform_8, window_bounds = array<i64: 1, 16>}, {transform_indices = @transform_9, window_bounds = array<i64: 6, 16, 16>}, {transform_indices = @transform_10, window_bounds = array<i64: 6, 16, 8>}, {transform_indices = @transform_11, window_bounds = array<i64: 16, 32>}]} {
    %c0 = arith.constant 0 : index
    %c0_0 = arith.constant 0 : index
    %0 = vector.load %arg1[%c0, %c0_0] : memref<16x32xf32, #tpu.memory_space<vmem>>, vector<16x32xf32>
    %c0_1 = arith.constant 0 : index
    %c0_2 = arith.constant 0 : index
    %1 = vector.load %arg4[%c0_1, %c0_2] : memref<32x104xf32, #tpu.memory_space<vmem>>, vector<32x104xf32>
    %c0_3 = arith.constant 0 : index
    %c0_4 = arith.constant 0 : index
    %2 = vector.load %arg3[%c0_3, %c0_4] : memref<8x32xf32, #tpu.memory_space<vmem>>, vector<8x32xf32>
    %c0_5 = arith.constant 0 : index
    %c0_6 = arith.constant 0 : index
    %3 = vector.load %arg5[%c0_5, %c0_6] : memref<32x96xf32, #tpu.memory_space<vmem>>, vector<32x96xf32>
    %c0_7 = arith.constant 0 : index
    %c0_8 = arith.constant 0 : index
    %4 = vector.load %arg6[%c0_7, %c0_8] : memref<1x96xf32, #tpu.memory_space<vmem>>, vector<1x96xf32>
    %c0_9 = arith.constant 0 : index
    %c0_10 = arith.constant 0 : index
    %5 = vector.load %arg7[%c0_9, %c0_10] : memref<1x96xf32, #tpu.memory_space<vmem>>, vector<1x96xf32>
    %c0_11 = arith.constant 0 : index
    %c0_12 = arith.constant 0 : index
    %c0_13 = arith.constant 0 : index
    %6 = vector.load %arg2[%c0_11, %c0_12, %c0_13] : memref<6x16x40xf32, #tpu.memory_space<vmem>>, vector<1x16x40xf32>
    %7 = vector.shape_cast %6 : vector<1x16x40xf32> to vector<16x40xf32>
    %cst = arith.constant dense<0.000000e+00> : vector<16x104xf32>
    %8 = tpu.matmul %0, %1, %cst {dimension_numbers = #tpu.dot_dimension_numbers<[1], [0], [0], [1], [0, 0, 1, 1], [], []>} : vector<16x32xf32>, vector<32x104xf32>, vector<16x104xf32> -> vector<16x104xf32>
    %9 = vector.extract_strided_slice %7 {offsets = [0, 0], sizes = [16, 8], strides = [1, 1]} : vector<16x40xf32> to vector<16x8xf32>
    %10 = vector.extract_strided_slice %8 {offsets = [0, 0], sizes = [16, 8], strides = [1, 1]} : vector<16x104xf32> to vector<16x8xf32>
    %11 = arith.addf %9, %10 : vector<16x8xf32>
    %cst_14 = arith.constant dense<0xFF800000> : vector<16xf32>
    %12 = vector.multi_reduction <maximumf>, %11, %cst_14 [1] : vector<16x8xf32> to vector<16xf32>
    %13 = vector.shape_cast %12 : vector<16xf32> to vector<16x1xf32>
    %14 = vector.broadcast %13 : vector<16x1xf32> to vector<16x8xf32>
    %15 = arith.subf %11, %14 : vector<16x8xf32>
    %16 = math.exp %15 : vector<16x8xf32>
    %cst_15 = arith.constant dense<0.000000e+00> : vector<16xf32>
    %17 = vector.multi_reduction <add>, %16, %cst_15 [1] : vector<16x8xf32> to vector<16xf32>
    %18 = vector.shape_cast %17 : vector<16xf32> to vector<16x1xf32>
    %19 = vector.broadcast %18 : vector<16x1xf32> to vector<16x8xf32>
    %20 = arith.divf %16, %19 : vector<16x8xf32>
    %c0_16 = arith.constant 0 : index
    %c0_17 = arith.constant 0 : index
    %c0_18 = arith.constant 0 : index
    %21 = vector.load %arg11[%c0_16, %c0_17, %c0_18] : memref<6x16x8xf32, #tpu.memory_space<vmem>>, vector<1x16x8xf32>
    %22 = vector.shape_cast %21 : vector<1x16x8xf32> to vector<16x8xf32>
    %23 = vector.shape_cast %20 : vector<16x8xf32> to vector<1x16x8xf32>
    tpu.vector_store %arg11[%c0_16, %c0_17, %c0_18], %23 {strides = array<i32>} : memref<6x16x8xf32, #tpu.memory_space<vmem>>, vector<1x16x8xf32>,
    %24 = vector.extract_strided_slice %7 {offsets = [0, 8], sizes = [16, 32], strides = [1, 1]} : vector<16x40xf32> to vector<16x32xf32>
    %cst_19 = arith.constant dense<0.000000e+00> : vector<16x32xf32>
    %25 = tpu.matmul %20, %2, %cst_19 {dimension_numbers = #tpu.dot_dimension_numbers<[1], [0], [0], [1], [0, 0, 1, 1], [], []>} : vector<16x8xf32>, vector<8x32xf32>, vector<16x32xf32> -> vector<16x32xf32>
    %26 = arith.addf %24, %25 : vector<16x32xf32>
    %cst_20 = arith.constant 0.000000e+00 : f32
    %27 = vector.broadcast %cst_20 : f32 to vector<16x32xf32>
    %28 = arith.maximumf %26, %27 : vector<16x32xf32>
    %cst_21 = arith.constant dense<0.000000e+00> : vector<16x96xf32>
    %29 = tpu.matmul %28, %3, %cst_21 {dimension_numbers = #tpu.dot_dimension_numbers<[1], [0], [0], [1], [0, 0, 1, 1], [], []>} : vector<16x32xf32>, vector<32x96xf32>, vector<16x96xf32> -> vector<16x96xf32>
    %30 = vector.broadcast %4 : vector<1x96xf32> to vector<16x96xf32>
    %31 = arith.addf %29, %30 : vector<16x96xf32>
    %32 = vector.extract_strided_slice %8 {offsets = [0, 8], sizes = [16, 96], strides = [1, 1]} : vector<16x104xf32> to vector<16x96xf32>
    %33 = vector.broadcast %5 : vector<1x96xf32> to vector<16x96xf32>
    %34 = arith.addf %32, %33 : vector<16x96xf32>
    %35 = vector.extract_strided_slice %31 {offsets = [0, 0], sizes = [16, 64], strides = [1, 1]} : vector<16x96xf32> to vector<16x64xf32>
    %36 = vector.extract_strided_slice %34 {offsets = [0, 0], sizes = [16, 64], strides = [1, 1]} : vector<16x96xf32> to vector<16x64xf32>
    %37 = arith.addf %35, %36 : vector<16x64xf32>
    %38 = arith.negf %37 : vector<16x64xf32>
    %39 = math.exp %38 : vector<16x64xf32>
    %cst_22 = arith.constant 1.000000e+00 : f32
    %40 = vector.broadcast %cst_22 : f32 to vector<16x64xf32>
    %41 = arith.addf %40, %39 : vector<16x64xf32>
    %42 = arith.divf %40, %41 : vector<16x64xf32>
    %43 = vector.extract_strided_slice %42 {offsets = [0, 0], sizes = [16, 32], strides = [1, 1]} : vector<16x64xf32> to vector<16x32xf32>
    %44 = vector.extract_strided_slice %42 {offsets = [0, 32], sizes = [16, 32], strides = [1, 1]} : vector<16x64xf32> to vector<16x32xf32>
    %45 = vector.extract_strided_slice %31 {offsets = [0, 64], sizes = [16, 32], strides = [1, 1]} : vector<16x96xf32> to vector<16x32xf32>
    %46 = vector.extract_strided_slice %34 {offsets = [0, 64], sizes = [16, 32], strides = [1, 1]} : vector<16x96xf32> to vector<16x32xf32>
    %47 = arith.mulf %43, %46 : vector<16x32xf32>
    %48 = arith.addf %45, %47 : vector<16x32xf32>
    %49 = math.tanh %48 : vector<16x32xf32>
    %cst_23 = arith.constant 1.000000e+00 : f32
    %50 = vector.broadcast %cst_23 : f32 to vector<16x32xf32>
    %51 = arith.subf %50, %44 : vector<16x32xf32>
    %52 = arith.mulf %51, %49 : vector<16x32xf32>
    %53 = arith.mulf %44, %0 : vector<16x32xf32>
    %54 = arith.addf %52, %53 : vector<16x32xf32>
    %c1 = arith.constant 1 : index
    %c0_24 = arith.constant 0 : index
    %c0_25 = arith.constant 0 : index
    %55 = vector.load %arg2[%c1, %c0_24, %c0_25] : memref<6x16x40xf32, #tpu.memory_space<vmem>>, vector<1x16x40xf32>
    %56 = vector.shape_cast %55 : vector<1x16x40xf32> to vector<16x40xf32>
    %cst_26 = arith.constant dense<0.000000e+00> : vector<16x104xf32>
    %57 = tpu.matmul %54, %1, %cst_26 {dimension_numbers = #tpu.dot_dimension_numbers<[1], [0], [0], [1], [0, 0, 1, 1], [], []>} : vector<16x32xf32>, vector<32x104xf32>, vector<16x104xf32> -> vector<16x104xf32>
    %58 = vector.extract_strided_slice %56 {offsets = [0, 0], sizes = [16, 8], strides = [1, 1]} : vector<16x40xf32> to vector<16x8xf32>
    %59 = vector.extract_strided_slice %57 {offsets = [0, 0], sizes = [16, 8], strides = [1, 1]} : vector<16x104xf32> to vector<16x8xf32>
    %60 = arith.addf %58, %59 : vector<16x8xf32>
    %cst_27 = arith.constant dense<0xFF800000> : vector<16xf32>
    %61 = vector.multi_reduction <maximumf>, %60, %cst_27 [1] : vector<16x8xf32> to vector<16xf32>
    %62 = vector.shape_cast %61 : vector<16xf32> to vector<16x1xf32>
    %63 = vector.broadcast %62 : vector<16x1xf32> to vector<16x8xf32>
    %64 = arith.subf %60, %63 : vector<16x8xf32>
    %65 = math.exp %64 : vector<16x8xf32>
    %cst_28 = arith.constant dense<0.000000e+00> : vector<16xf32>
    %66 = vector.multi_reduction <add>, %65, %cst_28 [1] : vector<16x8xf32> to vector<16xf32>
    %67 = vector.shape_cast %66 : vector<16xf32> to vector<16x1xf32>
    %68 = vector.broadcast %67 : vector<16x1xf32> to vector<16x8xf32>
    %69 = arith.divf %65, %68 : vector<16x8xf32>
    %c1_29 = arith.constant 1 : index
    %c0_30 = arith.constant 0 : index
    %c0_31 = arith.constant 0 : index
    %70 = vector.load %arg11[%c1_29, %c0_30, %c0_31] : memref<6x16x8xf32, #tpu.memory_space<vmem>>, vector<1x16x8xf32>
    %71 = vector.shape_cast %70 : vector<1x16x8xf32> to vector<16x8xf32>
    %72 = vector.shape_cast %69 : vector<16x8xf32> to vector<1x16x8xf32>
    tpu.vector_store %arg11[%c1_29, %c0_30, %c0_31], %72 {strides = array<i32>} : memref<6x16x8xf32, #tpu.memory_space<vmem>>, vector<1x16x8xf32>,
    %73 = vector.extract_strided_slice %56 {offsets = [0, 8], sizes = [16, 32], strides = [1, 1]} : vector<16x40xf32> to vector<16x32xf32>
    %cst_32 = arith.constant dense<0.000000e+00> : vector<16x32xf32>
    %74 = tpu.matmul %69, %2, %cst_32 {dimension_numbers = #tpu.dot_dimension_numbers<[1], [0], [0], [1], [0, 0, 1, 1], [], []>} : vector<16x8xf32>, vector<8x32xf32>, vector<16x32xf32> -> vector<16x32xf32>
    %75 = arith.addf %73, %74 : vector<16x32xf32>
    %cst_33 = arith.constant 0.000000e+00 : f32
    %76 = vector.broadcast %cst_33 : f32 to vector<16x32xf32>
    %77 = arith.maximumf %75, %76 : vector<16x32xf32>
    %cst_34 = arith.constant dense<0.000000e+00> : vector<16x96xf32>
    %78 = tpu.matmul %77, %3, %cst_34 {dimension_numbers = #tpu.dot_dimension_numbers<[1], [0], [0], [1], [0, 0, 1, 1], [], []>} : vector<16x32xf32>, vector<32x96xf32>, vector<16x96xf32> -> vector<16x96xf32>
    %79 = vector.broadcast %4 : vector<1x96xf32> to vector<16x96xf32>
    %80 = arith.addf %78, %79 : vector<16x96xf32>
    %81 = vector.extract_strided_slice %57 {offsets = [0, 8], sizes = [16, 96], strides = [1, 1]} : vector<16x104xf32> to vector<16x96xf32>
    %82 = vector.broadcast %5 : vector<1x96xf32> to vector<16x96xf32>
    %83 = arith.addf %81, %82 : vector<16x96xf32>
    %84 = vector.extract_strided_slice %80 {offsets = [0, 0], sizes = [16, 64], strides = [1, 1]} : vector<16x96xf32> to vector<16x64xf32>
    %85 = vector.extract_strided_slice %83 {offsets = [0, 0], sizes = [16, 64], strides = [1, 1]} : vector<16x96xf32> to vector<16x64xf32>
    %86 = arith.addf %84, %85 : vector<16x64xf32>
    %87 = arith.negf %86 : vector<16x64xf32>
    %88 = math.exp %87 : vector<16x64xf32>
    %cst_35 = arith.constant 1.000000e+00 : f32
    %89 = vector.broadcast %cst_35 : f32 to vector<16x64xf32>
    %90 = arith.addf %89, %88 : vector<16x64xf32>
    %91 = arith.divf %89, %90 : vector<16x64xf32>
    %92 = vector.extract_strided_slice %91 {offsets = [0, 0], sizes = [16, 32], strides = [1, 1]} : vector<16x64xf32> to vector<16x32xf32>
    %93 = vector.extract_strided_slice %91 {offsets = [0, 32], sizes = [16, 32], strides = [1, 1]} : vector<16x64xf32> to vector<16x32xf32>
    %94 = vector.extract_strided_slice %80 {offsets = [0, 64], sizes = [16, 32], strides = [1, 1]} : vector<16x96xf32> to vector<16x32xf32>
    %95 = vector.extract_strided_slice %83 {offsets = [0, 64], sizes = [16, 32], strides = [1, 1]} : vector<16x96xf32> to vector<16x32xf32>
    %96 = arith.mulf %92, %95 : vector<16x32xf32>
    %97 = arith.addf %94, %96 : vector<16x32xf32>
    %98 = math.tanh %97 : vector<16x32xf32>
    %cst_36 = arith.constant 1.000000e+00 : f32
    %99 = vector.broadcast %cst_36 : f32 to vector<16x32xf32>
    %100 = arith.subf %99, %93 : vector<16x32xf32>
    %101 = arith.mulf %100, %98 : vector<16x32xf32>
    %102 = arith.mulf %93, %54 : vector<16x32xf32>
    %103 = arith.addf %101, %102 : vector<16x32xf32>
    %c2 = arith.constant 2 : index
    %c0_37 = arith.constant 0 : index
    %c0_38 = arith.constant 0 : index
    %104 = vector.load %arg2[%c2, %c0_37, %c0_38] : memref<6x16x40xf32, #tpu.memory_space<vmem>>, vector<1x16x40xf32>
    %105 = vector.shape_cast %104 : vector<1x16x40xf32> to vector<16x40xf32>
    %cst_39 = arith.constant dense<0.000000e+00> : vector<16x104xf32>
    %106 = tpu.matmul %103, %1, %cst_39 {dimension_numbers = #tpu.dot_dimension_numbers<[1], [0], [0], [1], [0, 0, 1, 1], [], []>} : vector<16x32xf32>, vector<32x104xf32>, vector<16x104xf32> -> vector<16x104xf32>
    %107 = vector.extract_strided_slice %105 {offsets = [0, 0], sizes = [16, 8], strides = [1, 1]} : vector<16x40xf32> to vector<16x8xf32>
    %108 = vector.extract_strided_slice %106 {offsets = [0, 0], sizes = [16, 8], strides = [1, 1]} : vector<16x104xf32> to vector<16x8xf32>
    %109 = arith.addf %107, %108 : vector<16x8xf32>
    %cst_40 = arith.constant dense<0xFF800000> : vector<16xf32>
    %110 = vector.multi_reduction <maximumf>, %109, %cst_40 [1] : vector<16x8xf32> to vector<16xf32>
    %111 = vector.shape_cast %110 : vector<16xf32> to vector<16x1xf32>
    %112 = vector.broadcast %111 : vector<16x1xf32> to vector<16x8xf32>
    %113 = arith.subf %109, %112 : vector<16x8xf32>
    %114 = math.exp %113 : vector<16x8xf32>
    %cst_41 = arith.constant dense<0.000000e+00> : vector<16xf32>
    %115 = vector.multi_reduction <add>, %114, %cst_41 [1] : vector<16x8xf32> to vector<16xf32>
    %116 = vector.shape_cast %115 : vector<16xf32> to vector<16x1xf32>
    %117 = vector.broadcast %116 : vector<16x1xf32> to vector<16x8xf32>
    %118 = arith.divf %114, %117 : vector<16x8xf32>
    %c2_42 = arith.constant 2 : index
    %c0_43 = arith.constant 0 : index
    %c0_44 = arith.constant 0 : index
    %119 = vector.load %arg11[%c2_42, %c0_43, %c0_44] : memref<6x16x8xf32, #tpu.memory_space<vmem>>, vector<1x16x8xf32>
    %120 = vector.shape_cast %119 : vector<1x16x8xf32> to vector<16x8xf32>
    %121 = vector.shape_cast %118 : vector<16x8xf32> to vector<1x16x8xf32>
    tpu.vector_store %arg11[%c2_42, %c0_43, %c0_44], %121 {strides = array<i32>} : memref<6x16x8xf32, #tpu.memory_space<vmem>>, vector<1x16x8xf32>,
    %122 = vector.extract_strided_slice %105 {offsets = [0, 8], sizes = [16, 32], strides = [1, 1]} : vector<16x40xf32> to vector<16x32xf32>
    %cst_45 = arith.constant dense<0.000000e+00> : vector<16x32xf32>
    %123 = tpu.matmul %118, %2, %cst_45 {dimension_numbers = #tpu.dot_dimension_numbers<[1], [0], [0], [1], [0, 0, 1, 1], [], []>} : vector<16x8xf32>, vector<8x32xf32>, vector<16x32xf32> -> vector<16x32xf32>
    %124 = arith.addf %122, %123 : vector<16x32xf32>
    %cst_46 = arith.constant 0.000000e+00 : f32
    %125 = vector.broadcast %cst_46 : f32 to vector<16x32xf32>
    %126 = arith.maximumf %124, %125 : vector<16x32xf32>
    %cst_47 = arith.constant dense<0.000000e+00> : vector<16x96xf32>
    %127 = tpu.matmul %126, %3, %cst_47 {dimension_numbers = #tpu.dot_dimension_numbers<[1], [0], [0], [1], [0, 0, 1, 1], [], []>} : vector<16x32xf32>, vector<32x96xf32>, vector<16x96xf32> -> vector<16x96xf32>
    %128 = vector.broadcast %4 : vector<1x96xf32> to vector<16x96xf32>
    %129 = arith.addf %127, %128 : vector<16x96xf32>
    %130 = vector.extract_strided_slice %106 {offsets = [0, 8], sizes = [16, 96], strides = [1, 1]} : vector<16x104xf32> to vector<16x96xf32>
    %131 = vector.broadcast %5 : vector<1x96xf32> to vector<16x96xf32>
    %132 = arith.addf %130, %131 : vector<16x96xf32>
    %133 = vector.extract_strided_slice %129 {offsets = [0, 0], sizes = [16, 64], strides = [1, 1]} : vector<16x96xf32> to vector<16x64xf32>
    %134 = vector.extract_strided_slice %132 {offsets = [0, 0], sizes = [16, 64], strides = [1, 1]} : vector<16x96xf32> to vector<16x64xf32>
    %135 = arith.addf %133, %134 : vector<16x64xf32>
    %136 = arith.negf %135 : vector<16x64xf32>
    %137 = math.exp %136 : vector<16x64xf32>
    %cst_48 = arith.constant 1.000000e+00 : f32
    %138 = vector.broadcast %cst_48 : f32 to vector<16x64xf32>
    %139 = arith.addf %138, %137 : vector<16x64xf32>
    %140 = arith.divf %138, %139 : vector<16x64xf32>
    %141 = vector.extract_strided_slice %140 {offsets = [0, 0], sizes = [16, 32], strides = [1, 1]} : vector<16x64xf32> to vector<16x32xf32>
    %142 = vector.extract_strided_slice %140 {offsets = [0, 32], sizes = [16, 32], strides = [1, 1]} : vector<16x64xf32> to vector<16x32xf32>
    %143 = vector.extract_strided_slice %129 {offsets = [0, 64], sizes = [16, 32], strides = [1, 1]} : vector<16x96xf32> to vector<16x32xf32>
    %144 = vector.extract_strided_slice %132 {offsets = [0, 64], sizes = [16, 32], strides = [1, 1]} : vector<16x96xf32> to vector<16x32xf32>
    %145 = arith.mulf %141, %144 : vector<16x32xf32>
    %146 = arith.addf %143, %145 : vector<16x32xf32>
    %147 = math.tanh %146 : vector<16x32xf32>
    %cst_49 = arith.constant 1.000000e+00 : f32
    %148 = vector.broadcast %cst_49 : f32 to vector<16x32xf32>
    %149 = arith.subf %148, %142 : vector<16x32xf32>
    %150 = arith.mulf %149, %147 : vector<16x32xf32>
    %151 = arith.mulf %142, %103 : vector<16x32xf32>
    %152 = arith.addf %150, %151 : vector<16x32xf32>
    %c3 = arith.constant 3 : index
    %c0_50 = arith.constant 0 : index
    %c0_51 = arith.constant 0 : index
    %153 = vector.load %arg2[%c3, %c0_50, %c0_51] : memref<6x16x40xf32, #tpu.memory_space<vmem>>, vector<1x16x40xf32>
    %154 = vector.shape_cast %153 : vector<1x16x40xf32> to vector<16x40xf32>
    %cst_52 = arith.constant dense<0.000000e+00> : vector<16x104xf32>
    %155 = tpu.matmul %152, %1, %cst_52 {dimension_numbers = #tpu.dot_dimension_numbers<[1], [0], [0], [1], [0, 0, 1, 1], [], []>} : vector<16x32xf32>, vector<32x104xf32>, vector<16x104xf32> -> vector<16x104xf32>
    %156 = vector.extract_strided_slice %154 {offsets = [0, 0], sizes = [16, 8], strides = [1, 1]} : vector<16x40xf32> to vector<16x8xf32>
    %157 = vector.extract_strided_slice %155 {offsets = [0, 0], sizes = [16, 8], strides = [1, 1]} : vector<16x104xf32> to vector<16x8xf32>
    %158 = arith.addf %156, %157 : vector<16x8xf32>
    %cst_53 = arith.constant dense<0xFF800000> : vector<16xf32>
    %159 = vector.multi_reduction <maximumf>, %158, %cst_53 [1] : vector<16x8xf32> to vector<16xf32>
    %160 = vector.shape_cast %159 : vector<16xf32> to vector<16x1xf32>
    %161 = vector.broadcast %160 : vector<16x1xf32> to vector<16x8xf32>
    %162 = arith.subf %158, %161 : vector<16x8xf32>
    %163 = math.exp %162 : vector<16x8xf32>
    %cst_54 = arith.constant dense<0.000000e+00> : vector<16xf32>
    %164 = vector.multi_reduction <add>, %163, %cst_54 [1] : vector<16x8xf32> to vector<16xf32>
    %165 = vector.shape_cast %164 : vector<16xf32> to vector<16x1xf32>
    %166 = vector.broadcast %165 : vector<16x1xf32> to vector<16x8xf32>
    %167 = arith.divf %163, %166 : vector<16x8xf32>
    %c3_55 = arith.constant 3 : index
    %c0_56 = arith.constant 0 : index
    %c0_57 = arith.constant 0 : index
    %168 = vector.load %arg11[%c3_55, %c0_56, %c0_57] : memref<6x16x8xf32, #tpu.memory_space<vmem>>, vector<1x16x8xf32>
    %169 = vector.shape_cast %168 : vector<1x16x8xf32> to vector<16x8xf32>
    %170 = vector.shape_cast %167 : vector<16x8xf32> to vector<1x16x8xf32>
    tpu.vector_store %arg11[%c3_55, %c0_56, %c0_57], %170 {strides = array<i32>} : memref<6x16x8xf32, #tpu.memory_space<vmem>>, vector<1x16x8xf32>,
    %171 = vector.extract_strided_slice %154 {offsets = [0, 8], sizes = [16, 32], strides = [1, 1]} : vector<16x40xf32> to vector<16x32xf32>
    %cst_58 = arith.constant dense<0.000000e+00> : vector<16x32xf32>
    %172 = tpu.matmul %167, %2, %cst_58 {dimension_numbers = #tpu.dot_dimension_numbers<[1], [0], [0], [1], [0, 0, 1, 1], [], []>} : vector<16x8xf32>, vector<8x32xf32>, vector<16x32xf32> -> vector<16x32xf32>
    %173 = arith.addf %171, %172 : vector<16x32xf32>
    %cst_59 = arith.constant 0.000000e+00 : f32
    %174 = vector.broadcast %cst_59 : f32 to vector<16x32xf32>
    %175 = arith.maximumf %173, %174 : vector<16x32xf32>
    %cst_60 = arith.constant dense<0.000000e+00> : vector<16x96xf32>
    %176 = tpu.matmul %175, %3, %cst_60 {dimension_numbers = #tpu.dot_dimension_numbers<[1], [0], [0], [1], [0, 0, 1, 1], [], []>} : vector<16x32xf32>, vector<32x96xf32>, vector<16x96xf32> -> vector<16x96xf32>
    %177 = vector.broadcast %4 : vector<1x96xf32> to vector<16x96xf32>
    %178 = arith.addf %176, %177 : vector<16x96xf32>
    %179 = vector.extract_strided_slice %155 {offsets = [0, 8], sizes = [16, 96], strides = [1, 1]} : vector<16x104xf32> to vector<16x96xf32>
    %180 = vector.broadcast %5 : vector<1x96xf32> to vector<16x96xf32>
    %181 = arith.addf %179, %180 : vector<16x96xf32>
    %182 = vector.extract_strided_slice %178 {offsets = [0, 0], sizes = [16, 64], strides = [1, 1]} : vector<16x96xf32> to vector<16x64xf32>
    %183 = vector.extract_strided_slice %181 {offsets = [0, 0], sizes = [16, 64], strides = [1, 1]} : vector<16x96xf32> to vector<16x64xf32>
    %184 = arith.addf %182, %183 : vector<16x64xf32>
    %185 = arith.negf %184 : vector<16x64xf32>
    %186 = math.exp %185 : vector<16x64xf32>
    %cst_61 = arith.constant 1.000000e+00 : f32
    %187 = vector.broadcast %cst_61 : f32 to vector<16x64xf32>
    %188 = arith.addf %187, %186 : vector<16x64xf32>
    %189 = arith.divf %187, %188 : vector<16x64xf32>
    %190 = vector.extract_strided_slice %189 {offsets = [0, 0], sizes = [16, 32], strides = [1, 1]} : vector<16x64xf32> to vector<16x32xf32>
    %191 = vector.extract_strided_slice %189 {offsets = [0, 32], sizes = [16, 32], strides = [1, 1]} : vector<16x64xf32> to vector<16x32xf32>
    %192 = vector.extract_strided_slice %178 {offsets = [0, 64], sizes = [16, 32], strides = [1, 1]} : vector<16x96xf32> to vector<16x32xf32>
    %193 = vector.extract_strided_slice %181 {offsets = [0, 64], sizes = [16, 32], strides = [1, 1]} : vector<16x96xf32> to vector<16x32xf32>
    %194 = arith.mulf %190, %193 : vector<16x32xf32>
    %195 = arith.addf %192, %194 : vector<16x32xf32>
    %196 = math.tanh %195 : vector<16x32xf32>
    %cst_62 = arith.constant 1.000000e+00 : f32
    %197 = vector.broadcast %cst_62 : f32 to vector<16x32xf32>
    %198 = arith.subf %197, %191 : vector<16x32xf32>
    %199 = arith.mulf %198, %196 : vector<16x32xf32>
    %200 = arith.mulf %191, %152 : vector<16x32xf32>
    %201 = arith.addf %199, %200 : vector<16x32xf32>
    %c4 = arith.constant 4 : index
    %c0_63 = arith.constant 0 : index
    %c0_64 = arith.constant 0 : index
    %202 = vector.load %arg2[%c4, %c0_63, %c0_64] : memref<6x16x40xf32, #tpu.memory_space<vmem>>, vector<1x16x40xf32>
    %203 = vector.shape_cast %202 : vector<1x16x40xf32> to vector<16x40xf32>
    %cst_65 = arith.constant dense<0.000000e+00> : vector<16x104xf32>
    %204 = tpu.matmul %201, %1, %cst_65 {dimension_numbers = #tpu.dot_dimension_numbers<[1], [0], [0], [1], [0, 0, 1, 1], [], []>} : vector<16x32xf32>, vector<32x104xf32>, vector<16x104xf32> -> vector<16x104xf32>
    %205 = vector.extract_strided_slice %203 {offsets = [0, 0], sizes = [16, 8], strides = [1, 1]} : vector<16x40xf32> to vector<16x8xf32>
    %206 = vector.extract_strided_slice %204 {offsets = [0, 0], sizes = [16, 8], strides = [1, 1]} : vector<16x104xf32> to vector<16x8xf32>
    %207 = arith.addf %205, %206 : vector<16x8xf32>
    %cst_66 = arith.constant dense<0xFF800000> : vector<16xf32>
    %208 = vector.multi_reduction <maximumf>, %207, %cst_66 [1] : vector<16x8xf32> to vector<16xf32>
    %209 = vector.shape_cast %208 : vector<16xf32> to vector<16x1xf32>
    %210 = vector.broadcast %209 : vector<16x1xf32> to vector<16x8xf32>
    %211 = arith.subf %207, %210 : vector<16x8xf32>
    %212 = math.exp %211 : vector<16x8xf32>
    %cst_67 = arith.constant dense<0.000000e+00> : vector<16xf32>
    %213 = vector.multi_reduction <add>, %212, %cst_67 [1] : vector<16x8xf32> to vector<16xf32>
    %214 = vector.shape_cast %213 : vector<16xf32> to vector<16x1xf32>
    %215 = vector.broadcast %214 : vector<16x1xf32> to vector<16x8xf32>
    %216 = arith.divf %212, %215 : vector<16x8xf32>
    %c4_68 = arith.constant 4 : index
    %c0_69 = arith.constant 0 : index
    %c0_70 = arith.constant 0 : index
    %217 = vector.load %arg11[%c4_68, %c0_69, %c0_70] : memref<6x16x8xf32, #tpu.memory_space<vmem>>, vector<1x16x8xf32>
    %218 = vector.shape_cast %217 : vector<1x16x8xf32> to vector<16x8xf32>
    %219 = vector.shape_cast %216 : vector<16x8xf32> to vector<1x16x8xf32>
    tpu.vector_store %arg11[%c4_68, %c0_69, %c0_70], %219 {strides = array<i32>} : memref<6x16x8xf32, #tpu.memory_space<vmem>>, vector<1x16x8xf32>,
    %220 = vector.extract_strided_slice %203 {offsets = [0, 8], sizes = [16, 32], strides = [1, 1]} : vector<16x40xf32> to vector<16x32xf32>
    %cst_71 = arith.constant dense<0.000000e+00> : vector<16x32xf32>
    %221 = tpu.matmul %216, %2, %cst_71 {dimension_numbers = #tpu.dot_dimension_numbers<[1], [0], [0], [1], [0, 0, 1, 1], [], []>} : vector<16x8xf32>, vector<8x32xf32>, vector<16x32xf32> -> vector<16x32xf32>
    %222 = arith.addf %220, %221 : vector<16x32xf32>
    %cst_72 = arith.constant 0.000000e+00 : f32
    %223 = vector.broadcast %cst_72 : f32 to vector<16x32xf32>
    %224 = arith.maximumf %222, %223 : vector<16x32xf32>
    %cst_73 = arith.constant dense<0.000000e+00> : vector<16x96xf32>
    %225 = tpu.matmul %224, %3, %cst_73 {dimension_numbers = #tpu.dot_dimension_numbers<[1], [0], [0], [1], [0, 0, 1, 1], [], []>} : vector<16x32xf32>, vector<32x96xf32>, vector<16x96xf32> -> vector<16x96xf32>
    %226 = vector.broadcast %4 : vector<1x96xf32> to vector<16x96xf32>
    %227 = arith.addf %225, %226 : vector<16x96xf32>
    %228 = vector.extract_strided_slice %204 {offsets = [0, 8], sizes = [16, 96], strides = [1, 1]} : vector<16x104xf32> to vector<16x96xf32>
    %229 = vector.broadcast %5 : vector<1x96xf32> to vector<16x96xf32>
    %230 = arith.addf %228, %229 : vector<16x96xf32>
    %231 = vector.extract_strided_slice %227 {offsets = [0, 0], sizes = [16, 64], strides = [1, 1]} : vector<16x96xf32> to vector<16x64xf32>
    %232 = vector.extract_strided_slice %230 {offsets = [0, 0], sizes = [16, 64], strides = [1, 1]} : vector<16x96xf32> to vector<16x64xf32>
    %233 = arith.addf %231, %232 : vector<16x64xf32>
    %234 = arith.negf %233 : vector<16x64xf32>
    %235 = math.exp %234 : vector<16x64xf32>
    %cst_74 = arith.constant 1.000000e+00 : f32
    %236 = vector.broadcast %cst_74 : f32 to vector<16x64xf32>
    %237 = arith.addf %236, %235 : vector<16x64xf32>
    %238 = arith.divf %236, %237 : vector<16x64xf32>
    %239 = vector.extract_strided_slice %238 {offsets = [0, 0], sizes = [16, 32], strides = [1, 1]} : vector<16x64xf32> to vector<16x32xf32>
    %240 = vector.extract_strided_slice %238 {offsets = [0, 32], sizes = [16, 32], strides = [1, 1]} : vector<16x64xf32> to vector<16x32xf32>
    %241 = vector.extract_strided_slice %227 {offsets = [0, 64], sizes = [16, 32], strides = [1, 1]} : vector<16x96xf32> to vector<16x32xf32>
    %242 = vector.extract_strided_slice %230 {offsets = [0, 64], sizes = [16, 32], strides = [1, 1]} : vector<16x96xf32> to vector<16x32xf32>
    %243 = arith.mulf %239, %242 : vector<16x32xf32>
    %244 = arith.addf %241, %243 : vector<16x32xf32>
    %245 = math.tanh %244 : vector<16x32xf32>
    %cst_75 = arith.constant 1.000000e+00 : f32
    %246 = vector.broadcast %cst_75 : f32 to vector<16x32xf32>
    %247 = arith.subf %246, %240 : vector<16x32xf32>
    %248 = arith.mulf %247, %245 : vector<16x32xf32>
    %249 = arith.mulf %240, %201 : vector<16x32xf32>
    %250 = arith.addf %248, %249 : vector<16x32xf32>
    %c5 = arith.constant 5 : index
    %c0_76 = arith.constant 0 : index
    %c0_77 = arith.constant 0 : index
    %251 = vector.load %arg2[%c5, %c0_76, %c0_77] : memref<6x16x40xf32, #tpu.memory_space<vmem>>, vector<1x16x40xf32>
    %252 = vector.shape_cast %251 : vector<1x16x40xf32> to vector<16x40xf32>
    %cst_78 = arith.constant dense<0.000000e+00> : vector<16x104xf32>
    %253 = tpu.matmul %250, %1, %cst_78 {dimension_numbers = #tpu.dot_dimension_numbers<[1], [0], [0], [1], [0, 0, 1, 1], [], []>} : vector<16x32xf32>, vector<32x104xf32>, vector<16x104xf32> -> vector<16x104xf32>
    %254 = vector.extract_strided_slice %252 {offsets = [0, 0], sizes = [16, 8], strides = [1, 1]} : vector<16x40xf32> to vector<16x8xf32>
    %255 = vector.extract_strided_slice %253 {offsets = [0, 0], sizes = [16, 8], strides = [1, 1]} : vector<16x104xf32> to vector<16x8xf32>
    %256 = arith.addf %254, %255 : vector<16x8xf32>
    %cst_79 = arith.constant dense<0xFF800000> : vector<16xf32>
    %257 = vector.multi_reduction <maximumf>, %256, %cst_79 [1] : vector<16x8xf32> to vector<16xf32>
    %258 = vector.shape_cast %257 : vector<16xf32> to vector<16x1xf32>
    %259 = vector.broadcast %258 : vector<16x1xf32> to vector<16x8xf32>
    %260 = arith.subf %256, %259 : vector<16x8xf32>
    %261 = math.exp %260 : vector<16x8xf32>
    %cst_80 = arith.constant dense<0.000000e+00> : vector<16xf32>
    %262 = vector.multi_reduction <add>, %261, %cst_80 [1] : vector<16x8xf32> to vector<16xf32>
    %263 = vector.shape_cast %262 : vector<16xf32> to vector<16x1xf32>
    %264 = vector.broadcast %263 : vector<16x1xf32> to vector<16x8xf32>
    %265 = arith.divf %261, %264 : vector<16x8xf32>
    %c5_81 = arith.constant 5 : index
    %c0_82 = arith.constant 0 : index
    %c0_83 = arith.constant 0 : index
    %266 = vector.load %arg11[%c5_81, %c0_82, %c0_83] : memref<6x16x8xf32, #tpu.memory_space<vmem>>, vector<1x16x8xf32>
    %267 = vector.shape_cast %266 : vector<1x16x8xf32> to vector<16x8xf32>
    %268 = vector.shape_cast %265 : vector<16x8xf32> to vector<1x16x8xf32>
    tpu.vector_store %arg11[%c5_81, %c0_82, %c0_83], %268 {strides = array<i32>} : memref<6x16x8xf32, #tpu.memory_space<vmem>>, vector<1x16x8xf32>,
    %269 = vector.extract_strided_slice %252 {offsets = [0, 8], sizes = [16, 32], strides = [1, 1]} : vector<16x40xf32> to vector<16x32xf32>
    %cst_84 = arith.constant dense<0.000000e+00> : vector<16x32xf32>
    %270 = tpu.matmul %265, %2, %cst_84 {dimension_numbers = #tpu.dot_dimension_numbers<[1], [0], [0], [1], [0, 0, 1, 1], [], []>} : vector<16x8xf32>, vector<8x32xf32>, vector<16x32xf32> -> vector<16x32xf32>
    %271 = arith.addf %269, %270 : vector<16x32xf32>
    %cst_85 = arith.constant 0.000000e+00 : f32
    %272 = vector.broadcast %cst_85 : f32 to vector<16x32xf32>
    %273 = arith.maximumf %271, %272 : vector<16x32xf32>
    %cst_86 = arith.constant dense<0.000000e+00> : vector<16x96xf32>
    %274 = tpu.matmul %273, %3, %cst_86 {dimension_numbers = #tpu.dot_dimension_numbers<[1], [0], [0], [1], [0, 0, 1, 1], [], []>} : vector<16x32xf32>, vector<32x96xf32>, vector<16x96xf32> -> vector<16x96xf32>
    %275 = vector.broadcast %4 : vector<1x96xf32> to vector<16x96xf32>
    %276 = arith.addf %274, %275 : vector<16x96xf32>
    %277 = vector.extract_strided_slice %253 {offsets = [0, 8], sizes = [16, 96], strides = [1, 1]} : vector<16x104xf32> to vector<16x96xf32>
    %278 = vector.broadcast %5 : vector<1x96xf32> to vector<16x96xf32>
    %279 = arith.addf %277, %278 : vector<16x96xf32>
    %280 = vector.extract_strided_slice %276 {offsets = [0, 0], sizes = [16, 64], strides = [1, 1]} : vector<16x96xf32> to vector<16x64xf32>
    %281 = vector.extract_strided_slice %279 {offsets = [0, 0], sizes = [16, 64], strides = [1, 1]} : vector<16x96xf32> to vector<16x64xf32>
    %282 = arith.addf %280, %281 : vector<16x64xf32>
    %283 = arith.negf %282 : vector<16x64xf32>
    %284 = math.exp %283 : vector<16x64xf32>
    %cst_87 = arith.constant 1.000000e+00 : f32
    %285 = vector.broadcast %cst_87 : f32 to vector<16x64xf32>
    %286 = arith.addf %285, %284 : vector<16x64xf32>
    %287 = arith.divf %285, %286 : vector<16x64xf32>
    %288 = vector.extract_strided_slice %287 {offsets = [0, 0], sizes = [16, 32], strides = [1, 1]} : vector<16x64xf32> to vector<16x32xf32>
    %289 = vector.extract_strided_slice %287 {offsets = [0, 32], sizes = [16, 32], strides = [1, 1]} : vector<16x64xf32> to vector<16x32xf32>
    %290 = vector.extract_strided_slice %276 {offsets = [0, 64], sizes = [16, 32], strides = [1, 1]} : vector<16x96xf32> to vector<16x32xf32>
    %291 = vector.extract_strided_slice %279 {offsets = [0, 64], sizes = [16, 32], strides = [1, 1]} : vector<16x96xf32> to vector<16x32xf32>
    %292 = arith.mulf %288, %291 : vector<16x32xf32>
    %293 = arith.addf %290, %292 : vector<16x32xf32>
    %294 = math.tanh %293 : vector<16x32xf32>
    %cst_88 = arith.constant 1.000000e+00 : f32
    %295 = vector.broadcast %cst_88 : f32 to vector<16x32xf32>
    %296 = arith.subf %295, %289 : vector<16x32xf32>
    %297 = arith.mulf %296, %294 : vector<16x32xf32>
    %298 = arith.mulf %289, %250 : vector<16x32xf32>
    %299 = arith.addf %297, %298 : vector<16x32xf32>
    %c0_89 = arith.constant 0 : index
    %c0_90 = arith.constant 0 : index
    %300 = vector.load %arg12[%c0_89, %c0_90] : memref<16x32xf32, #tpu.memory_space<vmem>>, vector<16x32xf32>
    tpu.vector_store %arg12[%c0_89, %c0_90], %299 {strides = array<i32>} : memref<16x32xf32, #tpu.memory_space<vmem>>, vector<16x32xf32>,
    %301 = tpu.concatenate %54, %103, %152, %201, %250, %299 in 0 : vector<16x32xf32>, vector<16x32xf32>, vector<16x32xf32>, vector<16x32xf32>, vector<16x32xf32>, vector<16x32xf32> -> vector<96x32xf32>
    %c0_91 = arith.constant 0 : index
    %c0_92 = arith.constant 0 : index
    %302 = vector.load %arg8[%c0_91, %c0_92] : memref<32x16xf32, #tpu.memory_space<vmem>>, vector<32x16xf32>
    %cst_93 = arith.constant dense<0.000000e+00> : vector<96x16xf32>
    %303 = tpu.matmul %301, %302, %cst_93 {dimension_numbers = #tpu.dot_dimension_numbers<[1], [0], [0], [1], [0, 0, 1, 1], [], []>} : vector<96x32xf32>, vector<32x16xf32>, vector<96x16xf32> -> vector<96x16xf32>
    %c0_94 = arith.constant 0 : index
    %c0_95 = arith.constant 0 : index
    %304 = vector.load %arg9[%c0_94, %c0_95] : memref<1x16xf32, #tpu.memory_space<vmem>>, vector<1x16xf32>
    %305 = vector.broadcast %304 : vector<1x16xf32> to vector<96x16xf32>
    %306 = arith.addf %303, %305 : vector<96x16xf32>
    %cst_96 = arith.constant dense<0xFF800000> : vector<96xf32>
    %307 = vector.multi_reduction <maximumf>, %306, %cst_96 [1] : vector<96x16xf32> to vector<96xf32>
    %308 = vector.shape_cast %307 : vector<96xf32> to vector<96x1xf32>
    %309 = vector.broadcast %308 : vector<96x1xf32> to vector<96x16xf32>
    %310 = arith.subf %306, %309 : vector<96x16xf32>
    %311 = math.exp %310 : vector<96x16xf32>
    %cst_97 = arith.constant dense<0.000000e+00> : vector<96xf32>
    %312 = vector.multi_reduction <add>, %311, %cst_97 [1] : vector<96x16xf32> to vector<96xf32>
    %313 = vector.shape_cast %312 : vector<96xf32> to vector<96x1xf32>
    %314 = math.log %313 : vector<96x1xf32>
    %315 = vector.broadcast %314 : vector<96x1xf32> to vector<96x16xf32>
    %316 = arith.subf %310, %315 : vector<96x16xf32>
    %317 = vector.extract_strided_slice %316 {offsets = [0, 0], sizes = [16, 16], strides = [1, 1]} : vector<96x16xf32> to vector<16x16xf32>
    %c0_98 = arith.constant 0 : index
    %c0_99 = arith.constant 0 : index
    %c0_100 = arith.constant 0 : index
    %318 = vector.load %arg10[%c0_98, %c0_99, %c0_100] : memref<6x16x16xf32, #tpu.memory_space<vmem>>, vector<1x16x16xf32>
    %319 = vector.shape_cast %318 : vector<1x16x16xf32> to vector<16x16xf32>
    %320 = vector.shape_cast %317 : vector<16x16xf32> to vector<1x16x16xf32>
    tpu.vector_store %arg10[%c0_98, %c0_99, %c0_100], %320 {strides = array<i32>} : memref<6x16x16xf32, #tpu.memory_space<vmem>>, vector<1x16x16xf32>,
    %321 = vector.extract_strided_slice %316 {offsets = [16, 0], sizes = [16, 16], strides = [1, 1]} : vector<96x16xf32> to vector<16x16xf32>
    %c1_101 = arith.constant 1 : index
    %c0_102 = arith.constant 0 : index
    %c0_103 = arith.constant 0 : index
    %322 = vector.load %arg10[%c1_101, %c0_102, %c0_103] : memref<6x16x16xf32, #tpu.memory_space<vmem>>, vector<1x16x16xf32>
    %323 = vector.shape_cast %322 : vector<1x16x16xf32> to vector<16x16xf32>
    %324 = vector.shape_cast %321 : vector<16x16xf32> to vector<1x16x16xf32>
    tpu.vector_store %arg10[%c1_101, %c0_102, %c0_103], %324 {strides = array<i32>} : memref<6x16x16xf32, #tpu.memory_space<vmem>>, vector<1x16x16xf32>,
    %325 = vector.extract_strided_slice %316 {offsets = [32, 0], sizes = [16, 16], strides = [1, 1]} : vector<96x16xf32> to vector<16x16xf32>
    %c2_104 = arith.constant 2 : index
    %c0_105 = arith.constant 0 : index
    %c0_106 = arith.constant 0 : index
    %326 = vector.load %arg10[%c2_104, %c0_105, %c0_106] : memref<6x16x16xf32, #tpu.memory_space<vmem>>, vector<1x16x16xf32>
    %327 = vector.shape_cast %326 : vector<1x16x16xf32> to vector<16x16xf32>
    %328 = vector.shape_cast %325 : vector<16x16xf32> to vector<1x16x16xf32>
    tpu.vector_store %arg10[%c2_104, %c0_105, %c0_106], %328 {strides = array<i32>} : memref<6x16x16xf32, #tpu.memory_space<vmem>>, vector<1x16x16xf32>,
    %329 = vector.extract_strided_slice %316 {offsets = [48, 0], sizes = [16, 16], strides = [1, 1]} : vector<96x16xf32> to vector<16x16xf32>
    %c3_107 = arith.constant 3 : index
    %c0_108 = arith.constant 0 : index
    %c0_109 = arith.constant 0 : index
    %330 = vector.load %arg10[%c3_107, %c0_108, %c0_109] : memref<6x16x16xf32, #tpu.memory_space<vmem>>, vector<1x16x16xf32>
    %331 = vector.shape_cast %330 : vector<1x16x16xf32> to vector<16x16xf32>
    %332 = vector.shape_cast %329 : vector<16x16xf32> to vector<1x16x16xf32>
    tpu.vector_store %arg10[%c3_107, %c0_108, %c0_109], %332 {strides = array<i32>} : memref<6x16x16xf32, #tpu.memory_space<vmem>>, vector<1x16x16xf32>,
    %333 = vector.extract_strided_slice %316 {offsets = [64, 0], sizes = [16, 16], strides = [1, 1]} : vector<96x16xf32> to vector<16x16xf32>
    %c4_110 = arith.constant 4 : index
    %c0_111 = arith.constant 0 : index
    %c0_112 = arith.constant 0 : index
    %334 = vector.load %arg10[%c4_110, %c0_111, %c0_112] : memref<6x16x16xf32, #tpu.memory_space<vmem>>, vector<1x16x16xf32>
    %335 = vector.shape_cast %334 : vector<1x16x16xf32> to vector<16x16xf32>
    %336 = vector.shape_cast %333 : vector<16x16xf32> to vector<1x16x16xf32>
    tpu.vector_store %arg10[%c4_110, %c0_111, %c0_112], %336 {strides = array<i32>} : memref<6x16x16xf32, #tpu.memory_space<vmem>>, vector<1x16x16xf32>,
    %337 = vector.extract_strided_slice %316 {offsets = [80, 0], sizes = [16, 16], strides = [1, 1]} : vector<96x16xf32> to vector<16x16xf32>
    %c5_113 = arith.constant 5 : index
    %c0_114 = arith.constant 0 : index
    %c0_115 = arith.constant 0 : index
    %338 = vector.load %arg10[%c5_113, %c0_114, %c0_115] : memref<6x16x16xf32, #tpu.memory_space<vmem>>, vector<1x16x16xf32>
    %339 = vector.shape_cast %338 : vector<1x16x16xf32> to vector<16x16xf32>
    %340 = vector.shape_cast %337 : vector<16x16xf32> to vector<1x16x16xf32>
    tpu.vector_store %arg10[%c5_113, %c0_114, %c0_115], %340 {strides = array<i32>} : memref<6x16x16xf32, #tpu.memory_space<vmem>>, vector<1x16x16xf32>,
    return
  }
  func.func @transform_0(%arg0: i32) -> (i32, i32) {
    %c0_i32 = arith.constant 0 : i32
    %c0_i32_0 = arith.constant 0 : i32
    return %arg0, %c0_i32 : i32, i32
  }
  func.func @transform_1(%arg0: i32) -> (i32, i32, i32) {
    %c0_i32 = arith.constant 0 : i32
    %c0_i32_0 = arith.constant 0 : i32
    %c0_i32_1 = arith.constant 0 : i32
    return %c0_i32, %arg0, %c0_i32_0 : i32, i32, i32
  }
  func.func @transform_2(%arg0: i32) -> (i32, i32) {
    %c0_i32 = arith.constant 0 : i32
    %c0_i32_0 = arith.constant 0 : i32
    %c0_i32_1 = arith.constant 0 : i32
    return %c0_i32, %c0_i32_0 : i32, i32
  }
  func.func @transform_3(%arg0: i32) -> (i32, i32) {
    %c0_i32 = arith.constant 0 : i32
    %c0_i32_0 = arith.constant 0 : i32
    %c0_i32_1 = arith.constant 0 : i32
    return %c0_i32, %c0_i32_0 : i32, i32
  }
  func.func @transform_4(%arg0: i32) -> (i32, i32) {
    %c0_i32 = arith.constant 0 : i32
    %c0_i32_0 = arith.constant 0 : i32
    %c0_i32_1 = arith.constant 0 : i32
    return %c0_i32, %c0_i32_0 : i32, i32
  }
  func.func @transform_5(%arg0: i32) -> (i32, i32) {
    %c0_i32 = arith.constant 0 : i32
    %c0_i32_0 = arith.constant 0 : i32
    %c0_i32_1 = arith.constant 0 : i32
    return %c0_i32, %c0_i32_0 : i32, i32
  }
  func.func @transform_6(%arg0: i32) -> (i32, i32) {
    %c0_i32 = arith.constant 0 : i32
    %c0_i32_0 = arith.constant 0 : i32
    %c0_i32_1 = arith.constant 0 : i32
    return %c0_i32, %c0_i32_0 : i32, i32
  }
  func.func @transform_7(%arg0: i32) -> (i32, i32) {
    %c0_i32 = arith.constant 0 : i32
    %c0_i32_0 = arith.constant 0 : i32
    %c0_i32_1 = arith.constant 0 : i32
    return %c0_i32, %c0_i32_0 : i32, i32
  }
  func.func @transform_8(%arg0: i32) -> (i32, i32) {
    %c0_i32 = arith.constant 0 : i32
    %c0_i32_0 = arith.constant 0 : i32
    %c0_i32_1 = arith.constant 0 : i32
    return %c0_i32, %c0_i32_0 : i32, i32
  }
  func.func @transform_9(%arg0: i32) -> (i32, i32, i32) {
    %c0_i32 = arith.constant 0 : i32
    %c0_i32_0 = arith.constant 0 : i32
    %c0_i32_1 = arith.constant 0 : i32
    return %c0_i32, %arg0, %c0_i32_0 : i32, i32, i32
  }
  func.func @transform_10(%arg0: i32) -> (i32, i32, i32) {
    %c0_i32 = arith.constant 0 : i32
    %c0_i32_0 = arith.constant 0 : i32
    %c0_i32_1 = arith.constant 0 : i32
    return %c0_i32, %arg0, %c0_i32_0 : i32, i32, i32
  }
  func.func @transform_11(%arg0: i32) -> (i32, i32) {
    %c0_i32 = arith.constant 0 : i32
    %c0_i32_0 = arith.constant 0 : i32
    return %arg0, %c0_i32 : i32, i32
  }
}

</mosaic_0001>

<llo_original>
// kernel: attn_decoder_decode.1
$region0: #{attn_decoder_decode.1}
  #allocation0 [shape = 'u32[]', space=smem, size = 0x4, offset = 0x4, fixed_abs, tag = 'smem constant byte address 0x4 - core index']
  #allocation1 [shape = 'u32[144,128]{1,0:T(1,128)}', space=vmem, size = 0x12000, scoped, tag = 'internal scratch']
  %s0 = inlined_call_operand.vmem [shape: f32[16,32], index: 0, kind: input, shape index: {}]
  %s1 = inlined_call_operand.vmem [shape: f32[6,16,40], index: 1, kind: input, shape index: {}]
  %s2 = inlined_call_operand.vmem [shape: f32[8,32], index: 2, kind: input, shape index: {}]
  %s3 = inlined_call_operand.vmem [shape: f32[32,104], index: 3, kind: input, shape index: {}]
  %s4 = inlined_call_operand.vmem [shape: f32[32,96], index: 4, kind: input, shape index: {}]
  %s5 = inlined_call_operand.vmem [shape: f32[1,96], index: 5, kind: input, shape index: {}]
  %s6 = inlined_call_operand.vmem [shape: f32[1,96], index: 6, kind: input, shape index: {}]
  %s7 = inlined_call_operand.vmem [shape: f32[32,16], index: 7, kind: input, shape index: {}]
  %s8 = inlined_call_operand.vmem [shape: f32[1,16], index: 8, kind: input, shape index: {}]
  %s9 = inlined_call_operand.hbm [shape: f32[6,16,16], index: 9, kind: output, shape index: {0}]
  %s10 = inlined_call_operand.vmem [shape: f32[6,16,8], index: 10, kind: output, shape index: {1}]
  %s11 = inlined_call_operand.hbm [shape: f32[16,32], index: 11, kind: output, shape index: {2}]
  %12 = xla_tuple %s9, %s10, %s11
  %s13 = sld [smem:[#allocation0]]
  $region62: #{attn_decoder_decode.1} parent=0
    _
  %s15 = ssub.s32 1, %s13
  %s16 = scalar_select 0, %s15, %s13
  $region1: #{attn_decoder_decode.1} parent=0
    #allocation2 [shape = 'u8[49152]{0}', space=vmem, size = 0xc000, scoped, tag = 'output window, operand 0, single buffered']
    #allocation3 [shape = 's32[1]{0}', space=sflag, size = 0x4, scoped, tag = 'scoped memory for attn_decoder_decode.1']
    #allocation4 [shape = 'u8[8192]{0}', space=vmem, size = 0x2000, scoped, tag = 'output window, operand 2, single buffered']
    #allocation5 [shape = 's32[1]{0}', space=sflag, size = 0x4, scoped, tag = 'scoped memory for attn_decoder_decode.1']
    %17 = vsyncpa [#allocation3], 0
    %18 = vsyncpa [#allocation5], 0
    // Predicated region
    $region2: #{attn_decoder_decode.1} parent=1 // pred_check
      _
    $region3: #{attn_decoder_decode.1} parent=1 // pred_check_branch
      %20 = sbr.rel (0) target = $region5
    $region4: #{attn_decoder_decode.1} parent=1 // pred_region
      _
    $region5: #{attn_decoder_decode.1} parent=1 // pred_fallthru
      _
    // Predicated region
    $region6: #{attn_decoder_decode.1} parent=1 // pred_check
      _
    $region7: #{attn_decoder_decode.1} parent=1 // pred_check_branch
      %22 = sbr.rel (0) target = $region9
    $region8: #{attn_decoder_decode.1} parent=1 // pred_region
      _
    $region9: #{attn_decoder_decode.1} parent=1 // pred_fallthru
      _
    // Predicated region
    $region10: #{attn_decoder_decode.1} parent=1 // pred_check
      _
    $region11: #{attn_decoder_decode.1} parent=1 // pred_check_branch
      %24 = sbr.rel (0) target = $region13
    $region12: #{attn_decoder_decode.1} parent=1 // pred_region
      _
    $region13: #{attn_decoder_decode.1} parent=1 // pred_fallthru
      _
    // Predicated region
    $region14: #{attn_decoder_decode.1} parent=1 // pred_check
      _
    $region15: #{attn_decoder_decode.1} parent=1 // pred_check_branch
      %26 = sbr.rel (0) target = $region17
    $region16: #{attn_decoder_decode.1} parent=1 // pred_region
      _
    $region17: #{attn_decoder_decode.1} parent=1 // pred_fallthru
      _
    // Predicated region
    $region18: #{attn_decoder_decode.1} parent=1 // pred_check
      _
    $region19: #{attn_decoder_decode.1} parent=1 // pred_check_branch
      %28 = sbr.rel (0) target = $region21
    $region20: #{attn_decoder_decode.1} parent=1 // pred_region
      _
    $region21: #{attn_decoder_decode.1} parent=1 // pred_fallthru
      _
    // Predicated region
    $region22: #{attn_decoder_decode.1} parent=1 // pred_check
      _
    $region23: #{attn_decoder_decode.1} parent=1 // pred_check_branch
      %30 = sbr.rel (0) target = $region25
    $region24: #{attn_decoder_decode.1} parent=1 // pred_region
      _
    $region25: #{attn_decoder_decode.1} parent=1 // pred_fallthru
      _
    // Predicated region
    $region26: #{attn_decoder_decode.1} parent=1 // pred_check
      _
    $region27: #{attn_decoder_decode.1} parent=1 // pred_check_branch
      %32 = sbr.rel (0) target = $region29
    $region28: #{attn_decoder_decode.1} parent=1 // pred_region
      _
    $region29: #{attn_decoder_decode.1} parent=1 // pred_fallthru
      _
    // Predicated region
    $region30: #{attn_decoder_decode.1} parent=1 // pred_check
      _
    $region31: #{attn_decoder_decode.1} parent=1 // pred_check_branch
      %34 = sbr.rel (0) target = $region33
    $region32: #{attn_decoder_decode.1} parent=1 // pred_region
      _
    $region33: #{attn_decoder_decode.1} parent=1 // pred_fallthru
      _
    // Predicated region
    $region34: #{attn_decoder_decode.1} parent=1 // pred_check
      _
    $region35: #{attn_decoder_decode.1} parent=1 // pred_check_branch
      %36 = sbr.rel (0) target = $region37
    $region36: #{attn_decoder_decode.1} parent=1 // pred_region
      _
    $region37: #{attn_decoder_decode.1} parent=1 // pred_fallthru
      _
    %v37 = vld [vmem:[%s0] sm:$0xff]
    %v38 = vld [vmem:[%s0 + $0x8] sm:$0xff]
    %v39 = vld [vmem:[%s3] sm:$0xff]
    %v40 = vld [vmem:[%s3 + $0x8] sm:$0xff]
    %v41 = vld [vmem:[%s3 + $0x10] sm:$0xff]
    %v42 = vld [vmem:[%s3 + $0x18] sm:$0xff]
    %v43 = vld [vmem:[%s2] sm:$0xff]
    %v44 = vld [vmem:[%s4] sm:$0xff]
    %v45 = vld [vmem:[%s4 + $0x8] sm:$0xff]
    %v46 = vld [vmem:[%s4 + $0x10] sm:$0xff]
    %v47 = vld [vmem:[%s4 + $0x18] sm:$0xff]
    %v48 = vld [vmem:[%s5] sm:$0x1]
    %v49 = vld [vmem:[%s6] sm:$0x1]
    %v50 = vld [vmem:[%s1] sm:$0xff]
    %v51 = vld [vmem:[%s1 + $0x8] sm:$0xff]
    %vm52 = vcmask 261120
    %v54 = vsel %vm52, %v37, 0
    %v57 = vsel %vm52, %v38, 0
    %59 = vmatprep.subr.mxu0 0.0
    %60 = vmatpush1.msra.mxu0 0.0
    %61 = vmatprep.subr.mxu0 0.0
    %62 = vmatpush1.msra.mxu0 0.0
    %63 = vmatprep.subr.mxu0 0.0
    %64 = vmatpush1.msra.mxu0 0.0
    %65 = vmatprep.subr.mxu0 0.0
    %66 = vmatpush1.msra.mxu0 0.0
    %67 = vmatprep.subr.mxu0 0.0
    %68 = vmatpush1.msra.mxu0 0.0
    %69 = vmatprep.subr.mxu0 0.0
    %70 = vmatpush1.msra.mxu0 0.0
    %71 = vmatprep.subr.mxu0 0.0
    %72 = vmatpush1.msra.mxu0 0.0
    %73 = vmatprep.subr.mxu0 0.0
    %74 = vmatpush1.msra.mxu0 0.0
    %75 = vmatprep.subr.mxu0 0.0
    %76 = vmatpush1.msra.mxu0 0.0
    %77 = vmatprep.subr.mxu0 0.0
    %78 = vmatpush1.msra.mxu0 0.0
    %79 = vmatprep.subr.mxu0 0.0
    %80 = vmatpush1.msra.mxu0 0.0
    %81 = vmatprep.subr.mxu0 0.0
    %82 = vmatpush1.msra.mxu0 0.0
    %83 = vmatprep.subr.mxu0 0.0
    %84 = vmatpush1.msra.mxu0 %v42
    %85 = vmatprep.subr.mxu0 0.0
    %86 = vmatpush1.msra.mxu0 %v41
    %87 = vmatprep.subr.mxu0 0.0
    %88 = vmatpush1.msra.mxu0 %v40
    %89 = vmatprep.subr.mxu0 0.0
    %90 = vmatpush1.msra.mxu0 %v39
    %91 = vmatprep.subr.mxu0 0.0
    %92 = vmatpush2.msra.mxu0 0.0
    %93 = vmatprep.subr.mxu0 0.0
    %94 = vmatpush2.msra.mxu0 0.0
    %95 = vmatprep.subr.mxu0 0.0
    %96 = vmatpush2.msra.mxu0 0.0
    %97 = vmatprep.subr.mxu0 0.0
    %98 = vmatpush2.msra.mxu0 0.0
    %99 = vmatprep.subr.mxu0 0.0
    %100 = vmatpush2.msra.mxu0 0.0
    %101 = vmatprep.subr.mxu0 0.0
    %102 = vmatpush2.msra.mxu0 0.0
    %103 = vmatprep.subr.mxu0 0.0
    %104 = vmatpush2.msra.mxu0 0.0
    %105 = vmatprep.subr.mxu0 0.0
    %106 = vmatpush2.msra.mxu0 0.0
    %107 = vmatprep.subr.mxu0 0.0
    %108 = vmatpush2.msra.mxu0 0.0
    %109 = vmatprep.subr.mxu0 0.0
    %110 = vmatpush2.msra.mxu0 0.0
    %111 = vmatprep.subr.mxu0 0.0
    %112 = vmatpush2.msra.mxu0 0.0
    %113 = vmatprep.subr.mxu0 0.0
    %114 = vmatpush2.msra.mxu0 0.0
    %115 = vmatprep.subr.mxu0 0.0
    %116 = vmatpush2.msra.mxu0 0.0
    %117 = vmatprep.subr.mxu0 0.0
    %118 = vmatpush2.msra.mxu0 0.0
    %119 = vmatprep.subr.mxu0 0.0
    %120 = vmatpush2.msra.mxu0 0.0
    %121 = vmatprep.subr.mxu0 0.0
    %122 = vmatpush2.msra.mxu0 0.0
    %123 = vmatprep.mubr.f32.mxu0 0.0
    %124 = vmatmul.mubr.f32.gmra.mxu0 %v54
    %v125 = vpop.f32.mrf.mxu0
    %v126 = vadd.f32 0.0, %v125
    %v127 = vpop.f32.mrf.mxu0
    %128 = vmatprep.mubr.f32.mxu0 0.0
    %129 = vmatmul.mubr.f32.gmra.mxu0 %v57
    %v130 = vpop.f32.mrf.mxu0
    %v131 = vadd.f32 0.0, %v130
    %v132 = vpop.f32.mrf.mxu0
    %133 = vdwg.mxu0
    %v134 = vadd.f32 %v50, %v126
    %v135 = vadd.f32 %v51, %v131
    %vm136 = vcmask 64512
    %v137 = vsel %vm136, %v134, -inf
    %138 = vmax.xlane.f32.xlu0 %v137
    %v139 = vpop.xlane.xlu0 %138
    %v140 = vsel %vm136, %v135, -inf
    %141 = vmax.xlane.f32.xlu0 %v140
    %v142 = vpop.xlane.xlu0 %141
    %v143 = vsub.f32 %v134, %v139
    %v144 = vsub.f32 %v135, %v142
    %v145 = vmul.f32 %v143, 1.442695
    %v146 = vpow.pop %v145
    %v147 = vmul.f32 %v144, 1.442695
    %v148 = vpow.pop %v147
    %v149 = vsel %vm136, %v146, 0.0
    %150 = vadd.xlane.f32.xlu0 %v149
    %v151 = vpop.xlane.xlu0 %150
    %v152 = vsel %vm136, %v148, 0.0
    %153 = vadd.xlane.f32.xlu0 %v152
    %v154 = vpop.xlane.xlu0 %153
    %v155 = vrcp.pop %v151
    %v156 = vmul.f32 %v146, %v155
    %v157 = vrcp.pop %v154
    %v158 = vmul.f32 %v148, %v157
    %159 = vst.msk [vmem:[%s10] sm:$0xff] %vm136, %v156
    %160 = vst.msk [vmem:[%s10 + $0x8] sm:$0xff] %vm136, %v158
    %v162 = vsel %vm136, %v156, 0
    %v165 = vsel %vm136, %v158, 0
    %167 = vmatprep.subr.mxu0 0.0
    %168 = vmatpush1.msra.mxu0 0.0
    %169 = vmatprep.subr.mxu0 0.0
    %170 = vmatpush1.msra.mxu0 0.0
    %171 = vmatprep.subr.mxu0 0.0
    %172 = vmatpush1.msra.mxu0 0.0
    %173 = vmatprep.subr.mxu0 0.0
    %174 = vmatpush1.msra.mxu0 0.0
    %175 = vmatprep.subr.mxu0 0.0
    %176 = vmatpush1.msra.mxu0 0.0
    %177 = vmatprep.subr.mxu0 0.0
    %178 = vmatpush1.msra.mxu0 0.0
    %179 = vmatprep.subr.mxu0 0.0
    %180 = vmatpush1.msra.mxu0 0.0
    %181 = vmatprep.subr.mxu0 0.0
    %182 = vmatpush1.msra.mxu0 0.0
    %183 = vmatprep.subr.mxu0 0.0
    %184 = vmatpush1.msra.mxu0 0.0
    %185 = vmatprep.subr.mxu0 0.0
    %186 = vmatpush1.msra.mxu0 0.0
    %187 = vmatprep.subr.mxu0 0.0
    %188 = vmatpush1.msra.mxu0 0.0
    %189 = vmatprep.subr.mxu0 0.0
    %190 = vmatpush1.msra.mxu0 0.0
    %191 = vmatprep.subr.mxu0 0.0
    %192 = vmatpush1.msra.mxu0 0.0
    %193 = vmatprep.subr.mxu0 0.0
    %194 = vmatpush1.msra.mxu0 0.0
    %195 = vmatprep.subr.mxu0 0.0
    %196 = vmatpush1.msra.mxu0 0.0
    %197 = vmatprep.subr.mxu0 0.0
    %198 = vmatpush1.msra.mxu0 %v43
    %199 = vmatprep.subr.mxu0 0.0
    %200 = vmatpush2.msra.mxu0 0.0
    %201 = vmatprep.subr.mxu0 0.0
    %202 = vmatpush2.msra.mxu0 0.0
    %203 = vmatprep.subr.mxu0 0.0
    %204 = vmatpush2.msra.mxu0 0.0
    %205 = vmatprep.subr.mxu0 0.0
    %206 = vmatpush2.msra.mxu0 0.0
    %207 = vmatprep.subr.mxu0 0.0
    %208 = vmatpush2.msra.mxu0 0.0
    %209 = vmatprep.subr.mxu0 0.0
    %210 = vmatpush2.msra.mxu0 0.0
    %211 = vmatprep.subr.mxu0 0.0
    %212 = vmatpush2.msra.mxu0 0.0
    %213 = vmatprep.subr.mxu0 0.0
    %214 = vmatpush2.msra.mxu0 0.0
    %215 = vmatprep.subr.mxu0 0.0
    %216 = vmatpush2.msra.mxu0 0.0
    %217 = vmatprep.subr.mxu0 0.0
    %218 = vmatpush2.msra.mxu0 0.0
    %219 = vmatprep.subr.mxu0 0.0
    %220 = vmatpush2.msra.mxu0 0.0
    %221 = vmatprep.subr.mxu0 0.0
    %222 = vmatpush2.msra.mxu0 0.0
    %223 = vmatprep.subr.mxu0 0.0
    %224 = vmatpush2.msra.mxu0 0.0
    %225 = vmatprep.subr.mxu0 0.0
    %226 = vmatpush2.msra.mxu0 0.0
    %227 = vmatprep.subr.mxu0 0.0
    %228 = vmatpush2.msra.mxu0 0.0
    %229 = vmatprep.subr.mxu0 0.0
    %230 = vmatpush2.msra.mxu0 0.0
    %231 = vmatprep.mubr.f32.mxu0 0.0
    %232 = vmatmul.mubr.f32.gmra.mxu0 %v162
    %v233 = vpop.f32.mrf.mxu0
    %v234 = vadd.f32 0.0, %v233
    %v235 = vpop.f32.mrf.mxu0
    %236 = vmatprep.mubr.f32.mxu0 0.0
    %237 = vmatmul.mubr.f32.gmra.mxu0 %v165
    %v238 = vpop.f32.mrf.mxu0
    %v239 = vadd.f32 0.0, %v238
    %v240 = vpop.f32.mrf.mxu0
    %241 = vdwg.mxu0
    %244 = vrot.lane.b32.xlu0 %v234, 8
    %v245 = vpop.permute.xlu0 %244
    %246 = vrot.lane.b32.xlu0 %v239, 8
    %v247 = vpop.permute.xlu0 %246
    %v250 = vadd.f32 %v50, %v245
    %v251 = vadd.f32 %v51, %v247
    %v252 = vmax.f32 %v250, 0.0
    %v253 = vmax.f32 %v251, 0.0
    %v255 = vlaneseq
    %v256 = vshrl.u32 %v255, 7
    %v257 = vsub.s32 0, %v256
    %v258 = vrot.slane %v48, %v257
    %262 = vrot.lane.b32.xlu0 %v252, 120
    %v263 = vpop.permute.xlu0 %262
    %264 = vrot.lane.b32.xlu0 %v253, 120
    %v265 = vpop.permute.xlu0 %264
    %v266 = vsel %vm52, %v263, 0
    %v268 = vsel %vm52, %v265, 0
    %270 = vmatprep.subr.mxu0 0.0
    %271 = vmatpush1.msra.mxu0 0.0
    %272 = vmatprep.subr.mxu0 0.0
    %273 = vmatpush1.msra.mxu0 0.0
    %274 = vmatprep.subr.mxu0 0.0
    %275 = vmatpush1.msra.mxu0 0.0
    %276 = vmatprep.subr.mxu0 0.0
    %277 = vmatpush1.msra.mxu0 0.0
    %278 = vmatprep.subr.mxu0 0.0
    %279 = vmatpush1.msra.mxu0 0.0
    %280 = vmatprep.subr.mxu0 0.0
    %281 = vmatpush1.msra.mxu0 0.0
    %282 = vmatprep.subr.mxu0 0.0
    %283 = vmatpush1.msra.mxu0 0.0
    %284 = vmatprep.subr.mxu0 0.0
    %285 = vmatpush1.msra.mxu0 0.0
    %286 = vmatprep.subr.mxu0 0.0
    %287 = vmatpush1.msra.mxu0 0.0
    %288 = vmatprep.subr.mxu0 0.0
    %289 = vmatpush1.msra.mxu0 0.0
    %290 = vmatprep.subr.mxu0 0.0
    %291 = vmatpush1.msra.mxu0 0.0
    %292 = vmatprep.subr.mxu0 0.0
    %293 = vmatpush1.msra.mxu0 0.0
    %294 = vmatprep.subr.mxu0 0.0
    %295 = vmatpush1.msra.mxu0 %v47
    %296 = vmatprep.subr.mxu0 0.0
    %297 = vmatpush1.msra.mxu0 %v46
    %298 = vmatprep.subr.mxu0 0.0
    %299 = vmatpush1.msra.mxu0 %v45
    %300 = vmatprep.subr.mxu0 0.0
    %301 = vmatpush1.msra.mxu0 %v44
    %302 = vmatprep.subr.mxu0 0.0
    %303 = vmatpush2.msra.mxu0 0.0
    %304 = vmatprep.subr.mxu0 0.0
    %305 = vmatpush2.msra.mxu0 0.0
    %306 = vmatprep.subr.mxu0 0.0
    %307 = vmatpush2.msra.mxu0 0.0
    %308 = vmatprep.subr.mxu0 0.0
    %309 = vmatpush2.msra.mxu0 0.0
    %310 = vmatprep.subr.mxu0 0.0
    %311 = vmatpush2.msra.mxu0 0.0
    %312 = vmatprep.subr.mxu0 0.0
    %313 = vmatpush2.msra.mxu0 0.0
    %314 = vmatprep.subr.mxu0 0.0
    %315 = vmatpush2.msra.mxu0 0.0
    %316 = vmatprep.subr.mxu0 0.0
    %317 = vmatpush2.msra.mxu0 0.0
    %318 = vmatprep.subr.mxu0 0.0
    %319 = vmatpush2.msra.mxu0 0.0
    %320 = vmatprep.subr.mxu0 0.0
    %321 = vmatpush2.msra.mxu0 0.0
    %322 = vmatprep.subr.mxu0 0.0
    %323 = vmatpush2.msra.mxu0 0.0
    %324 = vmatprep.subr.mxu0 0.0
    %325 = vmatpush2.msra.mxu0 0.0
    %326 = vmatprep.subr.mxu0 0.0
    %327 = vmatpush2.msra.mxu0 0.0
    %328 = vmatprep.subr.mxu0 0.0
    %329 = vmatpush2.msra.mxu0 0.0
    %330 = vmatprep.subr.mxu0 0.0
    %331 = vmatpush2.msra.mxu0 0.0
    %332 = vmatprep.subr.mxu0 0.0
    %333 = vmatpush2.msra.mxu0 0.0
    %334 = vmatprep.mubr.f32.mxu0 0.0
    %335 = vmatmul.mubr.f32.gmra.mxu0 %v266
    %v336 = vpop.f32.mrf.mxu0
    %v337 = vadd.f32 %v258, %v336
    %v338 = vpop.f32.mrf.mxu0
    %339 = vmatprep.mubr.f32.mxu0 0.0
    %340 = vmatmul.mubr.f32.gmra.mxu0 %v268
    %v341 = vpop.f32.mrf.mxu0
    %v342 = vadd.f32 %v258, %v341
    %v343 = vpop.f32.mrf.mxu0
    %344 = vdwg.mxu0
    %v346 = vlaneseq
    %v347 = vshrl.u32 %v346, 7
    %v348 = vsub.s32 0, %v347
    %v349 = vrot.slane %v49, %v348
    %350 = vrot.lane.b32.xlu0 %v349, 8
    %v351 = vpop.permute.xlu0 %350
    %v353 = vadd.f32 %v126, %v351
    %v354 = vadd.f32 %v131, %v351
    %357 = vrot.lane.b32.xlu0 %v353, 120
    %v358 = vpop.permute.xlu0 %357
    %359 = vrot.lane.b32.xlu0 %v354, 120
    %v360 = vpop.permute.xlu0 %359
    %v363 = vadd.f32 %v337, %v358
    %v364 = vadd.f32 %v342, %v360
    %v365 = vxor.u32 %v363, 2147483648
    %v366 = vxor.u32 %v364, 2147483648
    %v367 = vmul.f32 %v365, 1.442695
    %v368 = vpow.pop %v367
    %v369 = vmul.f32 %v366, 1.442695
    %v370 = vpow.pop %v369
    %v371 = vadd.f32 %v368, 1.0
    %v372 = vadd.f32 %v370, 1.0
    %v373 = vrcp.pop %v371
    %v374 = vmul.f32 1.0, %v373
    %v375 = vrcp.pop %v372
    %v376 = vmul.f32 1.0, %v375
    %377 = vrot.lane.b32.xlu0 %v353, 56
    %v378 = vpop.permute.xlu0 %377
    %379 = vrot.lane.b32.xlu0 %v354, 56
    %v380 = vpop.permute.xlu0 %379
    %v383 = vmul.f32 %v374, %v378
    %v384 = vmul.f32 %v376, %v380
    %387 = vrot.lane.b32.xlu0 %v383, 64
    %v388 = vpop.permute.xlu0 %387
    %389 = vrot.lane.b32.xlu0 %v384, 64
    %v390 = vpop.permute.xlu0 %389
    %v393 = vadd.f32 %v337, %v388
    %v394 = vadd.f32 %v342, %v390
    %v395 = vtanh.pop %v393
    %v396 = vtanh.pop %v394
    %v397 = vsub.f32 1.0, %v374
    %v398 = vsub.f32 1.0, %v376
    %401 = vrot.lane.b32.xlu0 %v395, 96
    %v402 = vpop.permute.xlu0 %401
    %403 = vrot.lane.b32.xlu0 %v396, 96
    %v404 = vpop.permute.xlu0 %403
    %v407 = vmul.f32 %v397, %v402
    %v408 = vmul.f32 %v398, %v404
    %409 = vrot.lane.b32.xlu0 %v37, 32
    %v410 = vpop.permute.xlu0 %409
    %411 = vrot.lane.b32.xlu0 %v38, 32
    %v412 = vpop.permute.xlu0 %411
    %v415 = vmul.f32 %v374, %v410
    %v416 = vmul.f32 %v376, %v412
    %v417 = vadd.f32 %v407, %v415
    %v418 = vadd.f32 %v408, %v416
    %s419 = scalar_lea.vmem %s1, 16
    %v420 = vld [vmem:[%s419] sm:$0xff]
    %v421 = vld [vmem:[%s419 + $0x8] sm:$0xff]
    %424 = vrot.lane.b32.xlu0 %v417, 96
    %v425 = vpop.permute.xlu0 %424
    %426 = vrot.lane.b32.xlu0 %v418, 96
    %v427 = vpop.permute.xlu0 %426
    %v428 = vsel %vm52, %v425, 0
    %v430 = vsel %vm52, %v427, 0
    %432 = vmatprep.subr.mxu0 0.0
    %433 = vmatpush1.msra.mxu0 0.0
    %434 = vmatprep.subr.mxu0 0.0
    %435 = vmatpush1.msra.mxu0 0.0
    %436 = vmatprep.subr.mxu0 0.0
    %437 = vmatpush1.msra.mxu0 0.0
    %438 = vmatprep.subr.mxu0 0.0
    %439 = vmatpush1.msra.mxu0 0.0
    %440 = vmatprep.subr.mxu0 0.0
    %441 = vmatpush1.msra.mxu0 0.0
    %442 = vmatprep.subr.mxu0 0.0
    %443 = vmatpush1.msra.mxu0 0.0
    %444 = vmatprep.subr.mxu0 0.0
    %445 = vmatpush1.msra.mxu0 0.0
    %446 = vmatprep.subr.mxu0 0.0
    %447 = vmatpush1.msra.mxu0 0.0
    %448 = vmatprep.subr.mxu0 0.0
    %449 = vmatpush1.msra.mxu0 0.0
    %450 = vmatprep.subr.mxu0 0.0
    %451 = vmatpush1.msra.mxu0 0.0
    %452 = vmatprep.subr.mxu0 0.0
    %453 = vmatpush1.msra.mxu0 0.0
    %454 = vmatprep.subr.mxu0 0.0
    %455 = vmatpush1.msra.mxu0 0.0
    %456 = vmatprep.subr.mxu0 0.0
    %457 = vmatpush1.msra.mxu0 %v42
    %458 = vmatprep.subr.mxu0 0.0
    %459 = vmatpush1.msra.mxu0 %v41
    %460 = vmatprep.subr.mxu0 0.0
    %461 = vmatpush1.msra.mxu0 %v40
    %462 = vmatprep.subr.mxu0 0.0
    %463 = vmatpush1.msra.mxu0 %v39
    %464 = vmatprep.subr.mxu0 0.0
    %465 = vmatpush2.msra.mxu0 0.0
    %466 = vmatprep.subr.mxu0 0.0
    %467 = vmatpush2.msra.mxu0 0.0
    %468 = vmatprep.subr.mxu0 0.0
    %469 = vmatpush2.msra.mxu0 0.0
    %470 = vmatprep.subr.mxu0 0.0
    %471 = vmatpush2.msra.mxu0 0.0
    %472 = vmatprep.subr.mxu0 0.0
    %473 = vmatpush2.msra.mxu0 0.0
    %474 = vmatprep.subr.mxu0 0.0
    %475 = vmatpush2.msra.mxu0 0.0
    %476 = vmatprep.subr.mxu0 0.0
    %477 = vmatpush2.msra.mxu0 0.0
    %478 = vmatprep.subr.mxu0 0.0
    %479 = vmatpush2.msra.mxu0 0.0
    %480 = vmatprep.subr.mxu0 0.0
    %481 = vmatpush2.msra.mxu0 0.0
    %482 = vmatprep.subr.mxu0 0.0
    %483 = vmatpush2.msra.mxu0 0.0
    %484 = vmatprep.subr.mxu0 0.0
    %485 = vmatpush2.msra.mxu0 0.0
    %486 = vmatprep.subr.mxu0 0.0
    %487 = vmatpush2.msra.mxu0 0.0
    %488 = vmatprep.subr.mxu0 0.0
    %489 = vmatpush2.msra.mxu0 0.0
    %490 = vmatprep.subr.mxu0 0.0
    %491 = vmatpush2.msra.mxu0 0.0
    %492 = vmatprep.subr.mxu0 0.0
    %493 = vmatpush2.msra.mxu0 0.0
    %494 = vmatprep.subr.mxu0 0.0
    %495 = vmatpush2.msra.mxu0 0.0
    %496 = vmatprep.mubr.f32.mxu0 0.0
    %497 = vmatmul.mubr.f32.gmra.mxu0 %v428
    %v498 = vpop.f32.mrf.mxu0
    %v499 = vadd.f32 0.0, %v498
    %v500 = vpop.f32.mrf.mxu0
    %501 = vmatprep.mubr.f32.mxu0 0.0
    %502 = vmatmul.mubr.f32.gmra.mxu0 %v430
    %v503 = vpop.f32.mrf.mxu0
    %v504 = vadd.f32 0.0, %v503
    %v505 = vpop.f32.mrf.mxu0
    %506 = vdwg.mxu0
    %v507 = vadd.f32 %v420, %v499
    %v508 = vadd.f32 %v421, %v504
    %v509 = vsel %vm136, %v507, -inf
    %510 = vmax.xlane.f32.xlu0 %v509
    %v511 = vpop.xlane.xlu0 %510
    %v512 = vsel %vm136, %v508, -inf
    %513 = vmax.xlane.f32.xlu0 %v512
    %v514 = vpop.xlane.xlu0 %513
    %v515 = vsub.f32 %v507, %v511
    %v516 = vsub.f32 %v508, %v514
    %v517 = vmul.f32 %v515, 1.442695
    %v518 = vpow.pop %v517
    %v519 = vmul.f32 %v516, 1.442695
    %v520 = vpow.pop %v519
    %v521 = vsel %vm136, %v518, 0.0
    %522 = vadd.xlane.f32.xlu0 %v521
    %v523 = vpop.xlane.xlu0 %522
    %v524 = vsel %vm136, %v520, 0.0
    %525 = vadd.xlane.f32.xlu0 %v524
    %v526 = vpop.xlane.xlu0 %525
    %v527 = vrcp.pop %v523
    %v528 = vmul.f32 %v518, %v527
    %v529 = vrcp.pop %v526
    %v530 = vmul.f32 %v520, %v529
    %s531 = scalar_lea.vmem %s10, 16
    %532 = vst.msk [vmem:[%s531] sm:$0xff] %vm136, %v528
    %533 = vst.msk [vmem:[%s531 + $0x8] sm:$0xff] %vm136, %v530
    %v535 = vsel %vm136, %v528, 0
    %v538 = vsel %vm136, %v530, 0
    %540 = vmatprep.subr.mxu0 0.0
    %541 = vmatpush1.msra.mxu0 0.0
    %542 = vmatprep.subr.mxu0 0.0
    %543 = vmatpush1.msra.mxu0 0.0
    %544 = vmatprep.subr.mxu0 0.0
    %545 = vmatpush1.msra.mxu0 0.0
    %546 = vmatprep.subr.mxu0 0.0
    %547 = vmatpush1.msra.mxu0 0.0
    %548 = vmatprep.subr.mxu0 0.0
    %549 = vmatpush1.msra.mxu0 0.0
    %550 = vmatprep.subr.mxu0 0.0
    %551 = vmatpush1.msra.mxu0 0.0
    %552 = vmatprep.subr.mxu0 0.0
    %553 = vmatpush1.msra.mxu0 0.0
    %554 = vmatprep.subr.mxu0 0.0
    %555 = vmatpush1.msra.mxu0 0.0
    %556 = vmatprep.subr.mxu0 0.0
    %557 = vmatpush1.msra.mxu0 0.0
    %558 = vmatprep.subr.mxu0 0.0
    %559 = vmatpush1.msra.mxu0 0.0
    %560 = vmatprep.subr.mxu0 0.0
    %561 = vmatpush1.msra.mxu0 0.0
    %562 = vmatprep.subr.mxu0 0.0
    %563 = vmatpush1.msra.mxu0 0.0
    %564 = vmatprep.subr.mxu0 0.0
    %565 = vmatpush1.msra.mxu0 0.0
    %566 = vmatprep.subr.mxu0 0.0
    %567 = vmatpush1.msra.mxu0 0.0
    %568 = vmatprep.subr.mxu0 0.0
    %569 = vmatpush1.msra.mxu0 0.0
    %570 = vmatprep.subr.mxu0 0.0
    %571 = vmatpush1.msra.mxu0 %v43
    %572 = vmatprep.subr.mxu0 0.0
    %573 = vmatpush2.msra.mxu0 0.0
    %574 = vmatprep.subr.mxu0 0.0
    %575 = vmatpush2.msra.mxu0 0.0
    %576 = vmatprep.subr.mxu0 0.0
    %577 = vmatpush2.msra.mxu0 0.0
    %578 = vmatprep.subr.mxu0 0.0
    %579 = vmatpush2.msra.mxu0 0.0
    %580 = vmatprep.subr.mxu0 0.0
    %581 = vmatpush2.msra.mxu0 0.0
    %582 = vmatprep.subr.mxu0 0.0
    %583 = vmatpush2.msra.mxu0 0.0
    %584 = vmatprep.subr.mxu0 0.0
    %585 = vmatpush2.msra.mxu0 0.0
    %586 = vmatprep.subr.mxu0 0.0
    %587 = vmatpush2.msra.mxu0 0.0
    %588 = vmatprep.subr.mxu0 0.0
    %589 = vmatpush2.msra.mxu0 0.0
    %590 = vmatprep.subr.mxu0 0.0
    %591 = vmatpush2.msra.mxu0 0.0
    %592 = vmatprep.subr.mxu0 0.0
    %593 = vmatpush2.msra.mxu0 0.0
    %594 = vmatprep.subr.mxu0 0.0
    %595 = vmatpush2.msra.mxu0 0.0
    %596 = vmatprep.subr.mxu0 0.0
    %597 = vmatpush2.msra.mxu0 0.0
    %598 = vmatprep.subr.mxu0 0.0
    %599 = vmatpush2.msra.mxu0 0.0
    %600 = vmatprep.subr.mxu0 0.0
    %601 = vmatpush2.msra.mxu0 0.0
    %602 = vmatprep.subr.mxu0 0.0
    %603 = vmatpush2.msra.mxu0 0.0
    %604 = vmatprep.mubr.f32.mxu0 0.0
    %605 = vmatmul.mubr.f32.gmra.mxu0 %v535
    %v606 = vpop.f32.mrf.mxu0
    %v607 = vadd.f32 0.0, %v606
    %v608 = vpop.f32.mrf.mxu0
    %609 = vmatprep.mubr.f32.mxu0 0.0
    %610 = vmatmul.mubr.f32.gmra.mxu0 %v538
    %v611 = vpop.f32.mrf.mxu0
    %v612 = vadd.f32 0.0, %v611
    %v613 = vpop.f32.mrf.mxu0
    %614 = vdwg.mxu0
    %617 = vrot.lane.b32.xlu0 %v607, 8
    %v618 = vpop.permute.xlu0 %617
    %619 = vrot.lane.b32.xlu0 %v612, 8
    %v620 = vpop.permute.xlu0 %619
    %v623 = vadd.f32 %v420, %v618
    %v624 = vadd.f32 %v421, %v620
    %v625 = vmax.f32 %v623, 0.0
    %v626 = vmax.f32 %v624, 0.0
    %629 = vrot.lane.b32.xlu0 %v625, 120
    %v630 = vpop.permute.xlu0 %629
    %631 = vrot.lane.b32.xlu0 %v626, 120
    %v632 = vpop.permute.xlu0 %631
    %v633 = vsel %vm52, %v630, 0
    %v635 = vsel %vm52, %v632, 0
    %637 = vmatprep.subr.mxu0 0.0
    %638 = vmatpush1.msra.mxu0 0.0
    %639 = vmatprep.subr.mxu0 0.0
    %640 = vmatpush1.msra.mxu0 0.0
    %641 = vmatprep.subr.mxu0 0.0
    %642 = vmatpush1.msra.mxu0 0.0
    %643 = vmatprep.subr.mxu0 0.0
    %644 = vmatpush1.msra.mxu0 0.0
    %645 = vmatprep.subr.mxu0 0.0
    %646 = vmatpush1.msra.mxu0 0.0
    %647 = vmatprep.subr.mxu0 0.0
    %648 = vmatpush1.msra.mxu0 0.0
    %649 = vmatprep.subr.mxu0 0.0
    %650 = vmatpush1.msra.mxu0 0.0
    %651 = vmatprep.subr.mxu0 0.0
    %652 = vmatpush1.msra.mxu0 0.0
    %653 = vmatprep.subr.mxu0 0.0
    %654 = vmatpush1.msra.mxu0 0.0
    %655 = vmatprep.subr.mxu0 0.0
    %656 = vmatpush1.msra.mxu0 0.0
    %657 = vmatprep.subr.mxu0 0.0
    %658 = vmatpush1.msra.mxu0 0.0
    %659 = vmatprep.subr.mxu0 0.0
    %660 = vmatpush1.msra.mxu0 0.0
    %661 = vmatprep.subr.mxu0 0.0
    %662 = vmatpush1.msra.mxu0 %v47
    %663 = vmatprep.subr.mxu0 0.0
    %664 = vmatpush1.msra.mxu0 %v46
    %665 = vmatprep.subr.mxu0 0.0
    %666 = vmatpush1.msra.mxu0 %v45
    %667 = vmatprep.subr.mxu0 0.0
    %668 = vmatpush1.msra.mxu0 %v44
    %669 = vmatprep.subr.mxu0 0.0
    %670 = vmatpush2.msra.mxu0 0.0
    %671 = vmatprep.subr.mxu0 0.0
    %672 = vmatpush2.msra.mxu0 0.0
    %673 = vmatprep.subr.mxu0 0.0
    %674 = vmatpush2.msra.mxu0 0.0
    %675 = vmatprep.subr.mxu0 0.0
    %676 = vmatpush2.msra.mxu0 0.0
    %677 = vmatprep.subr.mxu0 0.0
    %678 = vmatpush2.msra.mxu0 0.0
    %679 = vmatprep.subr.mxu0 0.0
    %680 = vmatpush2.msra.mxu0 0.0
    %681 = vmatprep.subr.mxu0 0.0
    %682 = vmatpush2.msra.mxu0 0.0
    %683 = vmatprep.subr.mxu0 0.0
    %684 = vmatpush2.msra.mxu0 0.0
    %685 = vmatprep.subr.mxu0 0.0
    %686 = vmatpush2.msra.mxu0 0.0
    %687 = vmatprep.subr.mxu0 0.0
    %688 = vmatpush2.msra.mxu0 0.0
    %689 = vmatprep.subr.mxu0 0.0
    %690 = vmatpush2.msra.mxu0 0.0
    %691 = vmatprep.subr.mxu0 0.0
    %692 = vmatpush2.msra.mxu0 0.0
    %693 = vmatprep.subr.mxu0 0.0
    %694 = vmatpush2.msra.mxu0 0.0
    %695 = vmatprep.subr.mxu0 0.0
    %696 = vmatpush2.msra.mxu0 0.0
    %697 = vmatprep.subr.mxu0 0.0
    %698 = vmatpush2.msra.mxu0 0.0
    %699 = vmatprep.subr.mxu0 0.0
    %700 = vmatpush2.msra.mxu0 0.0
    %701 = vmatprep.mubr.f32.mxu0 0.0
    %702 = vmatmul.mubr.f32.gmra.mxu0 %v633
    %v703 = vpop.f32.mrf.mxu0
    %v704 = vadd.f32 %v258, %v703
    %v705 = vpop.f32.mrf.mxu0
    %706 = vmatprep.mubr.f32.mxu0 0.0
    %707 = vmatmul.mubr.f32.gmra.mxu0 %v635
    %v708 = vpop.f32.mrf.mxu0
    %v709 = vadd.f32 %v258, %v708
    %v710 = vpop.f32.mrf.mxu0
    %711 = vdwg.mxu0
    %v712 = vadd.f32 %v499, %v351
    %v713 = vadd.f32 %v504, %v351
    %716 = vrot.lane.b32.xlu0 %v712, 120
    %v717 = vpop.permute.xlu0 %716
    %718 = vrot.lane.b32.xlu0 %v713, 120
    %v719 = vpop.permute.xlu0 %718
    %v722 = vadd.f32 %v704, %v717
    %v723 = vadd.f32 %v709, %v719
    %v724 = vxor.u32 %v722, 2147483648
    %v725 = vxor.u32 %v723, 2147483648
    %v726 = vmul.f32 %v724, 1.442695
    %v727 = vpow.pop %v726
    %v728 = vmul.f32 %v725, 1.442695
    %v729 = vpow.pop %v728
    %v730 = vadd.f32 %v727, 1.0
    %v731 = vadd.f32 %v729, 1.0
    %v732 = vrcp.pop %v730
    %v733 = vmul.f32 1.0, %v732
    %v734 = vrcp.pop %v731
    %v735 = vmul.f32 1.0, %v734
    %736 = vrot.lane.b32.xlu0 %v712, 56
    %v737 = vpop.permute.xlu0 %736
    %738 = vrot.lane.b32.xlu0 %v713, 56
    %v739 = vpop.permute.xlu0 %738
    %v742 = vmul.f32 %v733, %v737
    %v743 = vmul.f32 %v735, %v739
    %746 = vrot.lane.b32.xlu0 %v742, 64
    %v747 = vpop.permute.xlu0 %746
    %748 = vrot.lane.b32.xlu0 %v743, 64
    %v749 = vpop.permute.xlu0 %748
    %v752 = vadd.f32 %v704, %v747
    %v753 = vadd.f32 %v709, %v749
    %v754 = vtanh.pop %v752
    %v755 = vtanh.pop %v753
    %v756 = vsub.f32 1.0, %v733
    %v757 = vsub.f32 1.0, %v735
    %760 = vrot.lane.b32.xlu0 %v754, 96
    %v761 = vpop.permute.xlu0 %760
    %762 = vrot.lane.b32.xlu0 %v755, 96
    %v763 = vpop.permute.xlu0 %762
    %v766 = vmul.f32 %v756, %v761
    %v767 = vmul.f32 %v757, %v763
    %v768 = vmul.f32 %v733, %v417
    %v769 = vmul.f32 %v735, %v418
    %v770 = vadd.f32 %v766, %v768
    %v771 = vadd.f32 %v767, %v769
    %s772 = scalar_lea.vmem %s1, 32
    %v773 = vld [vmem:[%s772] sm:$0xff]
    %v774 = vld [vmem:[%s772 + $0x8] sm:$0xff]
    %777 = vrot.lane.b32.xlu0 %v770, 96
    %v778 = vpop.permute.xlu0 %777
    %779 = vrot.lane.b32.xlu0 %v771, 96
    %v780 = vpop.permute.xlu0 %779
    %v781 = vsel %vm52, %v778, 0
    %v783 = vsel %vm52, %v780, 0
    %785 = vmatprep.subr.mxu0 0.0
    %786 = vmatpush1.msra.mxu0 0.0
    %787 = vmatprep.subr.mxu0 0.0
    %788 = vmatpush1.msra.mxu0 0.0
    %789 = vmatprep.subr.mxu0 0.0
    %790 = vmatpush1.msra.mxu0 0.0
    %791 = vmatprep.subr.mxu0 0.0
    %792 = vmatpush1.msra.mxu0 0.0
    %793 = vmatprep.subr.mxu0 0.0
    %794 = vmatpush1.msra.mxu0 0.0
    %795 = vmatprep.subr.mxu0 0.0
    %796 = vmatpush1.msra.mxu0 0.0
    %797 = vmatprep.subr.mxu0 0.0
    %798 = vmatpush1.msra.mxu0 0.0
    %799 = vmatprep.subr.mxu0 0.0
    %800 = vmatpush1.msra.mxu0 0.0
    %801 = vmatprep.subr.mxu0 0.0
    %802 = vmatpush1.msra.mxu0 0.0
    %803 = vmatprep.subr.mxu0 0.0
    %804 = vmatpush1.msra.mxu0 0.0
    %805 = vmatprep.subr.mxu0 0.0
    %806 = vmatpush1.msra.mxu0 0.0
    %807 = vmatprep.subr.mxu0 0.0
    %808 = vmatpush1.msra.mxu0 0.0
    %809 = vmatprep.subr.mxu0 0.0
    %810 = vmatpush1.msra.mxu0 %v42
    %811 = vmatprep.subr.mxu0 0.0
    %812 = vmatpush1.msra.mxu0 %v41
    %813 = vmatprep.subr.mxu0 0.0
    %814 = vmatpush1.msra.mxu0 %v40
    %815 = vmatprep.subr.mxu0 0.0
    %816 = vmatpush1.msra.mxu0 %v39
    %817 = vmatprep.subr.mxu0 0.0
    %818 = vmatpush2.msra.mxu0 0.0
    %819 = vmatprep.subr.mxu0 0.0
    %820 = vmatpush2.msra.mxu0 0.0
    %821 = vmatprep.subr.mxu0 0.0
    %822 = vmatpush2.msra.mxu0 0.0
    %823 = vmatprep.subr.mxu0 0.0
    %824 = vmatpush2.msra.mxu0 0.0
    %825 = vmatprep.subr.mxu0 0.0
    %826 = vmatpush2.msra.mxu0 0.0
    %827 = vmatprep.subr.mxu0 0.0
    %828 = vmatpush2.msra.mxu0 0.0
    %829 = vmatprep.subr.mxu0 0.0
    %830 = vmatpush2.msra.mxu0 0.0
    %831 = vmatprep.subr.mxu0 0.0
    %832 = vmatpush2.msra.mxu0 0.0
    %833 = vmatprep.subr.mxu0 0.0
    %834 = vmatpush2.msra.mxu0 0.0
    %835 = vmatprep.subr.mxu0 0.0
    %836 = vmatpush2.msra.mxu0 0.0
    %837 = vmatprep.subr.mxu0 0.0
    %838 = vmatpush2.msra.mxu0 0.0
    %839 = vmatprep.subr.mxu0 0.0
    %840 = vmatpush2.msra.mxu0 0.0
    %841 = vmatprep.subr.mxu0 0.0
    %842 = vmatpush2.msra.mxu0 0.0
    %843 = vmatprep.subr.mxu0 0.0
    %844 = vmatpush2.msra.mxu0 0.0
    %845 = vmatprep.subr.mxu0 0.0
    %846 = vmatpush2.msra.mxu0 0.0
    %847 = vmatprep.subr.mxu0 0.0
    %848 = vmatpush2.msra.mxu0 0.0
    %849 = vmatprep.mubr.f32.mxu0 0.0
    %850 = vmatmul.mubr.f32.gmra.mxu0 %v781
    %v851 = vpop.f32.mrf.mxu0
    %v852 = vadd.f32 0.0, %v851
    %v853 = vpop.f32.mrf.mxu0
    %854 = vmatprep.mubr.f32.mxu0 0.0
    %855 = vmatmul.mubr.f32.gmra.mxu0 %v783
    %v856 = vpop.f32.mrf.mxu0
    %v857 = vadd.f32 0.0, %v856
    %v858 = vpop.f32.mrf.mxu0
    %859 = vdwg.mxu0
    %v860 = vadd.f32 %v773, %v852
    %v861 = vadd.f32 %v774, %v857
    %v862 = vsel %vm136, %v860, -inf
    %863 = vmax.xlane.f32.xlu0 %v862
    %v864 = vpop.xlane.xlu0 %863
    %v865 = vsel %vm136, %v861, -inf
    %866 = vmax.xlane.f32.xlu0 %v865
    %v867 = vpop.xlane.xlu0 %866
    %v868 = vsub.f32 %v860, %v864
    %v869 = vsub.f32 %v861, %v867
    %v870 = vmul.f32 %v868, 1.442695
    %v871 = vpow.pop %v870
    %v872 = vmul.f32 %v869, 1.442695
    %v873 = vpow.pop %v872
    %v874 = vsel %vm136, %v871, 0.0
    %875 = vadd.xlane.f32.xlu0 %v874
    %v876 = vpop.xlane.xlu0 %875
    %v877 = vsel %vm136, %v873, 0.0
    %878 = vadd.xlane.f32.xlu0 %v877
    %v879 = vpop.xlane.xlu0 %878
    %v880 = vrcp.pop %v876
    %v881 = vmul.f32 %v871, %v880
    %v882 = vrcp.pop %v879
    %v883 = vmul.f32 %v873, %v882
    %s884 = scalar_lea.vmem %s10, 32
    %885 = vst.msk [vmem:[%s884] sm:$0xff] %vm136, %v881
    %886 = vst.msk [vmem:[%s884 + $0x8] sm:$0xff] %vm136, %v883
    %v888 = vsel %vm136, %v881, 0
    %v891 = vsel %vm136, %v883, 0
    %893 = vmatprep.subr.mxu0 0.0
    %894 = vmatpush1.msra.mxu0 0.0
    %895 = vmatprep.subr.mxu0 0.0
    %896 = vmatpush1.msra.mxu0 0.0
    %897 = vmatprep.subr.mxu0 0.0
    %898 = vmatpush1.msra.mxu0 0.0
    %899 = vmatprep.subr.mxu0 0.0
    %900 = vmatpush1.msra.mxu0 0.0
    %901 = vmatprep.subr.mxu0 0.0
    %902 = vmatpush1.msra.mxu0 0.0
    %903 = vmatprep.subr.mxu0 0.0
    %904 = vmatpush1.msra.mxu0 0.0
    %905 = vmatprep.subr.mxu0 0.0
    %906 = vmatpush1.msra.mxu0 0.0
    %907 = vmatprep.subr.mxu0 0.0
    %908 = vmatpush1.msra.mxu0 0.0
    %909 = vmatprep.subr.mxu0 0.0
    %910 = vmatpush1.msra.mxu0 0.0
    %911 = vmatprep.subr.mxu0 0.0
    %912 = vmatpush1.msra.mxu0 0.0
    %913 = vmatprep.subr.mxu0 0.0
    %914 = vmatpush1.msra.mxu0 0.0
    %915 = vmatprep.subr.mxu0 0.0
    %916 = vmatpush1.msra.mxu0 0.0
    %917 = vmatprep.subr.mxu0 0.0
    %918 = vmatpush1.msra.mxu0 0.0
    %919 = vmatprep.subr.mxu0 0.0
    %920 = vmatpush1.msra.mxu0 0.0
    %921 = vmatprep.subr.mxu0 0.0
    %922 = vmatpush1.msra.mxu0 0.0
    %923 = vmatprep.subr.mxu0 0.0
    %924 = vmatpush1.msra.mxu0 %v43
    %925 = vmatprep.subr.mxu0 0.0
    %926 = vmatpush2.msra.mxu0 0.0
    %927 = vmatprep.subr.mxu0 0.0
    %928 = vmatpush2.msra.mxu0 0.0
    %929 = vmatprep.subr.mxu0 0.0
    %930 = vmatpush2.msra.mxu0 0.0
    %931 = vmatprep.subr.mxu0 0.0
    %932 = vmatpush2.msra.mxu0 0.0
    %933 = vmatprep.subr.mxu0 0.0
    %934 = vmatpush2.msra.mxu0 0.0
    %935 = vmatprep.subr.mxu0 0.0
    %936 = vmatpush2.msra.mxu0 0.0
    %937 = vmatprep.subr.mxu0 0.0
    %938 = vmatpush2.msra.mxu0 0.0
    %939 = vmatprep.subr.mxu0 0.0
    %940 = vmatpush2.msra.mxu0 0.0
    %941 = vmatprep.subr.mxu0 0.0
    %942 = vmatpush2.msra.mxu0 0.0
    %943 = vmatprep.subr.mxu0 0.0
    %944 = vmatpush2.msra.mxu0 0.0
    %945 = vmatprep.subr.mxu0 0.0
    %946 = vmatpush2.msra.mxu0 0.0
    %947 = vmatprep.subr.mxu0 0.0
    %948 = vmatpush2.msra.mxu0 0.0
    %949 = vmatprep.subr.mxu0 0.0
    %950 = vmatpush2.msra.mxu0 0.0
    %951 = vmatprep.subr.mxu0 0.0
    %952 = vmatpush2.msra.mxu0 0.0
    %953 = vmatprep.subr.mxu0 0.0
    %954 = vmatpush2.msra.mxu0 0.0
    %955 = vmatprep.subr.mxu0 0.0
    %956 = vmatpush2.msra.mxu0 0.0
    %957 = vmatprep.mubr.f32.mxu0 0.0
    %958 = vmatmul.mubr.f32.gmra.mxu0 %v888
    %v959 = vpop.f32.mrf.mxu0
    %v960 = vadd.f32 0.0, %v959
    %v961 = vpop.f32.mrf.mxu0
    %962 = vmatprep.mubr.f32.mxu0 0.0
    %963 = vmatmul.mubr.f32.gmra.mxu0 %v891
    %v964 = vpop.f32.mrf.mxu0
    %v965 = vadd.f32 0.0, %v964
    %v966 = vpop.f32.mrf.mxu0
    %967 = vdwg.mxu0
    %970 = vrot.lane.b32.xlu0 %v960, 8
    %v971 = vpop.permute.xlu0 %970
    %972 = vrot.lane.b32.xlu0 %v965, 8
    %v973 = vpop.permute.xlu0 %972
    %v976 = vadd.f32 %v773, %v971
    %v977 = vadd.f32 %v774, %v973
    %v978 = vmax.f32 %v976, 0.0
    %v979 = vmax.f32 %v977, 0.0
    %982 = vrot.lane.b32.xlu0 %v978, 120
    %v983 = vpop.permute.xlu0 %982
    %984 = vrot.lane.b32.xlu0 %v979, 120
    %v985 = vpop.permute.xlu0 %984
    %v986 = vsel %vm52, %v983, 0
    %v988 = vsel %vm52, %v985, 0
    %990 = vmatprep.subr.mxu0 0.0
    %991 = vmatpush1.msra.mxu0 0.0
    %992 = vmatprep.subr.mxu0 0.0
    %993 = vmatpush1.msra.mxu0 0.0
    %994 = vmatprep.subr.mxu0 0.0
    %995 = vmatpush1.msra.mxu0 0.0
    %996 = vmatprep.subr.mxu0 0.0
    %997 = vmatpush1.msra.mxu0 0.0
    %998 = vmatprep.subr.mxu0 0.0
    %999 = vmatpush1.msra.mxu0 0.0
    %1000 = vmatprep.subr.mxu0 0.0
    %1001 = vmatpush1.msra.mxu0 0.0
    %1002 = vmatprep.subr.mxu0 0.0
    %1003 = vmatpush1.msra.mxu0 0.0
    %1004 = vmatprep.subr.mxu0 0.0
    %1005 = vmatpush1.msra.mxu0 0.0
    %1006 = vmatprep.subr.mxu0 0.0
    %1007 = vmatpush1.msra.mxu0 0.0
    %1008 = vmatprep.subr.mxu0 0.0
    %1009 = vmatpush1.msra.mxu0 0.0
    %1010 = vmatprep.subr.mxu0 0.0
    %1011 = vmatpush1.msra.mxu0 0.0
    %1012 = vmatprep.subr.mxu0 0.0
    %1013 = vmatpush1.msra.mxu0 0.0
    %1014 = vmatprep.subr.mxu0 0.0
    %1015 = vmatpush1.msra.mxu0 %v47
    %1016 = vmatprep.subr.mxu0 0.0
    %1017 = vmatpush1.msra.mxu0 %v46
    %1018 = vmatprep.subr.mxu0 0.0
    %1019 = vmatpush1.msra.mxu0 %v45
    %1020 = vmatprep.subr.mxu0 0.0
    %1021 = vmatpush1.msra.mxu0 %v44
    %1022 = vmatprep.subr.mxu0 0.0
    %1023 = vmatpush2.msra.mxu0 0.0
    %1024 = vmatprep.subr.mxu0 0.0
    %1025 = vmatpush2.msra.mxu0 0.0
    %1026 = vmatprep.subr.mxu0 0.0
    %1027 = vmatpush2.msra.mxu0 0.0
    %1028 = vmatprep.subr.mxu0 0.0
    %1029 = vmatpush2.msra.mxu0 0.0
    %1030 = vmatprep.subr.mxu0 0.0
    %1031 = vmatpush2.msra.mxu0 0.0
    %1032 = vmatprep.subr.mxu0 0.0
    %1033 = vmatpush2.msra.mxu0 0.0
    %1034 = vmatprep.subr.mxu0 0.0
    %1035 = vmatpush2.msra.mxu0 0.0
    %1036 = vmatprep.subr.mxu0 0.0
    %1037 = vmatpush2.msra.mxu0 0.0
    %1038 = vmatprep.subr.mxu0 0.0
    %1039 = vmatpush2.msra.mxu0 0.0
    %1040 = vmatprep.subr.mxu0 0.0
    %1041 = vmatpush2.msra.mxu0 0.0
    %1042 = vmatprep.subr.mxu0 0.0
    %1043 = vmatpush2.msra.mxu0 0.0
    %1044 = vmatprep.subr.mxu0 0.0
    %1045 = vmatpush2.msra.mxu0 0.0
    %1046 = vmatprep.subr.mxu0 0.0
    %1047 = vmatpush2.msra.mxu0 0.0
    %1048 = vmatprep.subr.mxu0 0.0
    %1049 = vmatpush2.msra.mxu0 0.0
    %1050 = vmatprep.subr.mxu0 0.0
    %1051 = vmatpush2.msra.mxu0 0.0
    %1052 = vmatprep.subr.mxu0 0.0
    %1053 = vmatpush2.msra.mxu0 0.0
    %1054 = vmatprep.mubr.f32.mxu0 0.0
    %1055 = vmatmul.mubr.f32.gmra.mxu0 %v986
    %v1056 = vpop.f32.mrf.mxu0
    %v1057 = vadd.f32 %v258, %v1056
    %v1058 = vpop.f32.mrf.mxu0
    %1059 = vmatprep.mubr.f32.mxu0 0.0
    %1060 = vmatmul.mubr.f32.gmra.mxu0 %v988
    %v1061 = vpop.f32.mrf.mxu0
    %v1062 = vadd.f32 %v258, %v1061
    %v1063 = vpop.f32.mrf.mxu0
    %1064 = vdwg.mxu0
    %v1065 = vadd.f32 %v852, %v351
    %v1066 = vadd.f32 %v857, %v351
    %1069 = vrot.lane.b32.xlu0 %v1065, 120
    %v1070 = vpop.permute.xlu0 %1069
    %1071 = vrot.lane.b32.xlu0 %v1066, 120
    %v1072 = vpop.permute.xlu0 %1071
    %v1075 = vadd.f32 %v1057, %v1070
    %v1076 = vadd.f32 %v1062, %v1072
    %v1077 = vxor.u32 %v1075, 2147483648
    %v1078 = vxor.u32 %v1076, 2147483648
    %v1079 = vmul.f32 %v1077, 1.442695
    %v1080 = vpow.pop %v1079
    %v1081 = vmul.f32 %v1078, 1.442695
    %v1082 = vpow.pop %v1081
    %v1083 = vadd.f32 %v1080, 1.0
    %v1084 = vadd.f32 %v1082, 1.0
    %v1085 = vrcp.pop %v1083
    %v1086 = vmul.f32 1.0, %v1085
    %v1087 = vrcp.pop %v1084
    %v1088 = vmul.f32 1.0, %v1087
    %1089 = vrot.lane.b32.xlu0 %v1065, 56
    %v1090 = vpop.permute.xlu0 %1089
    %1091 = vrot.lane.b32.xlu0 %v1066, 56
    %v1092 = vpop.permute.xlu0 %1091
    %v1095 = vmul.f32 %v1086, %v1090
    %v1096 = vmul.f32 %v1088, %v1092
    %1099 = vrot.lane.b32.xlu0 %v1095, 64
    %v1100 = vpop.permute.xlu0 %1099
    %1101 = vrot.lane.b32.xlu0 %v1096, 64
    %v1102 = vpop.permute.xlu0 %1101
    %v1105 = vadd.f32 %v1057, %v1100
    %v1106 = vadd.f32 %v1062, %v1102
    %v1107 = vtanh.pop %v1105
    %v1108 = vtanh.pop %v1106
    %v1109 = vsub.f32 1.0, %v1086
    %v1110 = vsub.f32 1.0, %v1088
    %1113 = vrot.lane.b32.xlu0 %v1107, 96
    %v1114 = vpop.permute.xlu0 %1113
    %1115 = vrot.lane.b32.xlu0 %v1108, 96
    %v1116 = vpop.permute.xlu0 %1115
    %v1119 = vmul.f32 %v1109, %v1114
    %v1120 = vmul.f32 %v1110, %v1116
    %v1121 = vmul.f32 %v1086, %v770
    %v1122 = vmul.f32 %v1088, %v771
    %v1123 = vadd.f32 %v1119, %v1121
    %v1124 = vadd.f32 %v1120, %v1122
    %s1125 = scalar_lea.vmem %s1, 48
    %v1126 = vld [vmem:[%s1125] sm:$0xff]
    %v1127 = vld [vmem:[%s1125 + $0x8] sm:$0xff]
    %1130 = vrot.lane.b32.xlu0 %v1123, 96
    %v1131 = vpop.permute.xlu0 %1130
    %1132 = vrot.lane.b32.xlu0 %v1124, 96
    %v1133 = vpop.permute.xlu0 %1132
    %v1134 = vsel %vm52, %v1131, 0
    %v1136 = vsel %vm52, %v1133, 0
    %1138 = vmatprep.subr.mxu0 0.0
    %1139 = vmatpush1.msra.mxu0 0.0
    %1140 = vmatprep.subr.mxu0 0.0
    %1141 = vmatpush1.msra.mxu0 0.0
    %1142 = vmatprep.subr.mxu0 0.0
    %1143 = vmatpush1.msra.mxu0 0.0
    %1144 = vmatprep.subr.mxu0 0.0
    %1145 = vmatpush1.msra.mxu0 0.0
    %1146 = vmatprep.subr.mxu0 0.0
    %1147 = vmatpush1.msra.mxu0 0.0
    %1148 = vmatprep.subr.mxu0 0.0
    %1149 = vmatpush1.msra.mxu0 0.0
    %1150 = vmatprep.subr.mxu0 0.0
    %1151 = vmatpush1.msra.mxu0 0.0
    %1152 = vmatprep.subr.mxu0 0.0
    %1153 = vmatpush1.msra.mxu0 0.0
    %1154 = vmatprep.subr.mxu0 0.0
    %1155 = vmatpush1.msra.mxu0 0.0
    %1156 = vmatprep.subr.mxu0 0.0
    %1157 = vmatpush1.msra.mxu0 0.0
    %1158 = vmatprep.subr.mxu0 0.0
    %1159 = vmatpush1.msra.mxu0 0.0
    %1160 = vmatprep.subr.mxu0 0.0
    %1161 = vmatpush1.msra.mxu0 0.0
    %1162 = vmatprep.subr.mxu0 0.0
    %1163 = vmatpush1.msra.mxu0 %v42
    %1164 = vmatprep.subr.mxu0 0.0
    %1165 = vmatpush1.msra.mxu0 %v41
    %1166 = vmatprep.subr.mxu0 0.0
    %1167 = vmatpush1.msra.mxu0 %v40
    %1168 = vmatprep.subr.mxu0 0.0
    %1169 = vmatpush1.msra.mxu0 %v39
    %1170 = vmatprep.subr.mxu0 0.0
    %1171 = vmatpush2.msra.mxu0 0.0
    %1172 = vmatprep.subr.mxu0 0.0
    %1173 = vmatpush2.msra.mxu0 0.0
    %1174 = vmatprep.subr.mxu0 0.0
    %1175 = vmatpush2.msra.mxu0 0.0
    %1176 = vmatprep.subr.mxu0 0.0
    %1177 = vmatpush2.msra.mxu0 0.0
    %1178 = vmatprep.subr.mxu0 0.0
    %1179 = vmatpush2.msra.mxu0 0.0
    %1180 = vmatprep.subr.mxu0 0.0
    %1181 = vmatpush2.msra.mxu0 0.0
    %1182 = vmatprep.subr.mxu0 0.0
    %1183 = vmatpush2.msra.mxu0 0.0
    %1184 = vmatprep.subr.mxu0 0.0
    %1185 = vmatpush2.msra.mxu0 0.0
    %1186 = vmatprep.subr.mxu0 0.0
    %1187 = vmatpush2.msra.mxu0 0.0
    %1188 = vmatprep.subr.mxu0 0.0
    %1189 = vmatpush2.msra.mxu0 0.0
    %1190 = vmatprep.subr.mxu0 0.0
    %1191 = vmatpush2.msra.mxu0 0.0
    %1192 = vmatprep.subr.mxu0 0.0
    %1193 = vmatpush2.msra.mxu0 0.0
    %1194 = vmatprep.subr.mxu0 0.0
    %1195 = vmatpush2.msra.mxu0 0.0
    %1196 = vmatprep.subr.mxu0 0.0
    %1197 = vmatpush2.msra.mxu0 0.0
    %1198 = vmatprep.subr.mxu0 0.0
    %1199 = vmatpush2.msra.mxu0 0.0
    %1200 = vmatprep.subr.mxu0 0.0
    %1201 = vmatpush2.msra.mxu0 0.0
    %1202 = vmatprep.mubr.f32.mxu0 0.0
    %1203 = vmatmul.mubr.f32.gmra.mxu0 %v1134
    %v1204 = vpop.f32.mrf.mxu0
    %v1205 = vadd.f32 0.0, %v1204
    %v1206 = vpop.f32.mrf.mxu0
    %1207 = vmatprep.mubr.f32.mxu0 0.0
    %1208 = vmatmul.mubr.f32.gmra.mxu0 %v1136
    %v1209 = vpop.f32.mrf.mxu0
    %v1210 = vadd.f32 0.0, %v1209
    %v1211 = vpop.f32.mrf.mxu0
    %1212 = vdwg.mxu0
    %v1213 = vadd.f32 %v1126, %v1205
    %v1214 = vadd.f32 %v1127, %v1210
    %v1215 = vsel %vm136, %v1213, -inf
    %1216 = vmax.xlane.f32.xlu0 %v1215
    %v1217 = vpop.xlane.xlu0 %1216
    %v1218 = vsel %vm136, %v1214, -inf
    %1219 = vmax.xlane.f32.xlu0 %v1218
    %v1220 = vpop.xlane.xlu0 %1219
    %v1221 = vsub.f32 %v1213, %v1217
    %v1222 = vsub.f32 %v1214, %v1220
    %v1223 = vmul.f32 %v1221, 1.442695
    %v1224 = vpow.pop %v1223
    %v1225 = vmul.f32 %v1222, 1.442695
    %v1226 = vpow.pop %v1225
    %v1227 = vsel %vm136, %v1224, 0.0
    %1228 = vadd.xlane.f32.xlu0 %v1227
    %v1229 = vpop.xlane.xlu0 %1228
    %v1230 = vsel %vm136, %v1226, 0.0
    %1231 = vadd.xlane.f32.xlu0 %v1230
    %v1232 = vpop.xlane.xlu0 %1231
    %v1233 = vrcp.pop %v1229
    %v1234 = vmul.f32 %v1224, %v1233
    %v1235 = vrcp.pop %v1232
    %v1236 = vmul.f32 %v1226, %v1235
    %s1237 = scalar_lea.vmem %s10, 48
    %1238 = vst.msk [vmem:[%s1237] sm:$0xff] %vm136, %v1234
    %1239 = vst.msk [vmem:[%s1237 + $0x8] sm:$0xff] %vm136, %v1236
    %v1241 = vsel %vm136, %v1234, 0
    %v1244 = vsel %vm136, %v1236, 0
    %1246 = vmatprep.subr.mxu0 0.0
    %1247 = vmatpush1.msra.mxu0 0.0
    %1248 = vmatprep.subr.mxu0 0.0
    %1249 = vmatpush1.msra.mxu0 0.0
    %1250 = vmatprep.subr.mxu0 0.0
    %1251 = vmatpush1.msra.mxu0 0.0
    %1252 = vmatprep.subr.mxu0 0.0
    %1253 = vmatpush1.msra.mxu0 0.0
    %1254 = vmatprep.subr.mxu0 0.0
    %1255 = vmatpush1.msra.mxu0 0.0
    %1256 = vmatprep.subr.mxu0 0.0
    %1257 = vmatpush1.msra.mxu0 0.0
    %1258 = vmatprep.subr.mxu0 0.0
    %1259 = vmatpush1.msra.mxu0 0.0
    %1260 = vmatprep.subr.mxu0 0.0
    %1261 = vmatpush1.msra.mxu0 0.0
    %1262 = vmatprep.subr.mxu0 0.0
    %1263 = vmatpush1.msra.mxu0 0.0
    %1264 = vmatprep.subr.mxu0 0.0
    %1265 = vmatpush1.msra.mxu0 0.0
    %1266 = vmatprep.subr.mxu0 0.0
    %1267 = vmatpush1.msra.mxu0 0.0
    %1268 = vmatprep.subr.mxu0 0.0
    %1269 = vmatpush1.msra.mxu0 0.0
    %1270 = vmatprep.subr.mxu0 0.0
    %1271 = vmatpush1.msra.mxu0 0.0
    %1272 = vmatprep.subr.mxu0 0.0
    %1273 = vmatpush1.msra.mxu0 0.0
    %1274 = vmatprep.subr.mxu0 0.0
    %1275 = vmatpush1.msra.mxu0 0.0
    %1276 = vmatprep.subr.mxu0 0.0
    %1277 = vmatpush1.msra.mxu0 %v43
    %1278 = vmatprep.subr.mxu0 0.0
    %1279 = vmatpush2.msra.mxu0 0.0
    %1280 = vmatprep.subr.mxu0 0.0
    %1281 = vmatpush2.msra.mxu0 0.0
    %1282 = vmatprep.subr.mxu0 0.0
    %1283 = vmatpush2.msra.mxu0 0.0
    %1284 = vmatprep.subr.mxu0 0.0
    %1285 = vmatpush2.msra.mxu0 0.0
    %1286 = vmatprep.subr.mxu0 0.0
    %1287 = vmatpush2.msra.mxu0 0.0
    %1288 = vmatprep.subr.mxu0 0.0
    %1289 = vmatpush2.msra.mxu0 0.0
    %1290 = vmatprep.subr.mxu0 0.0
    %1291 = vmatpush2.msra.mxu0 0.0
    %1292 = vmatprep.subr.mxu0 0.0
    %1293 = vmatpush2.msra.mxu0 0.0
    %1294 = vmatprep.subr.mxu0 0.0
    %1295 = vmatpush2.msra.mxu0 0.0
    %1296 = vmatprep.subr.mxu0 0.0
    %1297 = vmatpush2.msra.mxu0 0.0
    %1298 = vmatprep.subr.mxu0 0.0
    %1299 = vmatpush2.msra.mxu0 0.0
    %1300 = vmatprep.subr.mxu0 0.0
    %1301 = vmatpush2.msra.mxu0 0.0
    %1302 = vmatprep.subr.mxu0 0.0
    %1303 = vmatpush2.msra.mxu0 0.0
    %1304 = vmatprep.subr.mxu0 0.0
    %1305 = vmatpush2.msra.mxu0 0.0
    %1306 = vmatprep.subr.mxu0 0.0
    %1307 = vmatpush2.msra.mxu0 0.0
    %1308 = vmatprep.subr.mxu0 0.0
    %1309 = vmatpush2.msra.mxu0 0.0
    %1310 = vmatprep.mubr.f32.mxu0 0.0
    %1311 = vmatmul.mubr.f32.gmra.mxu0 %v1241
    %v1312 = vpop.f32.mrf.mxu0
    %v1313 = vadd.f32 0.0, %v1312
    %v1314 = vpop.f32.mrf.mxu0
    %1315 = vmatprep.mubr.f32.mxu0 0.0
    %1316 = vmatmul.mubr.f32.gmra.mxu0 %v1244
    %v1317 = vpop.f32.mrf.mxu0
    %v1318 = vadd.f32 0.0, %v1317
    %v1319 = vpop.f32.mrf.mxu0
    %1320 = vdwg.mxu0
    %1323 = vrot.lane.b32.xlu0 %v1313, 8
    %v1324 = vpop.permute.xlu0 %1323
    %1325 = vrot.lane.b32.xlu0 %v1318, 8
    %v1326 = vpop.permute.xlu0 %1325
    %v1329 = vadd.f32 %v1126, %v1324
    %v1330 = vadd.f32 %v1127, %v1326
    %v1331 = vmax.f32 %v1329, 0.0
    %v1332 = vmax.f32 %v1330, 0.0
    %1335 = vrot.lane.b32.xlu0 %v1331, 120
    %v1336 = vpop.permute.xlu0 %1335
    %1337 = vrot.lane.b32.xlu0 %v1332, 120
    %v1338 = vpop.permute.xlu0 %1337
    %v1339 = vsel %vm52, %v1336, 0
    %v1341 = vsel %vm52, %v1338, 0
    %1343 = vmatprep.subr.mxu0 0.0
    %1344 = vmatpush1.msra.mxu0 0.0
    %1345 = vmatprep.subr.mxu0 0.0
    %1346 = vmatpush1.msra.mxu0 0.0
    %1347 = vmatprep.subr.mxu0 0.0
    %1348 = vmatpush1.msra.mxu0 0.0
    %1349 = vmatprep.subr.mxu0 0.0
    %1350 = vmatpush1.msra.mxu0 0.0
    %1351 = vmatprep.subr.mxu0 0.0
    %1352 = vmatpush1.msra.mxu0 0.0
    %1353 = vmatprep.subr.mxu0 0.0
    %1354 = vmatpush1.msra.mxu0 0.0
    %1355 = vmatprep.subr.mxu0 0.0
    %1356 = vmatpush1.msra.mxu0 0.0
    %1357 = vmatprep.subr.mxu0 0.0
    %1358 = vmatpush1.msra.mxu0 0.0
    %1359 = vmatprep.subr.mxu0 0.0
    %1360 = vmatpush1.msra.mxu0 0.0
    %1361 = vmatprep.subr.mxu0 0.0
    %1362 = vmatpush1.msra.mxu0 0.0
    %1363 = vmatprep.subr.mxu0 0.0
    %1364 = vmatpush1.msra.mxu0 0.0
    %1365 = vmatprep.subr.mxu0 0.0
    %1366 = vmatpush1.msra.mxu0 0.0
    %1367 = vmatprep.subr.mxu0 0.0
    %1368 = vmatpush1.msra.mxu0 %v47
    %1369 = vmatprep.subr.mxu0 0.0
    %1370 = vmatpush1.msra.mxu0 %v46
    %1371 = vmatprep.subr.mxu0 0.0
    %1372 = vmatpush1.msra.mxu0 %v45
    %1373 = vmatprep.subr.mxu0 0.0
    %1374 = vmatpush1.msra.mxu0 %v44
    %1375 = vmatprep.subr.mxu0 0.0
    %1376 = vmatpush2.msra.mxu0 0.0
    %1377 = vmatprep.subr.mxu0 0.0
    %1378 = vmatpush2.msra.mxu0 0.0
    %1379 = vmatprep.subr.mxu0 0.0
    %1380 = vmatpush2.msra.mxu0 0.0
    %1381 = vmatprep.subr.mxu0 0.0
    %1382 = vmatpush2.msra.mxu0 0.0
    %1383 = vmatprep.subr.mxu0 0.0
    %1384 = vmatpush2.msra.mxu0 0.0
    %1385 = vmatprep.subr.mxu0 0.0
    %1386 = vmatpush2.msra.mxu0 0.0
    %1387 = vmatprep.subr.mxu0 0.0
    %1388 = vmatpush2.msra.mxu0 0.0
    %1389 = vmatprep.subr.mxu0 0.0
    %1390 = vmatpush2.msra.mxu0 0.0
    %1391 = vmatprep.subr.mxu0 0.0
    %1392 = vmatpush2.msra.mxu0 0.0
    %1393 = vmatprep.subr.mxu0 0.0
    %1394 = vmatpush2.msra.mxu0 0.0
    %1395 = vmatprep.subr.mxu0 0.0
    %1396 = vmatpush2.msra.mxu0 0.0
    %1397 = vmatprep.subr.mxu0 0.0
    %1398 = vmatpush2.msra.mxu0 0.0
    %1399 = vmatprep.subr.mxu0 0.0
    %1400 = vmatpush2.msra.mxu0 0.0
    %1401 = vmatprep.subr.mxu0 0.0
    %1402 = vmatpush2.msra.mxu0 0.0
    %1403 = vmatprep.subr.mxu0 0.0
    %1404 = vmatpush2.msra.mxu0 0.0
    %1405 = vmatprep.subr.mxu0 0.0
    %1406 = vmatpush2.msra.mxu0 0.0
    %1407 = vmatprep.mubr.f32.mxu0 0.0
    %1408 = vmatmul.mubr.f32.gmra.mxu0 %v1339
    %v1409 = vpop.f32.mrf.mxu0
    %v1410 = vadd.f32 %v258, %v1409
    %v1411 = vpop.f32.mrf.mxu0
    %1412 = vmatprep.mubr.f32.mxu0 0.0
    %1413 = vmatmul.mubr.f32.gmra.mxu0 %v1341
    %v1414 = vpop.f32.mrf.mxu0
    %v1415 = vadd.f32 %v258, %v1414
    %v1416 = vpop.f32.mrf.mxu0
    %1417 = vdwg.mxu0
    %v1418 = vadd.f32 %v1205, %v351
    %v1419 = vadd.f32 %v1210, %v351
    %1422 = vrot.lane.b32.xlu0 %v1418, 120
    %v1423 = vpop.permute.xlu0 %1422
    %1424 = vrot.lane.b32.xlu0 %v1419, 120
    %v1425 = vpop.permute.xlu0 %1424
    %v1428 = vadd.f32 %v1410, %v1423
    %v1429 = vadd.f32 %v1415, %v1425
    %v1430 = vxor.u32 %v1428, 2147483648
    %v1431 = vxor.u32 %v1429, 2147483648
    %v1432 = vmul.f32 %v1430, 1.442695
    %v1433 = vpow.pop %v1432
    %v1434 = vmul.f32 %v1431, 1.442695
    %v1435 = vpow.pop %v1434
    %v1436 = vadd.f32 %v1433, 1.0
    %v1437 = vadd.f32 %v1435, 1.0
    %v1438 = vrcp.pop %v1436
    %v1439 = vmul.f32 1.0, %v1438
    %v1440 = vrcp.pop %v1437
    %v1441 = vmul.f32 1.0, %v1440
    %1442 = vrot.lane.b32.xlu0 %v1418, 56
    %v1443 = vpop.permute.xlu0 %1442
    %1444 = vrot.lane.b32.xlu0 %v1419, 56
    %v1445 = vpop.permute.xlu0 %1444
    %v1448 = vmul.f32 %v1439, %v1443
    %v1449 = vmul.f32 %v1441, %v1445
    %1452 = vrot.lane.b32.xlu0 %v1448, 64
    %v1453 = vpop.permute.xlu0 %1452
    %1454 = vrot.lane.b32.xlu0 %v1449, 64
    %v1455 = vpop.permute.xlu0 %1454
    %v1458 = vadd.f32 %v1410, %v1453
    %v1459 = vadd.f32 %v1415, %v1455
    %v1460 = vtanh.pop %v1458
    %v1461 = vtanh.pop %v1459
    %v1462 = vsub.f32 1.0, %v1439
    %v1463 = vsub.f32 1.0, %v1441
    %1466 = vrot.lane.b32.xlu0 %v1460, 96
    %v1467 = vpop.permute.xlu0 %1466
    %1468 = vrot.lane.b32.xlu0 %v1461, 96
    %v1469 = vpop.permute.xlu0 %1468
    %v1472 = vmul.f32 %v1462, %v1467
    %v1473 = vmul.f32 %v1463, %v1469
    %v1474 = vmul.f32 %v1439, %v1123
    %v1475 = vmul.f32 %v1441, %v1124
    %v1476 = vadd.f32 %v1472, %v1474
    %v1477 = vadd.f32 %v1473, %v1475
    %s1478 = scalar_lea.vmem %s1, 64
    %v1479 = vld [vmem:[%s1478] sm:$0xff]
    %v1480 = vld [vmem:[%s1478 + $0x8] sm:$0xff]
    %1483 = vrot.lane.b32.xlu0 %v1476, 96
    %v1484 = vpop.permute.xlu0 %1483
    %1485 = vrot.lane.b32.xlu0 %v1477, 96
    %v1486 = vpop.permute.xlu0 %1485
    %v1487 = vsel %vm52, %v1484, 0
    %v1489 = vsel %vm52, %v1486, 0
    %1491 = vmatprep.subr.mxu0 0.0
    %1492 = vmatpush1.msra.mxu0 0.0
    %1493 = vmatprep.subr.mxu0 0.0
    %1494 = vmatpush1.msra.mxu0 0.0
    %1495 = vmatprep.subr.mxu0 0.0
    %1496 = vmatpush1.msra.mxu0 0.0
    %1497 = vmatprep.subr.mxu0 0.0
    %1498 = vmatpush1.msra.mxu0 0.0
    %1499 = vmatprep.subr.mxu0 0.0
    %1500 = vmatpush1.msra.mxu0 0.0
    %1501 = vmatprep.subr.mxu0 0.0
    %1502 = vmatpush1.msra.mxu0 0.0
    %1503 = vmatprep.subr.mxu0 0.0
    %1504 = vmatpush1.msra.mxu0 0.0
    %1505 = vmatprep.subr.mxu0 0.0
    %1506 = vmatpush1.msra.mxu0 0.0
    %1507 = vmatprep.subr.mxu0 0.0
    %1508 = vmatpush1.msra.mxu0 0.0
    %1509 = vmatprep.subr.mxu0 0.0
    %1510 = vmatpush1.msra.mxu0 0.0
    %1511 = vmatprep.subr.mxu0 0.0
    %1512 = vmatpush1.msra.mxu0 0.0
    %1513 = vmatprep.subr.mxu0 0.0
    %1514 = vmatpush1.msra.mxu0 0.0
    %1515 = vmatprep.subr.mxu0 0.0
    %1516 = vmatpush1.msra.mxu0 %v42
    %1517 = vmatprep.subr.mxu0 0.0
    %1518 = vmatpush1.msra.mxu0 %v41
    %1519 = vmatprep.subr.mxu0 0.0
    %1520 = vmatpush1.msra.mxu0 %v40
    %1521 = vmatprep.subr.mxu0 0.0
    %1522 = vmatpush1.msra.mxu0 %v39
    %1523 = vmatprep.subr.mxu0 0.0
    %1524 = vmatpush2.msra.mxu0 0.0
    %1525 = vmatprep.subr.mxu0 0.0
    %1526 = vmatpush2.msra.mxu0 0.0
    %1527 = vmatprep.subr.mxu0 0.0
    %1528 = vmatpush2.msra.mxu0 0.0
    %1529 = vmatprep.subr.mxu0 0.0
    %1530 = vmatpush2.msra.mxu0 0.0
    %1531 = vmatprep.subr.mxu0 0.0
    %1532 = vmatpush2.msra.mxu0 0.0
    %1533 = vmatprep.subr.mxu0 0.0
    %1534 = vmatpush2.msra.mxu0 0.0
    %1535 = vmatprep.subr.mxu0 0.0
    %1536 = vmatpush2.msra.mxu0 0.0
    %1537 = vmatprep.subr.mxu0 0.0
    %1538 = vmatpush2.msra.mxu0 0.0
    %1539 = vmatprep.subr.mxu0 0.0
    %1540 = vmatpush2.msra.mxu0 0.0
    %1541 = vmatprep.subr.mxu0 0.0
    %1542 = vmatpush2.msra.mxu0 0.0
    %1543 = vmatprep.subr.mxu0 0.0
    %1544 = vmatpush2.msra.mxu0 0.0
    %1545 = vmatprep.subr.mxu0 0.0
    %1546 = vmatpush2.msra.mxu0 0.0
    %1547 = vmatprep.subr.mxu0 0.0
    %1548 = vmatpush2.msra.mxu0 0.0
    %1549 = vmatprep.subr.mxu0 0.0
    %1550 = vmatpush2.msra.mxu0 0.0
    %1551 = vmatprep.subr.mxu0 0.0
    %1552 = vmatpush2.msra.mxu0 0.0
    %1553 = vmatprep.subr.mxu0 0.0
    %1554 = vmatpush2.msra.mxu0 0.0
    %1555 = vmatprep.mubr.f32.mxu0 0.0
    %1556 = vmatmul.mubr.f32.gmra.mxu0 %v1487
    %v1557 = vpop.f32.mrf.mxu0
    %v1558 = vadd.f32 0.0, %v1557
    %v1559 = vpop.f32.mrf.mxu0
    %1560 = vmatprep.mubr.f32.mxu0 0.0
    %1561 = vmatmul.mubr.f32.gmra.mxu0 %v1489
    %v1562 = vpop.f32.mrf.mxu0
    %v1563 = vadd.f32 0.0, %v1562
    %v1564 = vpop.f32.mrf.mxu0
    %1565 = vdwg.mxu0
    %v1566 = vadd.f32 %v1479, %v1558
    %v1567 = vadd.f32 %v1480, %v1563
    %v1568 = vsel %vm136, %v1566, -inf
    %1569 = vmax.xlane.f32.xlu0 %v1568
    %v1570 = vpop.xlane.xlu0 %1569
    %v1571 = vsel %vm136, %v1567, -inf
    %1572 = vmax.xlane.f32.xlu0 %v1571
    %v1573 = vpop.xlane.xlu0 %1572
    %v1574 = vsub.f32 %v1566, %v1570
    %v1575 = vsub.f32 %v1567, %v1573
    %v1576 = vmul.f32 %v1574, 1.442695
    %v1577 = vpow.pop %v1576
    %v1578 = vmul.f32 %v1575, 1.442695
    %v1579 = vpow.pop %v1578
    %v1580 = vsel %vm136, %v1577, 0.0
    %1581 = vadd.xlane.f32.xlu0 %v1580
    %v1582 = vpop.xlane.xlu0 %1581
    %v1583 = vsel %vm136, %v1579, 0.0
    %1584 = vadd.xlane.f32.xlu0 %v1583
    %v1585 = vpop.xlane.xlu0 %1584
    %v1586 = vrcp.pop %v1582
    %v1587 = vmul.f32 %v1577, %v1586
    %v1588 = vrcp.pop %v1585
    %v1589 = vmul.f32 %v1579, %v1588
    %s1590 = scalar_lea.vmem %s10, 64
    %1591 = vst.msk [vmem:[%s1590] sm:$0xff] %vm136, %v1587
    %1592 = vst.msk [vmem:[%s1590 + $0x8] sm:$0xff] %vm136, %v1589
    %v1594 = vsel %vm136, %v1587, 0
    %v1597 = vsel %vm136, %v1589, 0
    %1599 = vmatprep.subr.mxu0 0.0
    %1600 = vmatpush1.msra.mxu0 0.0
    %1601 = vmatprep.subr.mxu0 0.0
    %1602 = vmatpush1.msra.mxu0 0.0
    %1603 = vmatprep.subr.mxu0 0.0
    %1604 = vmatpush1.msra.mxu0 0.0
    %1605 = vmatprep.subr.mxu0 0.0
    %1606 = vmatpush1.msra.mxu0 0.0
    %1607 = vmatprep.subr.mxu0 0.0
    %1608 = vmatpush1.msra.mxu0 0.0
    %1609 = vmatprep.subr.mxu0 0.0
    %1610 = vmatpush1.msra.mxu0 0.0
    %1611 = vmatprep.subr.mxu0 0.0
    %1612 = vmatpush1.msra.mxu0 0.0
    %1613 = vmatprep.subr.mxu0 0.0
    %1614 = vmatpush1.msra.mxu0 0.0
    %1615 = vmatprep.subr.mxu0 0.0
    %1616 = vmatpush1.msra.mxu0 0.0
    %1617 = vmatprep.subr.mxu0 0.0
    %1618 = vmatpush1.msra.mxu0 0.0
    %1619 = vmatprep.subr.mxu0 0.0
    %1620 = vmatpush1.msra.mxu0 0.0
    %1621 = vmatprep.subr.mxu0 0.0
    %1622 = vmatpush1.msra.mxu0 0.0
    %1623 = vmatprep.subr.mxu0 0.0
    %1624 = vmatpush1.msra.mxu0 0.0
    %1625 = vmatprep.subr.mxu0 0.0
    %1626 = vmatpush1.msra.mxu0 0.0
    %1627 = vmatprep.subr.mxu0 0.0
    %1628 = vmatpush1.msra.mxu0 0.0
    %1629 = vmatprep.subr.mxu0 0.0
    %1630 = vmatpush1.msra.mxu0 %v43
    %1631 = vmatprep.subr.mxu0 0.0
    %1632 = vmatpush2.msra.mxu0 0.0
    %1633 = vmatprep.subr.mxu0 0.0
    %1634 = vmatpush2.msra.mxu0 0.0
    %1635 = vmatprep.subr.mxu0 0.0
    %1636 = vmatpush2.msra.mxu0 0.0
    %1637 = vmatprep.subr.mxu0 0.0
    %1638 = vmatpush2.msra.mxu0 0.0
    %1639 = vmatprep.subr.mxu0 0.0
    %1640 = vmatpush2.msra.mxu0 0.0
    %1641 = vmatprep.subr.mxu0 0.0
    %1642 = vmatpush2.msra.mxu0 0.0
    %1643 = vmatprep.subr.mxu0 0.0
    %1644 = vmatpush2.msra.mxu0 0.0
    %1645 = vmatprep.subr.mxu0 0.0
    %1646 = vmatpush2.msra.mxu0 0.0
    %1647 = vmatprep.subr.mxu0 0.0
    %1648 = vmatpush2.msra.mxu0 0.0
    %1649 = vmatprep.subr.mxu0 0.0
    %1650 = vmatpush2.msra.mxu0 0.0
    %1651 = vmatprep.subr.mxu0 0.0
    %1652 = vmatpush2.msra.mxu0 0.0
    %1653 = vmatprep.subr.mxu0 0.0
    %1654 = vmatpush2.msra.mxu0 0.0
    %1655 = vmatprep.subr.mxu0 0.0
    %1656 = vmatpush2.msra.mxu0 0.0
    %1657 = vmatprep.subr.mxu0 0.0
    %1658 = vmatpush2.msra.mxu0 0.0
    %1659 = vmatprep.subr.mxu0 0.0
    %1660 = vmatpush2.msra.mxu0 0.0
    %1661 = vmatprep.subr.mxu0 0.0
    %1662 = vmatpush2.msra.mxu0 0.0
    %1663 = vmatprep.mubr.f32.mxu0 0.0
    %1664 = vmatmul.mubr.f32.gmra.mxu0 %v1594
    %v1665 = vpop.f32.mrf.mxu0
    %v1666 = vadd.f32 0.0, %v1665
    %v1667 = vpop.f32.mrf.mxu0
    %1668 = vmatprep.mubr.f32.mxu0 0.0
    %1669 = vmatmul.mubr.f32.gmra.mxu0 %v1597
    %v1670 = vpop.f32.mrf.mxu0
    %v1671 = vadd.f32 0.0, %v1670
    %v1672 = vpop.f32.mrf.mxu0
    %1673 = vdwg.mxu0
    %1676 = vrot.lane.b32.xlu0 %v1666, 8
    %v1677 = vpop.permute.xlu0 %1676
    %1678 = vrot.lane.b32.xlu0 %v1671, 8
    %v1679 = vpop.permute.xlu0 %1678
    %v1682 = vadd.f32 %v1479, %v1677
    %v1683 = vadd.f32 %v1480, %v1679
    %v1684 = vmax.f32 %v1682, 0.0
    %v1685 = vmax.f32 %v1683, 0.0
    %1688 = vrot.lane.b32.xlu0 %v1684, 120
    %v1689 = vpop.permute.xlu0 %1688
    %1690 = vrot.lane.b32.xlu0 %v1685, 120
    %v1691 = vpop.permute.xlu0 %1690
    %v1692 = vsel %vm52, %v1689, 0
    %v1694 = vsel %vm52, %v1691, 0
    %1696 = vmatprep.subr.mxu0 0.0
    %1697 = vmatpush1.msra.mxu0 0.0
    %1698 = vmatprep.subr.mxu0 0.0
    %1699 = vmatpush1.msra.mxu0 0.0
    %1700 = vmatprep.subr.mxu0 0.0
    %1701 = vmatpush1.msra.mxu0 0.0
    %1702 = vmatprep.subr.mxu0 0.0
    %1703 = vmatpush1.msra.mxu0 0.0
    %1704 = vmatprep.subr.mxu0 0.0
    %1705 = vmatpush1.msra.mxu0 0.0
    %1706 = vmatprep.subr.mxu0 0.0
    %1707 = vmatpush1.msra.mxu0 0.0
    %1708 = vmatprep.subr.mxu0 0.0
    %1709 = vmatpush1.msra.mxu0 0.0
    %1710 = vmatprep.subr.mxu0 0.0
    %1711 = vmatpush1.msra.mxu0 0.0
    %1712 = vmatprep.subr.mxu0 0.0
    %1713 = vmatpush1.msra.mxu0 0.0
    %1714 = vmatprep.subr.mxu0 0.0
    %1715 = vmatpush1.msra.mxu0 0.0
    %1716 = vmatprep.subr.mxu0 0.0
    %1717 = vmatpush1.msra.mxu0 0.0
    %1718 = vmatprep.subr.mxu0 0.0
    %1719 = vmatpush1.msra.mxu0 0.0
    %1720 = vmatprep.subr.mxu0 0.0
    %1721 = vmatpush1.msra.mxu0 %v47
    %1722 = vmatprep.subr.mxu0 0.0
    %1723 = vmatpush1.msra.mxu0 %v46
    %1724 = vmatprep.subr.mxu0 0.0
    %1725 = vmatpush1.msra.mxu0 %v45
    %1726 = vmatprep.subr.mxu0 0.0
    %1727 = vmatpush1.msra.mxu0 %v44
    %1728 = vmatprep.subr.mxu0 0.0
    %1729 = vmatpush2.msra.mxu0 0.0
    %1730 = vmatprep.subr.mxu0 0.0
    %1731 = vmatpush2.msra.mxu0 0.0
    %1732 = vmatprep.subr.mxu0 0.0
    %1733 = vmatpush2.msra.mxu0 0.0
    %1734 = vmatprep.subr.mxu0 0.0
    %1735 = vmatpush2.msra.mxu0 0.0
    %1736 = vmatprep.subr.mxu0 0.0
    %1737 = vmatpush2.msra.mxu0 0.0
    %1738 = vmatprep.subr.mxu0 0.0
    %1739 = vmatpush2.msra.mxu0 0.0
    %1740 = vmatprep.subr.mxu0 0.0
    %1741 = vmatpush2.msra.mxu0 0.0
    %1742 = vmatprep.subr.mxu0 0.0
    %1743 = vmatpush2.msra.mxu0 0.0
    %1744 = vmatprep.subr.mxu0 0.0
    %1745 = vmatpush2.msra.mxu0 0.0
    %1746 = vmatprep.subr.mxu0 0.0
    %1747 = vmatpush2.msra.mxu0 0.0
    %1748 = vmatprep.subr.mxu0 0.0
    %1749 = vmatpush2.msra.mxu0 0.0
    %1750 = vmatprep.subr.mxu0 0.0
    %1751 = vmatpush2.msra.mxu0 0.0
    %1752 = vmatprep.subr.mxu0 0.0
    %1753 = vmatpush2.msra.mxu0 0.0
    %1754 = vmatprep.subr.mxu0 0.0
    %1755 = vmatpush2.msra.mxu0 0.0
    %1756 = vmatprep.subr.mxu0 0.0
    %1757 = vmatpush2.msra.mxu0 0.0
    %1758 = vmatprep.subr.mxu0 0.0
    %1759 = vmatpush2.msra.mxu0 0.0
    %1760 = vmatprep.mubr.f32.mxu0 0.0
    %1761 = vmatmul.mubr.f32.gmra.mxu0 %v1692
    %v1762 = vpop.f32.mrf.mxu0
    %v1763 = vadd.f32 %v258, %v1762
    %v1764 = vpop.f32.mrf.mxu0
    %1765 = vmatprep.mubr.f32.mxu0 0.0
    %1766 = vmatmul.mubr.f32.gmra.mxu0 %v1694
    %v1767 = vpop.f32.mrf.mxu0
    %v1768 = vadd.f32 %v258, %v1767
    %v1769 = vpop.f32.mrf.mxu0
    %1770 = vdwg.mxu0
    %v1771 = vadd.f32 %v1558, %v351
    %v1772 = vadd.f32 %v1563, %v351
    %1775 = vrot.lane.b32.xlu0 %v1771, 120
    %v1776 = vpop.permute.xlu0 %1775
    %1777 = vrot.lane.b32.xlu0 %v1772, 120
    %v1778 = vpop.permute.xlu0 %1777
    %v1781 = vadd.f32 %v1763, %v1776
    %v1782 = vadd.f32 %v1768, %v1778
    %v1783 = vxor.u32 %v1781, 2147483648
    %v1784 = vxor.u32 %v1782, 2147483648
    %v1785 = vmul.f32 %v1783, 1.442695
    %v1786 = vpow.pop %v1785
    %v1787 = vmul.f32 %v1784, 1.442695
    %v1788 = vpow.pop %v1787
    %v1789 = vadd.f32 %v1786, 1.0
    %v1790 = vadd.f32 %v1788, 1.0
    %v1791 = vrcp.pop %v1789
    %v1792 = vmul.f32 1.0, %v1791
    %v1793 = vrcp.pop %v1790
    %v1794 = vmul.f32 1.0, %v1793
    %1795 = vrot.lane.b32.xlu0 %v1771, 56
    %v1796 = vpop.permute.xlu0 %1795
    %1797 = vrot.lane.b32.xlu0 %v1772, 56
    %v1798 = vpop.permute.xlu0 %1797
    %v1801 = vmul.f32 %v1792, %v1796
    %v1802 = vmul.f32 %v1794, %v1798
    %1805 = vrot.lane.b32.xlu0 %v1801, 64
    %v1806 = vpop.permute.xlu0 %1805
    %1807 = vrot.lane.b32.xlu0 %v1802, 64
    %v1808 = vpop.permute.xlu0 %1807
    %v1811 = vadd.f32 %v1763, %v1806
    %v1812 = vadd.f32 %v1768, %v1808
    %v1813 = vtanh.pop %v1811
    %v1814 = vtanh.pop %v1812
    %v1815 = vsub.f32 1.0, %v1792
    %v1816 = vsub.f32 1.0, %v1794
    %1819 = vrot.lane.b32.xlu0 %v1813, 96
    %v1820 = vpop.permute.xlu0 %1819
    %1821 = vrot.lane.b32.xlu0 %v1814, 96
    %v1822 = vpop.permute.xlu0 %1821
    %v1825 = vmul.f32 %v1815, %v1820
    %v1826 = vmul.f32 %v1816, %v1822
    %v1827 = vmul.f32 %v1792, %v1476
    %v1828 = vmul.f32 %v1794, %v1477
    %v1829 = vadd.f32 %v1825, %v1827
    %v1830 = vadd.f32 %v1826, %v1828
    %s1831 = scalar_lea.vmem %s1, 80
    %v1832 = vld [vmem:[%s1831] sm:$0xff]
    %v1833 = vld [vmem:[%s1831 + $0x8] sm:$0xff]
    %1836 = vrot.lane.b32.xlu0 %v1829, 96
    %v1837 = vpop.permute.xlu0 %1836
    %1838 = vrot.lane.b32.xlu0 %v1830, 96
    %v1839 = vpop.permute.xlu0 %1838
    %v1840 = vsel %vm52, %v1837, 0
    %v1842 = vsel %vm52, %v1839, 0
    %1844 = vmatprep.subr.mxu0 0.0
    %1845 = vmatpush1.msra.mxu0 0.0
    %1846 = vmatprep.subr.mxu0 0.0
    %1847 = vmatpush1.msra.mxu0 0.0
    %1848 = vmatprep.subr.mxu0 0.0
    %1849 = vmatpush1.msra.mxu0 0.0
    %1850 = vmatprep.subr.mxu0 0.0
    %1851 = vmatpush1.msra.mxu0 0.0
    %1852 = vmatprep.subr.mxu0 0.0
    %1853 = vmatpush1.msra.mxu0 0.0
    %1854 = vmatprep.subr.mxu0 0.0
    %1855 = vmatpush1.msra.mxu0 0.0
    %1856 = vmatprep.subr.mxu0 0.0
    %1857 = vmatpush1.msra.mxu0 0.0
    %1858 = vmatprep.subr.mxu0 0.0
    %1859 = vmatpush1.msra.mxu0 0.0
    %1860 = vmatprep.subr.mxu0 0.0
    %1861 = vmatpush1.msra.mxu0 0.0
    %1862 = vmatprep.subr.mxu0 0.0
    %1863 = vmatpush1.msra.mxu0 0.0
    %1864 = vmatprep.subr.mxu0 0.0
    %1865 = vmatpush1.msra.mxu0 0.0
    %1866 = vmatprep.subr.mxu0 0.0
    %1867 = vmatpush1.msra.mxu0 0.0
    %1868 = vmatprep.subr.mxu0 0.0
    %1869 = vmatpush1.msra.mxu0 %v42
    %1870 = vmatprep.subr.mxu0 0.0
    %1871 = vmatpush1.msra.mxu0 %v41
    %1872 = vmatprep.subr.mxu0 0.0
    %1873 = vmatpush1.msra.mxu0 %v40
    %1874 = vmatprep.subr.mxu0 0.0
    %1875 = vmatpush1.msra.mxu0 %v39
    %1876 = vmatprep.subr.mxu0 0.0
    %1877 = vmatpush2.msra.mxu0 0.0
    %1878 = vmatprep.subr.mxu0 0.0
    %1879 = vmatpush2.msra.mxu0 0.0
    %1880 = vmatprep.subr.mxu0 0.0
    %1881 = vmatpush2.msra.mxu0 0.0
    %1882 = vmatprep.subr.mxu0 0.0
    %1883 = vmatpush2.msra.mxu0 0.0
    %1884 = vmatprep.subr.mxu0 0.0
    %1885 = vmatpush2.msra.mxu0 0.0
    %1886 = vmatprep.subr.mxu0 0.0
    %1887 = vmatpush2.msra.mxu0 0.0
    %1888 = vmatprep.subr.mxu0 0.0
    %1889 = vmatpush2.msra.mxu0 0.0
    %1890 = vmatprep.subr.mxu0 0.0
    %1891 = vmatpush2.msra.mxu0 0.0
    %1892 = vmatprep.subr.mxu0 0.0
    %1893 = vmatpush2.msra.mxu0 0.0
    %1894 = vmatprep.subr.mxu0 0.0
    %1895 = vmatpush2.msra.mxu0 0.0
    %1896 = vmatprep.subr.mxu0 0.0
    %1897 = vmatpush2.msra.mxu0 0.0
    %1898 = vmatprep.subr.mxu0 0.0
    %1899 = vmatpush2.msra.mxu0 0.0
    %1900 = vmatprep.subr.mxu0 0.0
    %1901 = vmatpush2.msra.mxu0 0.0
    %1902 = vmatprep.subr.mxu0 0.0
    %1903 = vmatpush2.msra.mxu0 0.0
    %1904 = vmatprep.subr.mxu0 0.0
    %1905 = vmatpush2.msra.mxu0 0.0
    %1906 = vmatprep.subr.mxu0 0.0
    %1907 = vmatpush2.msra.mxu0 0.0
    %1908 = vmatprep.mubr.f32.mxu0 0.0
    %1909 = vmatmul.mubr.f32.gmra.mxu0 %v1840
    %v1910 = vpop.f32.mrf.mxu0
    %v1911 = vadd.f32 0.0, %v1910
    %v1912 = vpop.f32.mrf.mxu0
    %1913 = vmatprep.mubr.f32.mxu0 0.0
    %1914 = vmatmul.mubr.f32.gmra.mxu0 %v1842
    %v1915 = vpop.f32.mrf.mxu0
    %v1916 = vadd.f32 0.0, %v1915
    %v1917 = vpop.f32.mrf.mxu0
    %1918 = vdwg.mxu0
    %v1919 = vadd.f32 %v1832, %v1911
    %v1920 = vadd.f32 %v1833, %v1916
    %v1921 = vsel %vm136, %v1919, -inf
    %1922 = vmax.xlane.f32.xlu0 %v1921
    %v1923 = vpop.xlane.xlu0 %1922
    %v1924 = vsel %vm136, %v1920, -inf
    %1925 = vmax.xlane.f32.xlu0 %v1924
    %v1926 = vpop.xlane.xlu0 %1925
    %v1927 = vsub.f32 %v1919, %v1923
    %v1928 = vsub.f32 %v1920, %v1926
    %v1929 = vmul.f32 %v1927, 1.442695
    %v1930 = vpow.pop %v1929
    %v1931 = vmul.f32 %v1928, 1.442695
    %v1932 = vpow.pop %v1931
    %v1933 = vsel %vm136, %v1930, 0.0
    %1934 = vadd.xlane.f32.xlu0 %v1933
    %v1935 = vpop.xlane.xlu0 %1934
    %v1936 = vsel %vm136, %v1932, 0.0
    %1937 = vadd.xlane.f32.xlu0 %v1936
    %v1938 = vpop.xlane.xlu0 %1937
    %v1939 = vrcp.pop %v1935
    %v1940 = vmul.f32 %v1930, %v1939
    %v1941 = vrcp.pop %v1938
    %v1942 = vmul.f32 %v1932, %v1941
    %s1943 = scalar_lea.vmem %s10, 80
    %1944 = vst.msk [vmem:[%s1943] sm:$0xff] %vm136, %v1940
    %1945 = vst.msk [vmem:[%s1943 + $0x8] sm:$0xff] %vm136, %v1942
    %v1947 = vsel %vm136, %v1940, 0
    %v1950 = vsel %vm136, %v1942, 0
    %1952 = vmatprep.subr.mxu0 0.0
    %1953 = vmatpush1.msra.mxu0 0.0
    %1954 = vmatprep.subr.mxu0 0.0
    %1955 = vmatpush1.msra.mxu0 0.0
    %1956 = vmatprep.subr.mxu0 0.0
    %1957 = vmatpush1.msra.mxu0 0.0
    %1958 = vmatprep.subr.mxu0 0.0
    %1959 = vmatpush1.msra.mxu0 0.0
    %1960 = vmatprep.subr.mxu0 0.0
    %1961 = vmatpush1.msra.mxu0 0.0
    %1962 = vmatprep.subr.mxu0 0.0
    %1963 = vmatpush1.msra.mxu0 0.0
    %1964 = vmatprep.subr.mxu0 0.0
    %1965 = vmatpush1.msra.mxu0 0.0
    %1966 = vmatprep.subr.mxu0 0.0
    %1967 = vmatpush1.msra.mxu0 0.0
    %1968 = vmatprep.subr.mxu0 0.0
    %1969 = vmatpush1.msra.mxu0 0.0
    %1970 = vmatprep.subr.mxu0 0.0
    %1971 = vmatpush1.msra.mxu0 0.0
    %1972 = vmatprep.subr.mxu0 0.0
    %1973 = vmatpush1.msra.mxu0 0.0
    %1974 = vmatprep.subr.mxu0 0.0
    %1975 = vmatpush1.msra.mxu0 0.0
    %1976 = vmatprep.subr.mxu0 0.0
    %1977 = vmatpush1.msra.mxu0 0.0
    %1978 = vmatprep.subr.mxu0 0.0
    %1979 = vmatpush1.msra.mxu0 0.0
    %1980 = vmatprep.subr.mxu0 0.0
    %1981 = vmatpush1.msra.mxu0 0.0
    %1982 = vmatprep.subr.mxu0 0.0
    %1983 = vmatpush1.msra.mxu0 %v43
    %1984 = vmatprep.subr.mxu0 0.0
    %1985 = vmatpush2.msra.mxu0 0.0
    %1986 = vmatprep.subr.mxu0 0.0
    %1987 = vmatpush2.msra.mxu0 0.0
    %1988 = vmatprep.subr.mxu0 0.0
    %1989 = vmatpush2.msra.mxu0 0.0
    %1990 = vmatprep.subr.mxu0 0.0
    %1991 = vmatpush2.msra.mxu0 0.0
    %1992 = vmatprep.subr.mxu0 0.0
    %1993 = vmatpush2.msra.mxu0 0.0
    %1994 = vmatprep.subr.mxu0 0.0
    %1995 = vmatpush2.msra.mxu0 0.0
    %1996 = vmatprep.subr.mxu0 0.0
    %1997 = vmatpush2.msra.mxu0 0.0
    %1998 = vmatprep.subr.mxu0 0.0
    %1999 = vmatpush2.msra.mxu0 0.0
    %2000 = vmatprep.subr.mxu0 0.0
    %2001 = vmatpush2.msra.mxu0 0.0
    %2002 = vmatprep.subr.mxu0 0.0
    %2003 = vmatpush2.msra.mxu0 0.0
    %2004 = vmatprep.subr.mxu0 0.0
    %2005 = vmatpush2.msra.mxu0 0.0
    %2006 = vmatprep.subr.mxu0 0.0
    %2007 = vmatpush2.msra.mxu0 0.0
    %2008 = vmatprep.subr.mxu0 0.0
    %2009 = vmatpush2.msra.mxu0 0.0
    %2010 = vmatprep.subr.mxu0 0.0
    %2011 = vmatpush2.msra.mxu0 0.0
    %2012 = vmatprep.subr.mxu0 0.0
    %2013 = vmatpush2.msra.mxu0 0.0
    %2014 = vmatprep.subr.mxu0 0.0
    %2015 = vmatpush2.msra.mxu0 0.0
    %2016 = vmatprep.mubr.f32.mxu0 0.0
    %2017 = vmatmul.mubr.f32.gmra.mxu0 %v1947
    %v2018 = vpop.f32.mrf.mxu0
    %v2019 = vadd.f32 0.0, %v2018
    %v2020 = vpop.f32.mrf.mxu0
    %2021 = vmatprep.mubr.f32.mxu0 0.0
    %2022 = vmatmul.mubr.f32.gmra.mxu0 %v1950
    %v2023 = vpop.f32.mrf.mxu0
    %v2024 = vadd.f32 0.0, %v2023
    %v2025 = vpop.f32.mrf.mxu0
    %2026 = vdwg.mxu0
    %2029 = vrot.lane.b32.xlu0 %v2019, 8
    %v2030 = vpop.permute.xlu0 %2029
    %2031 = vrot.lane.b32.xlu0 %v2024, 8
    %v2032 = vpop.permute.xlu0 %2031
    %v2035 = vadd.f32 %v1832, %v2030
    %v2036 = vadd.f32 %v1833, %v2032
    %v2037 = vmax.f32 %v2035, 0.0
    %v2038 = vmax.f32 %v2036, 0.0
    %2041 = vrot.lane.b32.xlu0 %v2037, 120
    %v2042 = vpop.permute.xlu0 %2041
    %2043 = vrot.lane.b32.xlu0 %v2038, 120
    %v2044 = vpop.permute.xlu0 %2043
    %v2045 = vsel %vm52, %v2042, 0
    %v2047 = vsel %vm52, %v2044, 0
    %2049 = vmatprep.subr.mxu0 0.0
    %2050 = vmatpush1.msra.mxu0 0.0
    %2051 = vmatprep.subr.mxu0 0.0
    %2052 = vmatpush1.msra.mxu0 0.0
    %2053 = vmatprep.subr.mxu0 0.0
    %2054 = vmatpush1.msra.mxu0 0.0
    %2055 = vmatprep.subr.mxu0 0.0
    %2056 = vmatpush1.msra.mxu0 0.0
    %2057 = vmatprep.subr.mxu0 0.0
    %2058 = vmatpush1.msra.mxu0 0.0
    %2059 = vmatprep.subr.mxu0 0.0
    %2060 = vmatpush1.msra.mxu0 0.0
    %2061 = vmatprep.subr.mxu0 0.0
    %2062 = vmatpush1.msra.mxu0 0.0
    %2063 = vmatprep.subr.mxu0 0.0
    %2064 = vmatpush1.msra.mxu0 0.0
    %2065 = vmatprep.subr.mxu0 0.0
    %2066 = vmatpush1.msra.mxu0 0.0
    %2067 = vmatprep.subr.mxu0 0.0
    %2068 = vmatpush1.msra.mxu0 0.0
    %2069 = vmatprep.subr.mxu0 0.0
    %2070 = vmatpush1.msra.mxu0 0.0
    %2071 = vmatprep.subr.mxu0 0.0
    %2072 = vmatpush1.msra.mxu0 0.0
    %2073 = vmatprep.subr.mxu0 0.0
    %2074 = vmatpush1.msra.mxu0 %v47
    %2075 = vmatprep.subr.mxu0 0.0
    %2076 = vmatpush1.msra.mxu0 %v46
    %2077 = vmatprep.subr.mxu0 0.0
    %2078 = vmatpush1.msra.mxu0 %v45
    %2079 = vmatprep.subr.mxu0 0.0
    %2080 = vmatpush1.msra.mxu0 %v44
    %2081 = vmatprep.subr.mxu0 0.0
    %2082 = vmatpush2.msra.mxu0 0.0
    %2083 = vmatprep.subr.mxu0 0.0
    %2084 = vmatpush2.msra.mxu0 0.0
    %2085 = vmatprep.subr.mxu0 0.0
    %2086 = vmatpush2.msra.mxu0 0.0
    %2087 = vmatprep.subr.mxu0 0.0
    %2088 = vmatpush2.msra.mxu0 0.0
    %2089 = vmatprep.subr.mxu0 0.0
    %2090 = vmatpush2.msra.mxu0 0.0
    %2091 = vmatprep.subr.mxu0 0.0
    %2092 = vmatpush2.msra.mxu0 0.0
    %2093 = vmatprep.subr.mxu0 0.0
    %2094 = vmatpush2.msra.mxu0 0.0
    %2095 = vmatprep.subr.mxu0 0.0
    %2096 = vmatpush2.msra.mxu0 0.0
    %2097 = vmatprep.subr.mxu0 0.0
    %2098 = vmatpush2.msra.mxu0 0.0
    %2099 = vmatprep.subr.mxu0 0.0
    %2100 = vmatpush2.msra.mxu0 0.0
    %2101 = vmatprep.subr.mxu0 0.0
    %2102 = vmatpush2.msra.mxu0 0.0
    %2103 = vmatprep.subr.mxu0 0.0
    %2104 = vmatpush2.msra.mxu0 0.0
    %2105 = vmatprep.subr.mxu0 0.0
    %2106 = vmatpush2.msra.mxu0 0.0
    %2107 = vmatprep.subr.mxu0 0.0
    %2108 = vmatpush2.msra.mxu0 0.0
    %2109 = vmatprep.subr.mxu0 0.0
    %2110 = vmatpush2.msra.mxu0 0.0
    %2111 = vmatprep.subr.mxu0 0.0
    %2112 = vmatpush2.msra.mxu0 0.0
    %2113 = vmatprep.mubr.f32.mxu0 0.0
    %2114 = vmatmul.mubr.f32.gmra.mxu0 %v2045
    %v2115 = vpop.f32.mrf.mxu0
    %v2116 = vadd.f32 %v258, %v2115
    %v2117 = vpop.f32.mrf.mxu0
    %2118 = vmatprep.mubr.f32.mxu0 0.0
    %2119 = vmatmul.mubr.f32.gmra.mxu0 %v2047
    %v2120 = vpop.f32.mrf.mxu0
    %v2121 = vadd.f32 %v258, %v2120
    %v2122 = vpop.f32.mrf.mxu0
    %2123 = vdwg.mxu0
    %v2124 = vadd.f32 %v1911, %v351
    %v2125 = vadd.f32 %v1916, %v351
    %2128 = vrot.lane.b32.xlu0 %v2124, 120
    %v2129 = vpop.permute.xlu0 %2128
    %2130 = vrot.lane.b32.xlu0 %v2125, 120
    %v2131 = vpop.permute.xlu0 %2130
    %v2134 = vadd.f32 %v2116, %v2129
    %v2135 = vadd.f32 %v2121, %v2131
    %v2136 = vxor.u32 %v2134, 2147483648
    %v2137 = vxor.u32 %v2135, 2147483648
    %v2138 = vmul.f32 %v2136, 1.442695
    %v2139 = vpow.pop %v2138
    %v2140 = vmul.f32 %v2137, 1.442695
    %v2141 = vpow.pop %v2140
    %v2142 = vadd.f32 %v2139, 1.0
    %v2143 = vadd.f32 %v2141, 1.0
    %v2144 = vrcp.pop %v2142
    %v2145 = vmul.f32 1.0, %v2144
    %v2146 = vrcp.pop %v2143
    %v2147 = vmul.f32 1.0, %v2146
    %2148 = vrot.lane.b32.xlu0 %v2124, 56
    %v2149 = vpop.permute.xlu0 %2148
    %2150 = vrot.lane.b32.xlu0 %v2125, 56
    %v2151 = vpop.permute.xlu0 %2150
    %v2154 = vmul.f32 %v2145, %v2149
    %v2155 = vmul.f32 %v2147, %v2151
    %2158 = vrot.lane.b32.xlu0 %v2154, 64
    %v2159 = vpop.permute.xlu0 %2158
    %2160 = vrot.lane.b32.xlu0 %v2155, 64
    %v2161 = vpop.permute.xlu0 %2160
    %v2164 = vadd.f32 %v2116, %v2159
    %v2165 = vadd.f32 %v2121, %v2161
    %v2166 = vtanh.pop %v2164
    %v2167 = vtanh.pop %v2165
    %v2168 = vsub.f32 1.0, %v2145
    %v2169 = vsub.f32 1.0, %v2147
    %2172 = vrot.lane.b32.xlu0 %v2166, 96
    %v2173 = vpop.permute.xlu0 %2172
    %2174 = vrot.lane.b32.xlu0 %v2167, 96
    %v2175 = vpop.permute.xlu0 %2174
    %v2178 = vmul.f32 %v2168, %v2173
    %v2179 = vmul.f32 %v2169, %v2175
    %v2180 = vmul.f32 %v2145, %v1829
    %v2181 = vmul.f32 %v2147, %v1830
    %v2182 = vadd.f32 %v2178, %v2180
    %v2183 = vadd.f32 %v2179, %v2181
    %2186 = vrot.lane.b32.xlu0 %v2182, 96
    %v2187 = vpop.permute.xlu0 %2186
    %2188 = vrot.lane.b32.xlu0 %v2183, 96
    %v2189 = vpop.permute.xlu0 %2188
    %2192 = vst.msk [vmem:[#allocation4] sm:$0xff] %vm52, %v2187
    %2193 = vst.msk [vmem:[#allocation4 + $0x8] sm:$0xff] %vm52, %v2189
    %v2194 = vld [vmem:[%s7] sm:$0xff]
    %v2195 = vld [vmem:[%s7 + $0x8] sm:$0xff]
    %v2196 = vld [vmem:[%s7 + $0x10] sm:$0xff]
    %v2197 = vld [vmem:[%s7 + $0x18] sm:$0xff]
    %v2198 = vld [vmem:[%s8] sm:$0x1]
    %v2200 = vlaneseq
    %v2201 = vshrl.u32 %v2200, 7
    %v2202 = vsub.s32 0, %v2201
    %v2203 = vrot.slane %v2198, %v2202
    %v2205 = vsel %vm52, %v2187, 0
    %v2207 = vsel %vm52, %v2189, 0
    %2209 = vmatprep.subr.mxu0 0.0
    %2210 = vmatpush1.msra.mxu0 0.0
    %2211 = vmatprep.subr.mxu0 0.0
    %2212 = vmatpush1.msra.mxu0 0.0
    %2213 = vmatprep.subr.mxu0 0.0
    %2214 = vmatpush1.msra.mxu0 0.0
    %2215 = vmatprep.subr.mxu0 0.0
    %2216 = vmatpush1.msra.mxu0 0.0
    %2217 = vmatprep.subr.mxu0 0.0
    %2218 = vmatpush1.msra.mxu0 0.0
    %2219 = vmatprep.subr.mxu0 0.0
    %2220 = vmatpush1.msra.mxu0 0.0
    %2221 = vmatprep.subr.mxu0 0.0
    %2222 = vmatpush1.msra.mxu0 0.0
    %2223 = vmatprep.subr.mxu0 0.0
    %2224 = vmatpush1.msra.mxu0 0.0
    %2225 = vmatprep.subr.mxu0 0.0
    %2226 = vmatpush1.msra.mxu0 0.0
    %2227 = vmatprep.subr.mxu0 0.0
    %2228 = vmatpush1.msra.mxu0 0.0
    %2229 = vmatprep.subr.mxu0 0.0
    %2230 = vmatpush1.msra.mxu0 0.0
    %2231 = vmatprep.subr.mxu0 0.0
    %2232 = vmatpush1.msra.mxu0 0.0
    %2233 = vmatprep.subr.mxu0 0.0
    %2234 = vmatpush1.msra.mxu0 %v2197
    %2235 = vmatprep.subr.mxu0 0.0
    %2236 = vmatpush1.msra.mxu0 %v2196
    %2237 = vmatprep.subr.mxu0 0.0
    %2238 = vmatpush1.msra.mxu0 %v2195
    %2239 = vmatprep.subr.mxu0 0.0
    %2240 = vmatpush1.msra.mxu0 %v2194
    %2241 = vmatprep.subr.mxu0 0.0
    %2242 = vmatpush2.msra.mxu0 0.0
    %2243 = vmatprep.subr.mxu0 0.0
    %2244 = vmatpush2.msra.mxu0 0.0
    %2245 = vmatprep.subr.mxu0 0.0
    %2246 = vmatpush2.msra.mxu0 0.0
    %2247 = vmatprep.subr.mxu0 0.0
    %2248 = vmatpush2.msra.mxu0 0.0
    %2249 = vmatprep.subr.mxu0 0.0
    %2250 = vmatpush2.msra.mxu0 0.0
    %2251 = vmatprep.subr.mxu0 0.0
    %2252 = vmatpush2.msra.mxu0 0.0
    %2253 = vmatprep.subr.mxu0 0.0
    %2254 = vmatpush2.msra.mxu0 0.0
    %2255 = vmatprep.subr.mxu0 0.0
    %2256 = vmatpush2.msra.mxu0 0.0
    %2257 = vmatprep.subr.mxu0 0.0
    %2258 = vmatpush2.msra.mxu0 0.0
    %2259 = vmatprep.subr.mxu0 0.0
    %2260 = vmatpush2.msra.mxu0 0.0
    %2261 = vmatprep.subr.mxu0 0.0
    %2262 = vmatpush2.msra.mxu0 0.0
    %2263 = vmatprep.subr.mxu0 0.0
    %2264 = vmatpush2.msra.mxu0 0.0
    %2265 = vmatprep.subr.mxu0 0.0
    %2266 = vmatpush2.msra.mxu0 0.0
    %2267 = vmatprep.subr.mxu0 0.0
    %2268 = vmatpush2.msra.mxu0 0.0
    %2269 = vmatprep.subr.mxu0 0.0
    %2270 = vmatpush2.msra.mxu0 0.0
    %2271 = vmatprep.subr.mxu0 0.0
    %2272 = vmatpush2.msra.mxu0 0.0
    %2273 = vmatprep.mubr.f32.mxu0 0.0
    %2274 = vmatmul.mubr.f32.gmra.mxu0 %v428
    %v2275 = vpop.f32.mrf.mxu0
    %v2276 = vadd.f32 %v2203, %v2275
    %v2277 = vpop.f32.mrf.mxu0
    %2278 = vmatprep.mubr.f32.mxu0 0.0
    %2279 = vmatmul.mubr.f32.gmra.mxu0 %v430
    %v2280 = vpop.f32.mrf.mxu0
    %v2281 = vadd.f32 %v2203, %v2280
    %v2282 = vpop.f32.mrf.mxu0
    %2283 = vmatprep.mubr.f32.mxu0 0.0
    %2284 = vmatmul.mubr.f32.gmra.mxu0 %v781
    %v2285 = vpop.f32.mrf.mxu0
    %v2286 = vadd.f32 %v2203, %v2285
    %v2287 = vpop.f32.mrf.mxu0
    %2288 = vmatprep.mubr.f32.mxu0 0.0
    %2289 = vmatmul.mubr.f32.gmra.mxu0 %v783
    %v2290 = vpop.f32.mrf.mxu0
    %v2291 = vadd.f32 %v2203, %v2290
    %v2292 = vpop.f32.mrf.mxu0
    %2293 = vmatprep.mubr.f32.mxu0 0.0
    %2294 = vmatmul.mubr.f32.gmra.mxu0 %v1134
    %v2295 = vpop.f32.mrf.mxu0
    %v2296 = vadd.f32 %v2203, %v2295
    %v2297 = vpop.f32.mrf.mxu0
    %2298 = vmatprep.mubr.f32.mxu0 0.0
    %2299 = vmatmul.mubr.f32.gmra.mxu0 %v1136
    %v2300 = vpop.f32.mrf.mxu0
    %v2301 = vadd.f32 %v2203, %v2300
    %v2302 = vpop.f32.mrf.mxu0
    %2303 = vmatprep.mubr.f32.mxu0 0.0
    %2304 = vmatmul.mubr.f32.gmra.mxu0 %v1487
    %v2305 = vpop.f32.mrf.mxu0
    %v2306 = vadd.f32 %v2203, %v2305
    %v2307 = vpop.f32.mrf.mxu0
    %2308 = vmatprep.mubr.f32.mxu0 0.0
    %2309 = vmatmul.mubr.f32.gmra.mxu0 %v1489
    %v2310 = vpop.f32.mrf.mxu0
    %v2311 = vadd.f32 %v2203, %v2310
    %v2312 = vpop.f32.mrf.mxu0
    %2313 = vmatprep.mubr.f32.mxu0 0.0
    %2314 = vmatmul.mubr.f32.gmra.mxu0 %v1840
    %v2315 = vpop.f32.mrf.mxu0
    %v2316 = vadd.f32 %v2203, %v2315
    %v2317 = vpop.f32.mrf.mxu0
    %2318 = vmatprep.mubr.f32.mxu0 0.0
    %2319 = vmatmul.mubr.f32.gmra.mxu0 %v1842
    %v2320 = vpop.f32.mrf.mxu0
    %v2321 = vadd.f32 %v2203, %v2320
    %v2322 = vpop.f32.mrf.mxu0
    %2323 = vmatprep.mubr.f32.mxu0 0.0
    %2324 = vmatmul.mubr.f32.gmra.mxu0 %v2205
    %v2325 = vpop.f32.mrf.mxu0
    %v2326 = vadd.f32 %v2203, %v2325
    %v2327 = vpop.f32.mrf.mxu0
    %2328 = vmatprep.mubr.f32.mxu0 0.0
    %2329 = vmatmul.mubr.f32.gmra.mxu0 %v2207
    %v2330 = vpop.f32.mrf.mxu0
    %v2331 = vadd.f32 %v2203, %v2330
    %v2332 = vpop.f32.mrf.mxu0
    %2333 = vdwg.mxu0
    %vm2334 = vcmask 130048
    %v2335 = vsel %vm2334, %v2276, -inf
    %2336 = vmax.xlane.f32.xlu0 %v2335
    %v2337 = vpop.xlane.xlu0 %2336
    %v2338 = vsel %vm2334, %v2281, -inf
    %2339 = vmax.xlane.f32.xlu0 %v2338
    %v2340 = vpop.xlane.xlu0 %2339
    %v2341 = vsel %vm2334, %v2286, -inf
    %2342 = vmax.xlane.f32.xlu0 %v2341
    %v2343 = vpop.xlane.xlu0 %2342
    %v2344 = vsel %vm2334, %v2291, -inf
    %2345 = vmax.xlane.f32.xlu0 %v2344
    %v2346 = vpop.xlane.xlu0 %2345
    %v2347 = vsel %vm2334, %v2296, -inf
    %2348 = vmax.xlane.f32.xlu0 %v2347
    %v2349 = vpop.xlane.xlu0 %2348
    %v2350 = vsel %vm2334, %v2301, -inf
    %2351 = vmax.xlane.f32.xlu0 %v2350
    %v2352 = vpop.xlane.xlu0 %2351
    %v2353 = vsel %vm2334, %v2306, -inf
    %2354 = vmax.xlane.f32.xlu0 %v2353
    %v2355 = vpop.xlane.xlu0 %2354
    %v2356 = vsel %vm2334, %v2311, -inf
    %2357 = vmax.xlane.f32.xlu0 %v2356
    %v2358 = vpop.xlane.xlu0 %2357
    %v2359 = vsel %vm2334, %v2316, -inf
    %2360 = vmax.xlane.f32.xlu0 %v2359
    %v2361 = vpop.xlane.xlu0 %2360
    %v2362 = vsel %vm2334, %v2321, -inf
    %2363 = vmax.xlane.f32.xlu0 %v2362
    %v2364 = vpop.xlane.xlu0 %2363
    %v2365 = vsel %vm2334, %v2326, -inf
    %2366 = vmax.xlane.f32.xlu0 %v2365
    %v2367 = vpop.xlane.xlu0 %2366
    %v2368 = vsel %vm2334, %v2331, -inf
    %2369 = vmax.xlane.f32.xlu0 %v2368
    %v2370 = vpop.xlane.xlu0 %2369
    %v2371 = vsub.f32 %v2276, %v2337
    %v2372 = vsub.f32 %v2281, %v2340
    %v2373 = vsub.f32 %v2286, %v2343
    %v2374 = vsub.f32 %v2291, %v2346
    %v2375 = vsub.f32 %v2296, %v2349
    %v2376 = vsub.f32 %v2301, %v2352
    %v2377 = vsub.f32 %v2306, %v2355
    %v2378 = vsub.f32 %v2311, %v2358
    %v2379 = vsub.f32 %v2316, %v2361
    %v2380 = vsub.f32 %v2321, %v2364
    %v2381 = vsub.f32 %v2326, %v2367
    %v2382 = vsub.f32 %v2331, %v2370
    %v2383 = vmul.f32 %v2371, 1.442695
    %v2384 = vpow.pop %v2383
    %v2385 = vmul.f32 %v2372, 1.442695
    %v2386 = vpow.pop %v2385
    %v2387 = vmul.f32 %v2373, 1.442695
    %v2388 = vpow.pop %v2387
    %v2389 = vmul.f32 %v2374, 1.442695
    %v2390 = vpow.pop %v2389
    %v2391 = vmul.f32 %v2375, 1.442695
    %v2392 = vpow.pop %v2391
    %v2393 = vmul.f32 %v2376, 1.442695
    %v2394 = vpow.pop %v2393
    %v2395 = vmul.f32 %v2377, 1.442695
    %v2396 = vpow.pop %v2395
    %v2397 = vmul.f32 %v2378, 1.442695
    %v2398 = vpow.pop %v2397
    %v2399 = vmul.f32 %v2379, 1.442695
    %v2400 = vpow.pop %v2399
    %v2401 = vmul.f32 %v2380, 1.442695
    %v2402 = vpow.pop %v2401
    %v2403 = vmul.f32 %v2381, 1.442695
    %v2404 = vpow.pop %v2403
    %v2405 = vmul.f32 %v2382, 1.442695
    %v2406 = vpow.pop %v2405
    %v2407 = vsel %vm2334, %v2384, 0.0
    %2408 = vadd.xlane.f32.xlu0 %v2407
    %v2409 = vpop.xlane.xlu0 %2408
    %v2410 = vsel %vm2334, %v2386, 0.0
    %2411 = vadd.xlane.f32.xlu0 %v2410
    %v2412 = vpop.xlane.xlu0 %2411
    %v2413 = vsel %vm2334, %v2388, 0.0
    %2414 = vadd.xlane.f32.xlu0 %v2413
    %v2415 = vpop.xlane.xlu0 %2414
    %v2416 = vsel %vm2334, %v2390, 0.0
    %2417 = vadd.xlane.f32.xlu0 %v2416
    %v2418 = vpop.xlane.xlu0 %2417
    %v2419 = vsel %vm2334, %v2392, 0.0
    %2420 = vadd.xlane.f32.xlu0 %v2419
    %v2421 = vpop.xlane.xlu0 %2420
    %v2422 = vsel %vm2334, %v2394, 0.0
    %2423 = vadd.xlane.f32.xlu0 %v2422
    %v2424 = vpop.xlane.xlu0 %2423
    %v2425 = vsel %vm2334, %v2396, 0.0
    %2426 = vadd.xlane.f32.xlu0 %v2425
    %v2427 = vpop.xlane.xlu0 %2426
    %v2428 = vsel %vm2334, %v2398, 0.0
    %2429 = vadd.xlane.f32.xlu0 %v2428
    %v2430 = vpop.xlane.xlu0 %2429
    %v2431 = vsel %vm2334, %v2400, 0.0
    %2432 = vadd.xlane.f32.xlu0 %v2431
    %v2433 = vpop.xlane.xlu0 %2432
    %v2434 = vsel %vm2334, %v2402, 0.0
    %2435 = vadd.xlane.f32.xlu0 %v2434
    %v2436 = vpop.xlane.xlu0 %2435
    %v2437 = vsel %vm2334, %v2404, 0.0
    %2438 = vadd.xlane.f32.xlu0 %v2437
    %v2439 = vpop.xlane.xlu0 %2438
    %v2440 = vsel %vm2334, %v2406, 0.0
    %2441 = vadd.xlane.f32.xlu0 %v2440
    %v2442 = vpop.xlane.xlu0 %2441
    %v2443 = vlog2.pop %v2409
    %v2444 = vmul.f32 %v2443, 0.6931472
    %v2445 = vlog2.pop %v2412
    %v2446 = vmul.f32 %v2445, 0.6931472
    %v2447 = vlog2.pop %v2415
    %v2448 = vmul.f32 %v2447, 0.6931472
    %v2449 = vlog2.pop %v2418
    %v2450 = vmul.f32 %v2449, 0.6931472
    %v2451 = vlog2.pop %v2421
    %v2452 = vmul.f32 %v2451, 0.6931472
    %v2453 = vlog2.pop %v2424
    %v2454 = vmul.f32 %v2453, 0.6931472
    %v2455 = vlog2.pop %v2427
    %v2456 = vmul.f32 %v2455, 0.6931472
    %v2457 = vlog2.pop %v2430
    %v2458 = vmul.f32 %v2457, 0.6931472
    %v2459 = vlog2.pop %v2433
    %v2460 = vmul.f32 %v2459, 0.6931472
    %v2461 = vlog2.pop %v2436
    %v2462 = vmul.f32 %v2461, 0.6931472
    %v2463 = vlog2.pop %v2439
    %v2464 = vmul.f32 %v2463, 0.6931472
    %v2465 = vlog2.pop %v2442
    %v2466 = vmul.f32 %v2465, 0.6931472
    %v2467 = vsub.f32 %v2371, %v2444
    %v2468 = vsub.f32 %v2372, %v2446
    %v2469 = vsub.f32 %v2373, %v2448
    %v2470 = vsub.f32 %v2374, %v2450
    %v2471 = vsub.f32 %v2375, %v2452
    %v2472 = vsub.f32 %v2376, %v2454
    %v2473 = vsub.f32 %v2377, %v2456
    %v2474 = vsub.f32 %v2378, %v2458
    %v2475 = vsub.f32 %v2379, %v2460
    %v2476 = vsub.f32 %v2380, %v2462
    %v2477 = vsub.f32 %v2381, %v2464
    %v2478 = vsub.f32 %v2382, %v2466
    %2479 = vst.msk [vmem:[#allocation2] sm:$0xff] %vm2334, %v2467
    %2480 = vst.msk [vmem:[#allocation2 + $0x8] sm:$0xff] %vm2334, %v2468
    %s2481 = scalar_lea.vmem [#allocation2], 16
    %2482 = vst.msk [vmem:[%s2481] sm:$0xff] %vm2334, %v2469
    %2483 = vst.msk [vmem:[%s2481 + $0x8] sm:$0xff] %vm2334, %v2470
    %s2484 = scalar_lea.vmem [#allocation2], 32
    %2485 = vst.msk [vmem:[%s2484] sm:$0xff] %vm2334, %v2471
    %2486 = vst.msk [vmem:[%s2484 + $0x8] sm:$0xff] %vm2334, %v2472
    %s2487 = scalar_lea.vmem [#allocation2], 48
    %2488 = vst.msk [vmem:[%s2487] sm:$0xff] %vm2334, %v2473
    %2489 = vst.msk [vmem:[%s2487 + $0x8] sm:$0xff] %vm2334, %v2474
    %s2490 = scalar_lea.vmem [#allocation2], 64
    %2491 = vst.msk [vmem:[%s2490] sm:$0xff] %vm2334, %v2475
    %2492 = vst.msk [vmem:[%s2490 + $0x8] sm:$0xff] %vm2334, %v2476
    %s2493 = scalar_lea.vmem [#allocation2], 80
    %2494 = vst.msk [vmem:[%s2493] sm:$0xff] %vm2334, %v2477
    %2495 = vst.msk [vmem:[%s2493 + $0x8] sm:$0xff] %vm2334, %v2478
    // Predicated region
    $region38: #{attn_decoder_decode.1} parent=1 // pred_check
      _
    $region39: #{attn_decoder_decode.1} parent=1 // pred_check_branch
      %2497 = sbr.rel (0) target = $region41
    $region40: #{attn_decoder_decode.1} parent=1 // pred_region
      %s2499 = ssub.s32 1536, 1536
      %2500 = vsyncadd [#allocation3], %s2499
      %s2501 = sshll.u32 [#allocation2], 4
      %s2502 = int_to_ptr.vmem [resolvable:$true] %s2501
      %2507 = dma.vmem_to_hbm [thread:$0]  %s2502, 1536, %s9, [#allocation3], 128, 128, 8
    $region41: #{attn_decoder_decode.1} parent=1 // pred_fallthru
      _
    // Predicated region
    $region42: #{attn_decoder_decode.1} parent=1 // pred_check
      _
    $region43: #{attn_decoder_decode.1} parent=1 // pred_check_branch
      %2509 = sbr.rel (0) target = $region45
    $region44: #{attn_decoder_decode.1} parent=1 // pred_region
      _
    $region45: #{attn_decoder_decode.1} parent=1 // pred_fallthru
      _
    // Predicated region
    $region46: #{attn_decoder_decode.1} parent=1 // pred_check
      _
    $region47: #{attn_decoder_decode.1} parent=1 // pred_check_branch
      %2511 = sbr.rel (0) target = $region49
    $region48: #{attn_decoder_decode.1} parent=1 // pred_region
      %s2513 = ssub.s32 256, 256
      %2514 = vsyncadd [#allocation5], %s2513
      %s2515 = sshll.u32 [#allocation4], 4
      %s2516 = int_to_ptr.vmem [resolvable:$true] %s2515
      %2521 = dma.vmem_to_hbm [thread:$0]  %s2516, 256, %s11, [#allocation5], 128, 128, 8
    $region49: #{attn_decoder_decode.1} parent=1 // pred_fallthru
      _
    // Predicated region
    $region50: #{attn_decoder_decode.1} parent=1 // pred_check
      _
    $region51: #{attn_decoder_decode.1} parent=1 // pred_check_branch
      %2523 = sbr.rel (0) target = $region53
    $region52: #{attn_decoder_decode.1} parent=1 // pred_region
      %2524 = dma.done [#allocation3], 1536
    $region53: #{attn_decoder_decode.1} parent=1 // pred_fallthru
      _
    // Predicated region
    $region54: #{attn_decoder_decode.1} parent=1 // pred_check
      _
    $region55: #{attn_decoder_decode.1} parent=1 // pred_check_branch
      %2526 = sbr.rel (0) target = $region57
    $region56: #{attn_decoder_decode.1} parent=1 // pred_region
      _
    $region57: #{attn_decoder_decode.1} parent=1 // pred_fallthru
      _
    // Predicated region
    $region58: #{attn_decoder_decode.1} parent=1 // pred_check
      _
    $region59: #{attn_decoder_decode.1} parent=1 // pred_check_branch
      %2528 = sbr.rel (0) target = $region61
    $region60: #{attn_decoder_decode.1} parent=1 // pred_region
      %2529 = dma.done [#allocation5], 256
    $region61: #{attn_decoder_decode.1} parent=1 // pred_fallthru
      _
    %2530 = vsyncpa [#allocation3], 1
    %2531 = vsyncpa [#allocation5], 1

</llo_original>
